<compile_context>
chip_gen: v7x
topology: tpu7x:2x2x1
jax: 0.10.0
libtpu: 0.0.40
codegen_flags: <defaults>
</compile_context>

<pallas_src>
import functools

import jax
import jax.numpy as jnp
import numpy as np
from jax.experimental import pallas as pl
from jax.experimental.pallas import tpu as pltpu


def _round_up(x, m):
    return ((x + m - 1) // m) * m


_LANE = 128                      # output-channel padding granularity
_NEG_SLOPE = 0.01                # LeakyReLU slope (matches nn.LeakyReLU(0.01))
_TM_CAP = 512                    # max rows handled as a single full-extent M block
_TM_SPLIT = 256                  # M tile when M is large (>=2 blocks -> v7x megacore)
_K_SINGLE_SHOT = 4096            # largest K handled without a K-reduction grid axis
_TK = 2048                       # K tile for the (rare) K-reduction fallback
_VMEM_LIMIT = 32 * 1024 * 1024


# ----------------------------------------------------------------------------
# Pallas kernels.
# ----------------------------------------------------------------------------
def _gemm_bias_act_kernel(a_ref, b_ref, bias_ref, o_ref, *, apply_leaky):
    """Single-shot GEMM (full K in one block) + bias + optional LeakyReLU."""
    out = jnp.dot(a_ref[...], b_ref[...], preferred_element_type=jnp.float32)
    out = out + bias_ref[...]                       # (1, tn) broadcasts
    if apply_leaky:
        out = jnp.where(out >= 0.0, out, out * _NEG_SLOPE)
    o_ref[...] = out.astype(o_ref.dtype)


def _gemm_bias_act_acc_kernel(a_ref, b_ref, bias_ref, o_ref, acc_ref, *,
                              apply_leaky):
    """K-reduction fallback (only used when K > _K_SINGLE_SHOT)."""
    @pl.when(pl.program_id(2) == 0)
    def _():
        acc_ref[...] = jnp.zeros_like(acc_ref)

    acc_ref[...] += jnp.dot(a_ref[...], b_ref[...],
                            preferred_element_type=jnp.float32)

    @pl.when(pl.program_id(2) == pl.num_programs(2) - 1)
    def _():
        out = acc_ref[...] + bias_ref[...]
        if apply_leaky:
            out = jnp.where(out >= 0.0, out, out * _NEG_SLOPE)
        o_ref[...] = out.astype(o_ref.dtype)


def _fused_heads_kernel(a1_ref, b1_ref, a2_ref, b2_ref, o1_ref, o2_ref):
    """conv1 and conv2 head GEMMs (no bias) fused into one launch."""
    o1_ref[...] = jnp.dot(a1_ref[...], b1_ref[...],
                          preferred_element_type=jnp.float32)
    o2_ref[...] = jnp.dot(a2_ref[...], b2_ref[...],
                          preferred_element_type=jnp.float32)


# ----------------------------------------------------------------------------
# GEMM wrappers.
# ----------------------------------------------------------------------------
def _pallas_gemm(a, b_pad, bias_pad, apply_leaky, out_dtype):
    """a: (m, k) bf16; b_pad: (k, n_pad) bf16, n_pad % 128 == 0;
    bias_pad: (1, n_pad) f32.  Returns (m, n_pad) lane-dense output (channel
    padding is carried to the caller, never sliced here)."""
    m, k = a.shape
    kb, n_pad = b_pad.shape
    assert k == kb and n_pad % _LANE == 0, (a.shape, b_pad.shape)

    # M tiling: a single full-extent block (no padding) when m is small;
    # split into 256-row (16-multiple, bf16-friendly) blocks when m is large
    # so the parallel M axis can engage both TensorCores on v7x.
    if m <= _TM_CAP:
        tm, m_pad = m, m
    else:
        tm = _TM_SPLIT
        m_pad = _round_up(m, tm)
    tn = 256 if n_pad % 256 == 0 else _LANE

    a_p = a if m_pad == m else jnp.pad(a, ((0, m_pad - m), (0, 0)))

    if k <= _K_SINGLE_SHOT:
        # Every layer of this config takes this path (K-grid == 1): no
        # accumulator scratch, no init/finalize machinery.
        grid = (m_pad // tm, n_pad // tn)
        kernel = functools.partial(_gemm_bias_act_kernel,
                                   apply_leaky=apply_leaky)
        out = pl.pallas_call(
            kernel,
            out_shape=jax.ShapeDtypeStruct((m_pad, n_pad), out_dtype),
            grid_spec=pltpu.PrefetchScalarGridSpec(
                num_scalar_prefetch=0,
                grid=grid,
                in_specs=[
                    pl.BlockSpec((tm, k), lambda i, j: (i, 0)),
                    pl.BlockSpec((k, tn), lambda i, j: (0, j)),
                    pl.BlockSpec((1, tn), lambda i, j: (0, j)),
                ],
                out_specs=pl.BlockSpec((tm, tn), lambda i, j: (i, j)),
            ),
            compiler_params=pltpu.CompilerParams(
                dimension_semantics=("parallel", "parallel"),
                vmem_limit_bytes=_VMEM_LIMIT,
            ),
        )(a_p, b_pad, bias_pad)
    else:
        # Rare fallback for very large K: pad K to a _TK multiple and reduce
        # over a trailing K grid axis with a VMEM f32 accumulator.
        k_pad = _round_up(k, _TK)
        a_p = jnp.pad(a_p, ((0, 0), (0, k_pad - k)))
        b_p = jnp.pad(b_pad, ((0, k_pad - k), (0, 0)))
        grid = (m_pad // tm, n_pad // tn, k_pad // _TK)
        kernel = functools.partial(_gemm_bias_act_acc_kernel,
                                   apply_leaky=apply_leaky)
        out = pl.pallas_call(
            kernel,
            out_shape=jax.ShapeDtypeStruct((m_pad, n_pad), out_dtype),
            grid_spec=pltpu.PrefetchScalarGridSpec(
                num_scalar_prefetch=0,
                grid=grid,
                in_specs=[
                    pl.BlockSpec((tm, _TK), lambda i, j, kk: (i, kk)),
                    pl.BlockSpec((_TK, tn), lambda i, j, kk: (kk, j)),
                    pl.BlockSpec((1, tn), lambda i, j, kk: (0, j)),
                ],
                out_specs=pl.BlockSpec((tm, tn), lambda i, j, kk: (i, j)),
                scratch_shapes=[pltpu.VMEM((tm, tn), jnp.float32)],
            ),
            compiler_params=pltpu.CompilerParams(
                dimension_semantics=("parallel", "parallel", "arbitrary"),
                vmem_limit_bytes=_VMEM_LIMIT,
            ),
        )(a_p, b_p, bias_pad)

    return out[:m] if m_pad != m else out


def _fused_heads(a1, b1, a2, b2):
    """One pallas_call computing both (bias-free) head GEMMs in f32."""
    m1, n1 = a1.shape[0], b1.shape[1]
    m2, n2 = a2.shape[0], b2.shape[1]
    return pl.pallas_call(
        _fused_heads_kernel,
        out_shape=(jax.ShapeDtypeStruct((m1, n1), jnp.float32),
                   jax.ShapeDtypeStruct((m2, n2), jnp.float32)),
        compiler_params=pltpu.CompilerParams(vmem_limit_bytes=_VMEM_LIMIT),
    )(a1, b1, a2, b2)


# ----------------------------------------------------------------------------
# Glue: im2col patch extraction (NHWC), tap ordering (kh, kw, cin).
# ----------------------------------------------------------------------------
def _im2col(x_nhwc, kh, kw, stride, pad):
    # TODO(synk): fuse this tap loop into the Pallas kernel (strided in-kernel
    # windows) to avoid the kh*kw activation replication in HBM.
    if pad:
        x_nhwc = jnp.pad(x_nhwc, ((0, 0), (pad, pad), (pad, pad), (0, 0)))
    n, hp, wp, c = x_nhwc.shape
    oh = (hp - kh) // stride + 1
    ow = (wp - kw) // stride + 1
    cols = []
    for i in range(kh):
        for j in range(kw):
            cols.append(x_nhwc[:, i:i + stride * oh:stride,
                               j:j + stride * ow:stride, :])
    patches = jnp.concatenate(cols, axis=-1)        # (n, oh, ow, kh*kw*c)
    return patches, oh, ow


def conv2d_pallas(x_nhwc, layer, stride, pad, apply_leaky, out_dtype):
    patches, oh, ow = _im2col(x_nhwc.astype(jnp.bfloat16),
                              layer["kh"], layer["kw"], stride, pad)
    n = x_nhwc.shape[0]
    a = patches.reshape(n * oh * ow, -1)
    out = _pallas_gemm(a, layer["w_mat"], layer["bias_pad"], apply_leaky,
                       out_dtype)
    # Channel padding (n_pad) is carried to the next layer; only the final
    # heads slice real channels out.
    return out.reshape(n, oh, ow, layer["n_pad"])


# ----------------------------------------------------------------------------
# Spectral norm (one power iteration at init; PyTorch keeps a persistent u).
# ----------------------------------------------------------------------------
def spectral_normalize(w, key, eps=1e-12):
    cout = w.shape[0]
    w_mat = w.reshape(cout, -1)
    u = jax.random.normal(key, (cout,), dtype=jnp.float32)
    u = u / (jnp.linalg.norm(u) + eps)
    v = w_mat.T @ u
    v = v / (jnp.linalg.norm(v) + eps)
    u = w_mat @ v
    u = u / (jnp.linalg.norm(u) + eps)
    sigma = u @ (w_mat @ v)
    return w / sigma


# ----------------------------------------------------------------------------
# Parameter init: weight layout, channel padding and bf16 cast hoisted here.
# ----------------------------------------------------------------------------
def _prepare_conv(w, b, cin_pad):
    """(Cout, Cin, KH, KW) PyTorch weight -> GEMM matrix (KH*KW*cin_pad,
    n_pad) matching the im2col tap ordering (kh, kw, cin), with input channels
    padded to the previous layer's lane-padded width and output channels
    padded to a 128 multiple.  Bias is zero-padded f32 (1, n_pad)."""
    cout, cin, kh, kw = w.shape
    assert cin_pad >= cin
    n_pad = _round_up(cout, _LANE)
    w_p = jnp.pad(w, ((0, 0), (0, cin_pad - cin), (0, 0), (0, 0)))
    w_mat = jnp.transpose(w_p, (2, 3, 1, 0)).reshape(kh * kw * cin_pad, cout)
    w_mat = jnp.pad(w_mat, ((0, 0), (0, n_pad - cout)))
    bias = b if b is not None else jnp.zeros((cout,), jnp.float32)
    bias_pad = jnp.pad(bias.astype(jnp.float32),
                       (0, n_pad - cout)).reshape(1, n_pad)
    return {"w_mat": w_mat.astype(jnp.bfloat16), "bias_pad": bias_pad,
            "kh": kh, "kw": kw, "cin": cin, "cout": cout,
            "cin_pad": cin_pad, "n_pad": n_pad, "w": w, "b": b}


def init_discriminator_params(key, image_size=16, conv_dim=8, c_dim=5,
                              repeat_num=3, use_sn=True):
    dims = [(3, conv_dim)]
    curr = conv_dim
    for _ in range(1, repeat_num):
        dims.append((curr, curr * 2))
        curr *= 2

    def mk_conv(key, cin, cout, ksz, bias, cin_pad):
        kw_key, kb_key, sn_key = jax.random.split(key, 3)
        fan_in = cin * ksz * ksz
        w = jax.random.normal(kw_key, (cout, cin, ksz, ksz),
                              jnp.float32) / np.sqrt(fan_in)
        if use_sn:
            w = spectral_normalize(w, sn_key)
        b = (jax.random.normal(kb_key, (cout,), jnp.float32) * 0.01) if bias else None
        return _prepare_conv(w, b, cin_pad)

    keys = jax.random.split(key, repeat_num + 2)
    params = {"main": []}
    cin_pad = 3                         # network input is not channel-padded
    for i, (cin, cout) in enumerate(dims):
        layer = mk_conv(keys[i], cin, cout, 4, bias=True, cin_pad=cin_pad)
        params["main"].append(layer)
        cin_pad = layer["n_pad"]        # carry lane padding to the next layer

    k_last = int(image_size / np.power(2, repeat_num))
    params["conv1"] = mk_conv(keys[repeat_num], curr, 1, 3, bias=False,
                              cin_pad=cin_pad)
    params["conv2"] = mk_conv(keys[repeat_num + 1], curr, c_dim, k_last,
                              bias=False, cin_pad=cin_pad)
    params["k_last"] = k_last
    return params


# ----------------------------------------------------------------------------
# Forward
# ----------------------------------------------------------------------------
def discriminator_forward(params, x_nchw):
    h = jnp.transpose(x_nchw, (0, 2, 3, 1)).astype(jnp.bfloat16)  # NCHW->NHWC
    for layer in params["main"]:
        h = conv2d_pallas(h, layer, stride=2, pad=1, apply_leaky=True,
                          out_dtype=jnp.bfloat16)

    n = h.shape[0]
    c1, c2 = params["conv1"], params["conv2"]
    p1, oh1, ow1 = _im2col(h, c1["kh"], c1["kw"], stride=1, pad=1)
    a1 = p1.reshape(n * oh1 * ow1, -1)
    p2, oh2, ow2 = _im2col(h, c2["kh"], c2["kw"], stride=1, pad=0)
    assert oh2 == 1 and ow2 == 1, (oh2, ow2)   # conv2 spans the full extent
    a2 = p2.reshape(n * oh2 * ow2, -1)

    o1, o2 = _fused_heads(a1, c1["w_mat"], a2, c2["w_mat"])

    out_src = o1[:, :c1["cout"]].reshape(n, oh1, ow1, c1["cout"])
    out_src = jnp.transpose(out_src, (0, 3, 1, 2))          # (N, 1, H, W)
    out_cls = o2[:, :c2["cout"]]                            # (N, c_dim)
    return out_src, out_cls


# ----------------------------------------------------------------------------
# Pure-JAX reference (same bf16 casts, f32 accumulation) for a sanity check.
# ----------------------------------------------------------------------------
def _conv_ref(x_nhwc, w, b, stride, pad, apply_leaky):
    out = jax.lax.conv_general_dilated(
        x_nhwc.astype(jnp.bfloat16),
        jnp.transpose(w, (2, 3, 1, 0)).astype(jnp.bfloat16),
        window_strides=(stride, stride),
        padding=((pad, pad), (pad, pad)),
        dimension_numbers=("NHWC", "HWIO", "NHWC"),
        preferred_element_type=jnp.float32)
    if b is not None:
        out = out + b
    if apply_leaky:
        out = jnp.where(out >= 0.0, out, out * _NEG_SLOPE)
    return out


def discriminator_forward_ref(params, x_nchw):
    h = jnp.transpose(x_nchw, (0, 2, 3, 1))
    for layer in params["main"]:
        h = _conv_ref(h, layer["w"], layer["b"], 2, 1, True).astype(jnp.bfloat16)
    out_src = _conv_ref(h, params["conv1"]["w"], None, 1, 1, False)
    out_cls = _conv_ref(h, params["conv2"]["w"], None, 1, 0, False)
    return (jnp.transpose(out_src, (0, 3, 1, 2)),
            out_cls.reshape(out_cls.shape[0], out_cls.shape[3]))


if __name__ == "__main__":
    key = jax.random.PRNGKey(0)
    k_params, k_x = jax.random.split(key)

    # Small config consistent with the module: image_size=16, conv_dim=8,
    # c_dim=5, repeat_num=3  ->  last kernel_size = 16 / 2**3 = 2.
    params = init_discriminator_params(k_params, image_size=16, conv_dim=8,
                                       c_dim=5, repeat_num=3, use_sn=True)

    x = jax.random.normal(k_x, (2, 3, 16, 16), jnp.float32)   # NCHW like PyTorch

    fwd = jax.jit(functools.partial(discriminator_forward, params))
    out_src, out_cls = fwd(x)
    out_src = jax.block_until_ready(out_src)
    out_cls = jax.block_until_ready(out_cls)

    assert out_src.shape == (2, 1, 2, 2), out_src.shape
    assert out_cls.shape == (2, 5), out_cls.shape

    # Sanity check against a pure-JAX reference with the same bf16-in /
    # f32-accumulate numerics.
    ref_src, ref_cls = discriminator_forward_ref(params, x)
    np.testing.assert_allclose(np.asarray(out_src), np.asarray(ref_src),
                               rtol=2e-2, atol=2e-2)
    np.testing.assert_allclose(np.asarray(out_cls), np.asarray(ref_cls),
                               rtol=2e-2, atol=2e-2)

    print("KERNEL_OK")
</pallas_src>

<mosaic_0001>
module attributes {stable_mosaic.version = 11 : i64} {
  func.func @_gemm_bias_act_kernel(%arg0: i32, %arg1: i32, %arg2: memref<128x48xbf16, #tpu.memory_space<vmem>>, %arg3: memref<48x128xbf16, #tpu.memory_space<vmem>>, %arg4: memref<1x128xf32, #tpu.memory_space<vmem>>, %arg5: memref<128x128xbf16, #tpu.memory_space<vmem>>) attributes {dimension_semantics = [#tpu.dimension_semantics<parallel>, #tpu.dimension_semantics<parallel>], iteration_bounds = array<i64: 1, 1>, scalar_prefetch = 0 : i64, scratch_operands = 0 : i64, tpu.core_type = #tpu.core_type<tc>, window_params = [{transform_indices = @transform_0, window_bounds = array<i64: 128, 48>}, {transform_indices = @transform_1, window_bounds = array<i64: 48, 128>}, {transform_indices = @transform_2, window_bounds = array<i64: 1, 128>}, {transform_indices = @transform_3, window_bounds = array<i64: 128, 128>}]} {
    %c0 = arith.constant 0 : index
    %c0_0 = arith.constant 0 : index
    %0 = vector.load %arg2[%c0, %c0_0] : memref<128x48xbf16, #tpu.memory_space<vmem>>, vector<128x48xbf16>
    %c0_1 = arith.constant 0 : index
    %c0_2 = arith.constant 0 : index
    %1 = vector.load %arg3[%c0_1, %c0_2] : memref<48x128xbf16, #tpu.memory_space<vmem>>, vector<48x128xbf16>
    %cst = arith.constant dense<0.000000e+00> : vector<128x128xf32>
    %2 = tpu.matmul %0, %1, %cst {dimension_numbers = #tpu.dot_dimension_numbers<[1], [0], [0], [1], [0, 0, 1, 1], [], []>} : vector<128x48xbf16>, vector<48x128xbf16>, vector<128x128xf32> -> vector<128x128xf32>
    %c0_3 = arith.constant 0 : index
    %c0_4 = arith.constant 0 : index
    %3 = vector.load %arg4[%c0_3, %c0_4] : memref<1x128xf32, #tpu.memory_space<vmem>>, vector<1x128xf32>
    %4 = vector.broadcast %3 : vector<1x128xf32> to vector<128x128xf32>
    %5 = arith.addf %2, %4 : vector<128x128xf32>
    %cst_5 = arith.constant 0.000000e+00 : f32
    %6 = vector.broadcast %cst_5 : f32 to vector<128x128xf32>
    %7 = arith.cmpf oge, %5, %6 : vector<128x128xf32>
    %cst_6 = arith.constant 0.00999999977 : f32
    %8 = vector.broadcast %cst_6 : f32 to vector<128x128xf32>
    %9 = arith.mulf %5, %8 : vector<128x128xf32>
    %10 = arith.select %7, %5, %9 : vector<128x128xi1>, vector<128x128xf32>
    %11 = arith.truncf %10 : vector<128x128xf32> to vector<128x128xbf16>
    %c0_7 = arith.constant 0 : index
    %c0_8 = arith.constant 0 : index
    %12 = vector.load %arg5[%c0_7, %c0_8] : memref<128x128xbf16, #tpu.memory_space<vmem>>, vector<128x128xbf16>
    tpu.vector_store %arg5[%c0_7, %c0_8], %11 {strides = array<i32>} : memref<128x128xbf16, #tpu.memory_space<vmem>>, vector<128x128xbf16>,
    return
  }
  func.func @transform_0(%arg0: i32, %arg1: i32) -> (i32, i32) {
    %c0_i32 = arith.constant 0 : i32
    %c0_i32_0 = arith.constant 0 : i32
    return %arg0, %c0_i32 : i32, i32
  }
  func.func @transform_1(%arg0: i32, %arg1: i32) -> (i32, i32) {
    %c0_i32 = arith.constant 0 : i32
    %c0_i32_0 = arith.constant 0 : i32
    return %c0_i32, %arg1 : i32, i32
  }
  func.func @transform_2(%arg0: i32, %arg1: i32) -> (i32, i32) {
    %c0_i32 = arith.constant 0 : i32
    %c0_i32_0 = arith.constant 0 : i32
    return %c0_i32, %arg1 : i32, i32
  }
  func.func @transform_3(%arg0: i32, %arg1: i32) -> (i32, i32) {
    %c0_i32 = arith.constant 0 : i32
    return %arg0, %arg1 : i32, i32
  }
}

module attributes {stable_mosaic.version = 11 : i64} {
  func.func @_gemm_bias_act_kernel(%arg0: i32, %arg1: i32, %arg2: memref<32x2048xbf16, #tpu.memory_space<vmem>>, %arg3: memref<2048x128xbf16, #tpu.memory_space<vmem>>, %arg4: memref<1x128xf32, #tpu.memory_space<vmem>>, %arg5: memref<32x128xbf16, #tpu.memory_space<vmem>>) attributes {dimension_semantics = [#tpu.dimension_semantics<parallel>, #tpu.dimension_semantics<parallel>], iteration_bounds = array<i64: 1, 1>, scalar_prefetch = 0 : i64, scratch_operands = 0 : i64, tpu.core_type = #tpu.core_type<tc>, window_params = [{transform_indices = @transform_0, window_bounds = array<i64: 32, 2048>}, {transform_indices = @transform_1, window_bounds = array<i64: 2048, 128>}, {transform_indices = @transform_2, window_bounds = array<i64: 1, 128>}, {transform_indices = @transform_3, window_bounds = array<i64: 32, 128>}]} {
    %c0 = arith.constant 0 : index
    %c0_0 = arith.constant 0 : index
    %0 = vector.load %arg2[%c0, %c0_0] : memref<32x2048xbf16, #tpu.memory_space<vmem>>, vector<32x2048xbf16>
    %c0_1 = arith.constant 0 : index
    %c0_2 = arith.constant 0 : index
    %1 = vector.load %arg3[%c0_1, %c0_2] : memref<2048x128xbf16, #tpu.memory_space<vmem>>, vector<2048x128xbf16>
    %cst = arith.constant dense<0.000000e+00> : vector<32x128xf32>
    %2 = tpu.matmul %0, %1, %cst {dimension_numbers = #tpu.dot_dimension_numbers<[1], [0], [0], [1], [0, 0, 1, 1], [], []>} : vector<32x2048xbf16>, vector<2048x128xbf16>, vector<32x128xf32> -> vector<32x128xf32>
    %c0_3 = arith.constant 0 : index
    %c0_4 = arith.constant 0 : index
    %3 = vector.load %arg4[%c0_3, %c0_4] : memref<1x128xf32, #tpu.memory_space<vmem>>, vector<1x128xf32>
    %4 = vector.broadcast %3 : vector<1x128xf32> to vector<32x128xf32>
    %5 = arith.addf %2, %4 : vector<32x128xf32>
    %cst_5 = arith.constant 0.000000e+00 : f32
    %6 = vector.broadcast %cst_5 : f32 to vector<32x128xf32>
    %7 = arith.cmpf oge, %5, %6 : vector<32x128xf32>
    %cst_6 = arith.constant 0.00999999977 : f32
    %8 = vector.broadcast %cst_6 : f32 to vector<32x128xf32>
    %9 = arith.mulf %5, %8 : vector<32x128xf32>
    %10 = arith.select %7, %5, %9 : vector<32x128xi1>, vector<32x128xf32>
    %11 = arith.truncf %10 : vector<32x128xf32> to vector<32x128xbf16>
    %c0_7 = arith.constant 0 : index
    %c0_8 = arith.constant 0 : index
    %12 = vector.load %arg5[%c0_7, %c0_8] : memref<32x128xbf16, #tpu.memory_space<vmem>>, vector<32x128xbf16>
    tpu.vector_store %arg5[%c0_7, %c0_8], %11 {strides = array<i32>} : memref<32x128xbf16, #tpu.memory_space<vmem>>, vector<32x128xbf16>,
    return
  }
  func.func @transform_0(%arg0: i32, %arg1: i32) -> (i32, i32) {
    %c0_i32 = arith.constant 0 : i32
    %c0_i32_0 = arith.constant 0 : i32
    return %arg0, %c0_i32 : i32, i32
  }
  func.func @transform_1(%arg0: i32, %arg1: i32) -> (i32, i32) {
    %c0_i32 = arith.constant 0 : i32
    %c0_i32_0 = arith.constant 0 : i32
    return %c0_i32, %arg1 : i32, i32
  }
  func.func @transform_2(%arg0: i32, %arg1: i32) -> (i32, i32) {
    %c0_i32 = arith.constant 0 : i32
    %c0_i32_0 = arith.constant 0 : i32
    return %c0_i32, %arg1 : i32, i32
  }
  func.func @transform_3(%arg0: i32, %arg1: i32) -> (i32, i32) {
    %c0_i32 = arith.constant 0 : i32
    return %arg0, %arg1 : i32, i32
  }
}

module attributes {stable_mosaic.version = 11 : i64} {
  func.func @_gemm_bias_act_kernel(%arg0: i32, %arg1: i32, %arg2: memref<8x2048xbf16, #tpu.memory_space<vmem>>, %arg3: memref<2048x128xbf16, #tpu.memory_space<vmem>>, %arg4: memref<1x128xf32, #tpu.memory_space<vmem>>, %arg5: memref<8x128xbf16, #tpu.memory_space<vmem>>) attributes {dimension_semantics = [#tpu.dimension_semantics<parallel>, #tpu.dimension_semantics<parallel>], iteration_bounds = array<i64: 1, 1>, scalar_prefetch = 0 : i64, scratch_operands = 0 : i64, tpu.core_type = #tpu.core_type<tc>, window_params = [{transform_indices = @transform_0, window_bounds = array<i64: 8, 2048>}, {transform_indices = @transform_1, window_bounds = array<i64: 2048, 128>}, {transform_indices = @transform_2, window_bounds = array<i64: 1, 128>}, {transform_indices = @transform_3, window_bounds = array<i64: 8, 128>}]} {
    %c0 = arith.constant 0 : index
    %c0_0 = arith.constant 0 : index
    %0 = vector.load %arg2[%c0, %c0_0] : memref<8x2048xbf16, #tpu.memory_space<vmem>>, vector<8x2048xbf16>
    %c0_1 = arith.constant 0 : index
    %c0_2 = arith.constant 0 : index
    %1 = vector.load %arg3[%c0_1, %c0_2] : memref<2048x128xbf16, #tpu.memory_space<vmem>>, vector<2048x128xbf16>
    %cst = arith.constant dense<0.000000e+00> : vector<8x128xf32>
    %2 = tpu.matmul %0, %1, %cst {dimension_numbers = #tpu.dot_dimension_numbers<[1], [0], [0], [1], [0, 0, 1, 1], [], []>} : vector<8x2048xbf16>, vector<2048x128xbf16>, vector<8x128xf32> -> vector<8x128xf32>
    %c0_3 = arith.constant 0 : index
    %c0_4 = arith.constant 0 : index
    %3 = vector.load %arg4[%c0_3, %c0_4] : memref<1x128xf32, #tpu.memory_space<vmem>>, vector<1x128xf32>
    %4 = vector.broadcast %3 : vector<1x128xf32> to vector<8x128xf32>
    %5 = arith.addf %2, %4 : vector<8x128xf32>
    %cst_5 = arith.constant 0.000000e+00 : f32
    %6 = vector.broadcast %cst_5 : f32 to vector<8x128xf32>
    %7 = arith.cmpf oge, %5, %6 : vector<8x128xf32>
    %cst_6 = arith.constant 0.00999999977 : f32
    %8 = vector.broadcast %cst_6 : f32 to vector<8x128xf32>
    %9 = arith.mulf %5, %8 : vector<8x128xf32>
    %10 = arith.select %7, %5, %9 : vector<8x128xi1>, vector<8x128xf32>
    %11 = arith.truncf %10 : vector<8x128xf32> to vector<8x128xbf16>
    %c0_7 = arith.constant 0 : index
    %c0_8 = arith.constant 0 : index
    %12 = vector.load %arg5[%c0_7, %c0_8] : memref<8x128xbf16, #tpu.memory_space<vmem>>, vector<8x128xbf16>
    tpu.vector_store %arg5[%c0_7, %c0_8], %11 {strides = array<i32>} : memref<8x128xbf16, #tpu.memory_space<vmem>>, vector<8x128xbf16>,
    return
  }
  func.func @transform_0(%arg0: i32, %arg1: i32) -> (i32, i32) {
    %c0_i32 = arith.constant 0 : i32
    %c0_i32_0 = arith.constant 0 : i32
    return %arg0, %c0_i32 : i32, i32
  }
  func.func @transform_1(%arg0: i32, %arg1: i32) -> (i32, i32) {
    %c0_i32 = arith.constant 0 : i32
    %c0_i32_0 = arith.constant 0 : i32
    return %c0_i32, %arg1 : i32, i32
  }
  func.func @transform_2(%arg0: i32, %arg1: i32) -> (i32, i32) {
    %c0_i32 = arith.constant 0 : i32
    %c0_i32_0 = arith.constant 0 : i32
    return %c0_i32, %arg1 : i32, i32
  }
  func.func @transform_3(%arg0: i32, %arg1: i32) -> (i32, i32) {
    %c0_i32 = arith.constant 0 : i32
    return %arg0, %arg1 : i32, i32
  }
}

module attributes {stable_mosaic.version = 11 : i64} {
  func.func @_fused_heads_kernel(%arg0: memref<8x1152xbf16, #tpu.memory_space<vmem>>, %arg1: memref<1152x128xbf16, #tpu.memory_space<vmem>>, %arg2: memref<2x512xbf16, #tpu.memory_space<vmem>>, %arg3: memref<512x128xbf16, #tpu.memory_space<vmem>>, %arg4: memref<8x128xf32, #tpu.memory_space<vmem>>, %arg5: memref<2x128xf32, #tpu.memory_space<vmem>>) attributes {dimension_semantics = [], scalar_prefetch = 0 : i64, scratch_operands = 0 : i64, tpu.core_type = #tpu.core_type<tc>} {
    %c0 = arith.constant 0 : index
    %c0_0 = arith.constant 0 : index
    %0 = vector.load %arg0[%c0, %c0_0] : memref<8x1152xbf16, #tpu.memory_space<vmem>>, vector<8x1152xbf16>
    %c0_1 = arith.constant 0 : index
    %c0_2 = arith.constant 0 : index
    %1 = vector.load %arg1[%c0_1, %c0_2] : memref<1152x128xbf16, #tpu.memory_space<vmem>>, vector<1152x128xbf16>
    %cst = arith.constant dense<0.000000e+00> : vector<8x128xf32>
    %2 = tpu.matmul %0, %1, %cst {dimension_numbers = #tpu.dot_dimension_numbers<[1], [0], [0], [1], [0, 0, 1, 1], [], []>} : vector<8x1152xbf16>, vector<1152x128xbf16>, vector<8x128xf32> -> vector<8x128xf32>
    %c0_3 = arith.constant 0 : index
    %c0_4 = arith.constant 0 : index
    %3 = vector.load %arg4[%c0_3, %c0_4] : memref<8x128xf32, #tpu.memory_space<vmem>>, vector<8x128xf32>
    tpu.vector_store %arg4[%c0_3, %c0_4], %2 {strides = array<i32>} : memref<8x128xf32, #tpu.memory_space<vmem>>, vector<8x128xf32>,
    %c0_5 = arith.constant 0 : index
    %c0_6 = arith.constant 0 : index
    %4 = vector.load %arg2[%c0_5, %c0_6] : memref<2x512xbf16, #tpu.memory_space<vmem>>, vector<2x512xbf16>
    %c0_7 = arith.constant 0 : index
    %c0_8 = arith.constant 0 : index
    %5 = vector.load %arg3[%c0_7, %c0_8] : memref<512x128xbf16, #tpu.memory_space<vmem>>, vector<512x128xbf16>
    %cst_9 = arith.constant dense<0.000000e+00> : vector<2x128xf32>
    %6 = tpu.matmul %4, %5, %cst_9 {dimension_numbers = #tpu.dot_dimension_numbers<[1], [0], [0], [1], [0, 0, 1, 1], [], []>} : vector<2x512xbf16>, vector<512x128xbf16>, vector<2x128xf32> -> vector<2x128xf32>
    %c0_10 = arith.constant 0 : index
    %c0_11 = arith.constant 0 : index
    %7 = vector.load %arg5[%c0_10, %c0_11] : memref<2x128xf32, #tpu.memory_space<vmem>>, vector<2x128xf32>
    tpu.vector_store %arg5[%c0_10, %c0_11], %6 {strides = array<i32>} : memref<2x128xf32, #tpu.memory_space<vmem>>, vector<2x128xf32>,
    return
  }
}

</mosaic_0001>

<llo_original>
// kernel: discriminator_forward.4
$region0: #{discriminator_forward.4}
  #allocation0 [shape = 'u32[]', space=smem, size = 0x4, offset = 0x4, fixed_abs, tag = 'smem constant byte address 0x4 - core index']
  #allocation1 [shape = 'u32[144,128]{1,0:T(1,128)}', space=vmem, size = 0x12000, scoped, tag = 'internal scratch']
  %s0 = inlined_call_operand.vmem [shape: bf16[128,48], index: 0, kind: input, shape index: {}]
  %s1 = inlined_call_operand.vmem [shape: bf16[48,128], index: 1, kind: input, shape index: {}]
  %s2 = inlined_call_operand.vmem [shape: f32[1,128], index: 2, kind: input, shape index: {}]
  %s3 = inlined_call_operand.vmem [shape: bf16[128,128], index: 3, kind: output, shape index: {}]
  %s4 = sld [smem:[#allocation0]]
  $region22: #{discriminator_forward.4} parent=0
    _
  %s6 = ssub.s32 1, %s4
  %s7 = scalar_select 0, %s6, %s4
  // Predicated region
  $region2: #{discriminator_forward.4} parent=0 // pred_check
    _
  $region3: #{discriminator_forward.4} parent=0 // pred_check_branch
    %9 = sbr.rel (0) target = $region5
  $region4: #{discriminator_forward.4} parent=0 // pred_region
    _
  $region5: #{discriminator_forward.4} parent=0 // pred_fallthru
    _
  // Predicated region
  $region6: #{discriminator_forward.4} parent=0 // pred_check
    _
  $region7: #{discriminator_forward.4} parent=0 // pred_check_branch
    %11 = sbr.rel (0) target = $region9
  $region8: #{discriminator_forward.4} parent=0 // pred_region
    _
  $region9: #{discriminator_forward.4} parent=0 // pred_fallthru
    _
  // Predicated region
  $region10: #{discriminator_forward.4} parent=0 // pred_check
    _
  $region11: #{discriminator_forward.4} parent=0 // pred_check_branch
    %13 = sbr.rel (0) target = $region13
  $region12: #{discriminator_forward.4} parent=0 // pred_region
    _
  $region13: #{discriminator_forward.4} parent=0 // pred_fallthru
    _
  %v15 = vld [vmem:[%s0] sm:$0xf]
  %v16 = vld [vmem:[%s0 + $0x4] sm:$0xf]
  %v17 = vld [vmem:[%s0 + $0x8] sm:$0xf]
  %v18 = vld [vmem:[%s0 + $0xc] sm:$0xf]
  %v19 = vld [vmem:[%s0 + $0x10] sm:$0xf]
  %v20 = vld [vmem:[%s0 + $0x14] sm:$0xf]
  %v21 = vld [vmem:[%s0 + $0x18] sm:$0xf]
  %v22 = vld [vmem:[%s0 + $0x1c] sm:$0xf]
  %v23 = vld [vmem:[%s0 + $0x20] sm:$0xf]
  %v24 = vld [vmem:[%s0 + $0x24] sm:$0xf]
  %v25 = vld [vmem:[%s0 + $0x28] sm:$0xf]
  %v26 = vld [vmem:[%s0 + $0x2c] sm:$0xf]
  %v27 = vld [vmem:[%s0 + $0x30] sm:$0xf]
  %v28 = vld [vmem:[%s0 + $0x34] sm:$0xf]
  %v29 = vld [vmem:[%s0 + $0x38] sm:$0xf]
  %v30 = vld [vmem:[%s0 + $0x3c] sm:$0xf]
  %v31 = vld [vmem:[%s1] sm:$0xf]
  %v32 = vld [vmem:[%s1 + $0x4] sm:$0xf]
  %v33 = vld [vmem:[%s1 + $0x8] sm:$0xf]
  %v34 = vld [vmem:[%s1 + $0xc] sm:$0xf]
  %v35 = vld [vmem:[%s1 + $0x10] sm:$0xf]
  %v36 = vld [vmem:[%s1 + $0x14] sm:$0xf]
  %v37 = vld [vmem:[%s2] sm:$0x1]
  %v39 = vlaneseq
  %v40 = vshrl.u32 %v39, 7
  %v41 = vsub.s32 0, %v40
  %v42 = vrot.slane %v37, %v41
  %v60 = vunpack.c.l.b16 %v15
  %v61 = vunpack.c.l.b16 %v16
  %v62 = vunpack.c.l.b16 %v17
  %v63 = vunpack.c.l.b16 %v18
  %v64 = vunpack.c.l.b16 %v19
  %v65 = vunpack.c.l.b16 %v20
  %v66 = vunpack.c.l.b16 %v21
  %v67 = vunpack.c.l.b16 %v22
  %v68 = vunpack.c.l.b16 %v23
  %v69 = vunpack.c.l.b16 %v24
  %v70 = vunpack.c.l.b16 %v25
  %v71 = vunpack.c.l.b16 %v26
  %v72 = vunpack.c.l.b16 %v27
  %v73 = vunpack.c.l.b16 %v28
  %v74 = vunpack.c.l.b16 %v29
  %v75 = vunpack.c.l.b16 %v30
  %v76 = vpack.c.b16 %v61, %v60
  %v77 = vpack.c.b16 %v63, %v62
  %v78 = vpack.c.b16 %v65, %v64
  %v79 = vpack.c.b16 %v67, %v66
  %v80 = vpack.c.b16 %v69, %v68
  %v81 = vpack.c.b16 %v71, %v70
  %v82 = vpack.c.b16 %v73, %v72
  %v83 = vpack.c.b16 %v75, %v74
  %v90 = vunpack.c.l.b16 %v31
  %v91 = vunpack.c.l.b16 %v32
  %v92 = vunpack.c.l.b16 %v33
  %v93 = vunpack.c.l.b16 %v34
  %v94 = vunpack.c.l.b16 %v35
  %v95 = vunpack.c.l.b16 %v36
  %v96 = vpack.c.b16 %v91, %v90
  %v97 = vpack.c.b16 %v93, %v92
  %v98 = vpack.c.b16 %v95, %v94
  %vm102 = vcmask 392192
  %v104 = vsel %vm102, %v76, 0
  %v107 = vsel %vm102, %v77, 0
  %v110 = vsel %vm102, %v78, 0
  %v113 = vsel %vm102, %v79, 0
  %v116 = vsel %vm102, %v80, 0
  %v119 = vsel %vm102, %v81, 0
  %v122 = vsel %vm102, %v82, 0
  %v125 = vsel %vm102, %v83, 0
  %127 = vmatprep.subr.bf16.mxu0 0
  %128 = vmatpush1.bf16.msra.mxu0 %v96
  %129 = vmatprep.subr.bf16.mxu0 0
  %130 = vmatpush1.bf16.msra.mxu0 %v97
  %131 = vmatprep.subr.bf16.mxu0 0
  %132 = vmatpush1.bf16.msra.mxu0 %v98
  %133 = vmatprep.subr.bf16.mxu0 0
  %134 = vmatpush1.bf16.msra.mxu0 0
  %135 = vmatprep.subr.bf16.mxu0 0
  %136 = vmatpush1.bf16.msra.mxu0 0
  %137 = vmatprep.subr.bf16.mxu0 0
  %138 = vmatpush1.bf16.msra.mxu0 0
  %139 = vmatprep.subr.bf16.mxu0 0
  %140 = vmatpush1.bf16.msra.mxu0 0
  %141 = vmatprep.subr.bf16.mxu0 0
  %142 = vmatpush1.bf16.msra.mxu0 0
  %143 = vmatprep.subr.bf16.mxu0 0
  %144 = vmatpush1.bf16.msra.mxu0 0
  %145 = vmatprep.subr.bf16.mxu0 0
  %146 = vmatpush1.bf16.msra.mxu0 0
  %147 = vmatprep.subr.bf16.mxu0 0
  %148 = vmatpush1.bf16.msra.mxu0 0
  %149 = vmatprep.subr.bf16.mxu0 0
  %150 = vmatpush1.bf16.msra.mxu0 0
  %151 = vmatprep.subr.bf16.mxu0 0
  %152 = vmatpush1.bf16.msra.mxu0 0
  %153 = vmatprep.subr.bf16.mxu0 0
  %154 = vmatpush1.bf16.msra.mxu0 0
  %155 = vmatprep.subr.bf16.mxu0 0
  %156 = vmatpush1.bf16.msra.mxu0 0
  %157 = vmatprep.subr.bf16.mxu0 0
  %158 = vmatpush1.bf16.msra.mxu0 0
  %159 = vmatprep.mubr.bf16.mxu0 0
  %160 = vmatmul.mubr.bf16.gmra.mrb[0].mxu0 %v104
  %v161 = vpop.f32.mrb[0].mxu0
  %v162 = vadd.f32 %v42, %v161
  %v163 = vpop.f32.mrb[0].mxu0
  %v164 = vpop.f32.mrb[0].mxu0
  %v165 = vadd.f32 %v42, %v164
  %v166 = vpop.f32.mrb[0].mxu0
  %167 = vmatprep.mubr.bf16.mxu0 0
  %168 = vmatmul.mubr.bf16.gmra.mrb[0].mxu0 %v107
  %v169 = vpop.f32.mrb[0].mxu0
  %v170 = vadd.f32 %v42, %v169
  %v171 = vpop.f32.mrb[0].mxu0
  %v172 = vpop.f32.mrb[0].mxu0
  %v173 = vadd.f32 %v42, %v172
  %v174 = vpop.f32.mrb[0].mxu0
  %175 = vmatprep.mubr.bf16.mxu0 0
  %176 = vmatmul.mubr.bf16.gmra.mrb[0].mxu0 %v110
  %v177 = vpop.f32.mrb[0].mxu0
  %v178 = vadd.f32 %v42, %v177
  %v179 = vpop.f32.mrb[0].mxu0
  %v180 = vpop.f32.mrb[0].mxu0
  %v181 = vadd.f32 %v42, %v180
  %v182 = vpop.f32.mrb[0].mxu0
  %183 = vmatprep.mubr.bf16.mxu0 0
  %184 = vmatmul.mubr.bf16.gmra.mrb[0].mxu0 %v113
  %v185 = vpop.f32.mrb[0].mxu0
  %v186 = vadd.f32 %v42, %v185
  %v187 = vpop.f32.mrb[0].mxu0
  %v188 = vpop.f32.mrb[0].mxu0
  %v189 = vadd.f32 %v42, %v188
  %v190 = vpop.f32.mrb[0].mxu0
  %191 = vmatprep.mubr.bf16.mxu0 0
  %192 = vmatmul.mubr.bf16.gmra.mrb[0].mxu0 %v116
  %v193 = vpop.f32.mrb[0].mxu0
  %v194 = vadd.f32 %v42, %v193
  %v195 = vpop.f32.mrb[0].mxu0
  %v196 = vpop.f32.mrb[0].mxu0
  %v197 = vadd.f32 %v42, %v196
  %v198 = vpop.f32.mrb[0].mxu0
  %199 = vmatprep.mubr.bf16.mxu0 0
  %200 = vmatmul.mubr.bf16.gmra.mrb[0].mxu0 %v119
  %v201 = vpop.f32.mrb[0].mxu0
  %v202 = vadd.f32 %v42, %v201
  %v203 = vpop.f32.mrb[0].mxu0
  %v204 = vpop.f32.mrb[0].mxu0
  %v205 = vadd.f32 %v42, %v204
  %v206 = vpop.f32.mrb[0].mxu0
  %207 = vmatprep.mubr.bf16.mxu0 0
  %208 = vmatmul.mubr.bf16.gmra.mrb[0].mxu0 %v122
  %v209 = vpop.f32.mrb[0].mxu0
  %v210 = vadd.f32 %v42, %v209
  %v211 = vpop.f32.mrb[0].mxu0
  %v212 = vpop.f32.mrb[0].mxu0
  %v213 = vadd.f32 %v42, %v212
  %v214 = vpop.f32.mrb[0].mxu0
  %215 = vmatprep.mubr.bf16.mxu0 0
  %216 = vmatmul.mubr.bf16.gmra.mrb[0].mxu0 %v125
  %v217 = vpop.f32.mrb[0].mxu0
  %v218 = vadd.f32 %v42, %v217
  %v219 = vpop.f32.mrb[0].mxu0
  %v220 = vpop.f32.mrb[0].mxu0
  %v221 = vadd.f32 %v42, %v220
  %v222 = vpop.f32.mrb[0].mxu0
  %223 = vdwg.mxu0
  %vm224 = vcmp.ge.f32.partialorder %v162, 0.0
  %vm225 = vcmp.ge.f32.partialorder %v165, 0.0
  %vm226 = vcmp.ge.f32.partialorder %v170, 0.0
  %vm227 = vcmp.ge.f32.partialorder %v173, 0.0
  %vm228 = vcmp.ge.f32.partialorder %v178, 0.0
  %vm229 = vcmp.ge.f32.partialorder %v181, 0.0
  %vm230 = vcmp.ge.f32.partialorder %v186, 0.0
  %vm231 = vcmp.ge.f32.partialorder %v189, 0.0
  %vm232 = vcmp.ge.f32.partialorder %v194, 0.0
  %vm233 = vcmp.ge.f32.partialorder %v197, 0.0
  %vm234 = vcmp.ge.f32.partialorder %v202, 0.0
  %vm235 = vcmp.ge.f32.partialorder %v205, 0.0
  %vm236 = vcmp.ge.f32.partialorder %v210, 0.0
  %vm237 = vcmp.ge.f32.partialorder %v213, 0.0
  %vm238 = vcmp.ge.f32.partialorder %v218, 0.0
  %vm239 = vcmp.ge.f32.partialorder %v221, 0.0
  %v240 = vmul.f32 %v162, 0.01
  %v241 = vmul.f32 %v165, 0.01
  %v242 = vmul.f32 %v170, 0.01
  %v243 = vmul.f32 %v173, 0.01
  %v244 = vmul.f32 %v178, 0.01
  %v245 = vmul.f32 %v181, 0.01
  %v246 = vmul.f32 %v186, 0.01
  %v247 = vmul.f32 %v189, 0.01
  %v248 = vmul.f32 %v194, 0.01
  %v249 = vmul.f32 %v197, 0.01
  %v250 = vmul.f32 %v202, 0.01
  %v251 = vmul.f32 %v205, 0.01
  %v252 = vmul.f32 %v210, 0.01
  %v253 = vmul.f32 %v213, 0.01
  %v254 = vmul.f32 %v218, 0.01
  %v255 = vmul.f32 %v221, 0.01
  %v256 = vsel %vm224, %v162, %v240
  %v257 = vsel %vm225, %v165, %v241
  %v258 = vsel %vm226, %v170, %v242
  %v259 = vsel %vm227, %v173, %v243
  %v260 = vsel %vm228, %v178, %v244
  %v261 = vsel %vm229, %v181, %v245
  %v262 = vsel %vm230, %v186, %v246
  %v263 = vsel %vm231, %v189, %v247
  %v264 = vsel %vm232, %v194, %v248
  %v265 = vsel %vm233, %v197, %v249
  %v266 = vsel %vm234, %v202, %v250
  %v267 = vsel %vm235, %v205, %v251
  %v268 = vsel %vm236, %v210, %v252
  %v269 = vsel %vm237, %v213, %v253
  %v270 = vsel %vm238, %v218, %v254
  %v271 = vsel %vm239, %v221, %v255
  %v272 = vpack.c.bf16 %v257, %v256
  %v273 = vpack.c.bf16 %v259, %v258
  %v274 = vpack.c.bf16 %v261, %v260
  %v275 = vpack.c.bf16 %v263, %v262
  %v276 = vpack.c.bf16 %v265, %v264
  %v277 = vpack.c.bf16 %v267, %v266
  %v278 = vpack.c.bf16 %v269, %v268
  %v279 = vpack.c.bf16 %v271, %v270
  %v288 = vunpack.c.l.b16 %v272
  %v289 = vunpack.c.h.b16 %v272
  %v290 = vunpack.c.l.b16 %v273
  %v291 = vunpack.c.h.b16 %v273
  %v292 = vunpack.c.l.b16 %v274
  %v293 = vunpack.c.h.b16 %v274
  %v294 = vunpack.c.l.b16 %v275
  %v295 = vunpack.c.h.b16 %v275
  %v296 = vunpack.c.l.b16 %v276
  %v297 = vunpack.c.h.b16 %v276
  %v298 = vunpack.c.l.b16 %v277
  %v299 = vunpack.c.h.b16 %v277
  %v300 = vunpack.c.l.b16 %v278
  %v301 = vunpack.c.h.b16 %v278
  %v302 = vunpack.c.l.b16 %v279
  %v303 = vunpack.c.h.b16 %v279
  %v304 = vpack.c.b16 %v288, %v288
  %v305 = vpack.c.b16 %v289, %v289
  %v306 = vpack.c.b16 %v290, %v290
  %v307 = vpack.c.b16 %v291, %v291
  %v308 = vpack.c.b16 %v292, %v292
  %v309 = vpack.c.b16 %v293, %v293
  %v310 = vpack.c.b16 %v294, %v294
  %v311 = vpack.c.b16 %v295, %v295
  %v312 = vpack.c.b16 %v296, %v296
  %v313 = vpack.c.b16 %v297, %v297
  %v314 = vpack.c.b16 %v298, %v298
  %v315 = vpack.c.b16 %v299, %v299
  %v316 = vpack.c.b16 %v300, %v300
  %v317 = vpack.c.b16 %v301, %v301
  %v318 = vpack.c.b16 %v302, %v302
  %v319 = vpack.c.b16 %v303, %v303
  %336 = vst [vmem:[%s3] sm:$0xf] %v304
  %337 = vst [vmem:[%s3 + $0x4] sm:$0xf] %v305
  %338 = vst [vmem:[%s3 + $0x8] sm:$0xf] %v306
  %339 = vst [vmem:[%s3 + $0xc] sm:$0xf] %v307
  %340 = vst [vmem:[%s3 + $0x10] sm:$0xf] %v308
  %341 = vst [vmem:[%s3 + $0x14] sm:$0xf] %v309
  %342 = vst [vmem:[%s3 + $0x18] sm:$0xf] %v310
  %343 = vst [vmem:[%s3 + $0x1c] sm:$0xf] %v311
  %344 = vst [vmem:[%s3 + $0x20] sm:$0xf] %v312
  %345 = vst [vmem:[%s3 + $0x24] sm:$0xf] %v313
  %346 = vst [vmem:[%s3 + $0x28] sm:$0xf] %v314
  %347 = vst [vmem:[%s3 + $0x2c] sm:$0xf] %v315
  %348 = vst [vmem:[%s3 + $0x30] sm:$0xf] %v316
  %349 = vst [vmem:[%s3 + $0x34] sm:$0xf] %v317
  %350 = vst [vmem:[%s3 + $0x38] sm:$0xf] %v318
  %351 = vst [vmem:[%s3 + $0x3c] sm:$0xf] %v319
  // Predicated region
  $region14: #{discriminator_forward.4} parent=0 // pred_check
    _
  $region15: #{discriminator_forward.4} parent=0 // pred_check_branch
    %353 = sbr.rel (0) target = $region17
  $region16: #{discriminator_forward.4} parent=0 // pred_region
    _
  $region17: #{discriminator_forward.4} parent=0 // pred_fallthru
    _
  // Predicated region
  $region18: #{discriminator_forward.4} parent=0 // pred_check
    _
  $region19: #{discriminator_forward.4} parent=0 // pred_check_branch
    %355 = sbr.rel (0) target = $region21
  $region20: #{discriminator_forward.4} parent=0 // pred_region
    _
  $region21: #{discriminator_forward.4} parent=0 // pred_fallthru
    _

// kernel: discriminator_forward.5
$region0: #{discriminator_forward.5}
  #allocation0 [shape = 'u32[]', space=smem, size = 0x4, offset = 0x4, fixed_abs, tag = 'smem constant byte address 0x4 - core index']
  #allocation1 [shape = 'u32[144,128]{1,0:T(1,128)}', space=vmem, size = 0x12000, scoped, tag = 'internal scratch']
  %s0 = inlined_call_operand.vmem [shape: bf16[32,2048], index: 0, kind: input, shape index: {}]
  %s1 = inlined_call_operand.vmem [shape: bf16[2048,128], index: 1, kind: input, shape index: {}]
  %s2 = inlined_call_operand.vmem [shape: f32[1,128], index: 2, kind: input, shape index: {}]
  %s3 = inlined_call_operand.vmem [shape: bf16[32,128], index: 3, kind: output, shape index: {}]
  %s4 = sld [smem:[#allocation0]]
  $region22: #{discriminator_forward.5} parent=0
    _
  %s6 = ssub.s32 1, %s4
  %s7 = scalar_select 0, %s6, %s4
  // Predicated region
  $region2: #{discriminator_forward.5} parent=0 // pred_check
    _
  $region3: #{discriminator_forward.5} parent=0 // pred_check_branch
    %9 = sbr.rel (0) target = $region5
  $region4: #{discriminator_forward.5} parent=0 // pred_region
    _
  $region5: #{discriminator_forward.5} parent=0 // pred_fallthru
    _
  // Predicated region
  $region6: #{discriminator_forward.5} parent=0 // pred_check
    _
  $region7: #{discriminator_forward.5} parent=0 // pred_check_branch
    %11 = sbr.rel (0) target = $region9
  $region8: #{discriminator_forward.5} parent=0 // pred_region
    _
  $region9: #{discriminator_forward.5} parent=0 // pred_fallthru
    _
  // Predicated region
  $region10: #{discriminator_forward.5} parent=0 // pred_check
    _
  $region11: #{discriminator_forward.5} parent=0 // pred_check_branch
    %13 = sbr.rel (0) target = $region13
  $region12: #{discriminator_forward.5} parent=0 // pred_region
    _
  $region13: #{discriminator_forward.5} parent=0 // pred_fallthru
    _
  %v15 = vld [vmem:[%s0] sm:$0xff]
  %v16 = vld [vmem:[%s0 + $0x8] sm:$0xff]
  %v17 = vld [vmem:[%s0 + $0x10] sm:$0xff]
  %v18 = vld [vmem:[%s0 + $0x18] sm:$0xff]
  %v19 = vld [vmem:[%s0 + $0x20] sm:$0xff]
  %v20 = vld [vmem:[%s0 + $0x28] sm:$0xff]
  %v21 = vld [vmem:[%s0 + $0x30] sm:$0xff]
  %v22 = vld [vmem:[%s0 + $0x38] sm:$0xff]
  %v23 = vld [vmem:[%s0 + $0x40] sm:$0xff]
  %v24 = vld [vmem:[%s0 + $0x48] sm:$0xff]
  %v25 = vld [vmem:[%s0 + $0x50] sm:$0xff]
  %v26 = vld [vmem:[%s0 + $0x58] sm:$0xff]
  %v27 = vld [vmem:[%s0 + $0x60] sm:$0xff]
  %v28 = vld [vmem:[%s0 + $0x68] sm:$0xff]
  %v29 = vld [vmem:[%s0 + $0x70] sm:$0xff]
  %v30 = vld [vmem:[%s0 + $0x78] sm:$0xff]
  %v31 = vld [vmem:[%s0 + $0x80] sm:$0xff]
  %v32 = vld [vmem:[%s0 + $0x88] sm:$0xff]
  %v33 = vld [vmem:[%s0 + $0x90] sm:$0xff]
  %v34 = vld [vmem:[%s0 + $0x98] sm:$0xff]
  %v35 = vld [vmem:[%s0 + $0xa0] sm:$0xff]
  %v36 = vld [vmem:[%s0 + $0xa8] sm:$0xff]
  %v37 = vld [vmem:[%s0 + $0xb0] sm:$0xff]
  %v38 = vld [vmem:[%s0 + $0xb8] sm:$0xff]
  %v39 = vld [vmem:[%s0 + $0xc0] sm:$0xff]
  %v40 = vld [vmem:[%s0 + $0xc8] sm:$0xff]
  %v41 = vld [vmem:[%s0 + $0xd0] sm:$0xff]
  %v42 = vld [vmem:[%s0 + $0xd8] sm:$0xff]
  %v43 = vld [vmem:[%s0 + $0xe0] sm:$0xff]
  %v44 = vld [vmem:[%s0 + $0xe8] sm:$0xff]
  %v45 = vld [vmem:[%s0 + $0xf0] sm:$0xff]
  %v46 = vld [vmem:[%s0 + $0xf8] sm:$0xff]
  %v47 = vld [vmem:[%s1] sm:$0xf]
  %v48 = vld [vmem:[%s1 + $0x4] sm:$0xf]
  %v49 = vld [vmem:[%s1 + $0x8] sm:$0xf]
  %v50 = vld [vmem:[%s1 + $0xc] sm:$0xf]
  %v51 = vld [vmem:[%s1 + $0x10] sm:$0xf]
  %v52 = vld [vmem:[%s1 + $0x14] sm:$0xf]
  %v53 = vld [vmem:[%s1 + $0x18] sm:$0xf]
  %v54 = vld [vmem:[%s1 + $0x1c] sm:$0xf]
  %v55 = vld [vmem:[%s1 + $0x20] sm:$0xf]
  %v56 = vld [vmem:[%s1 + $0x24] sm:$0xf]
  %v57 = vld [vmem:[%s1 + $0x28] sm:$0xf]
  %v58 = vld [vmem:[%s1 + $0x2c] sm:$0xf]
  %v59 = vld [vmem:[%s1 + $0x30] sm:$0xf]
  %v60 = vld [vmem:[%s1 + $0x34] sm:$0xf]
  %v61 = vld [vmem:[%s1 + $0x38] sm:$0xf]
  %v62 = vld [vmem:[%s1 + $0x3c] sm:$0xf]
  %v63 = vld [vmem:[%s1 + $0x40] sm:$0xf]
  %v64 = vld [vmem:[%s1 + $0x44] sm:$0xf]
  %v65 = vld [vmem:[%s1 + $0x48] sm:$0xf]
  %v66 = vld [vmem:[%s1 + $0x4c] sm:$0xf]
  %v67 = vld [vmem:[%s1 + $0x50] sm:$0xf]
  %v68 = vld [vmem:[%s1 + $0x54] sm:$0xf]
  %v69 = vld [vmem:[%s1 + $0x58] sm:$0xf]
  %v70 = vld [vmem:[%s1 + $0x5c] sm:$0xf]
  %v71 = vld [vmem:[%s1 + $0x60] sm:$0xf]
  %v72 = vld [vmem:[%s1 + $0x64] sm:$0xf]
  %v73 = vld [vmem:[%s1 + $0x68] sm:$0xf]
  %v74 = vld [vmem:[%s1 + $0x6c] sm:$0xf]
  %v75 = vld [vmem:[%s1 + $0x70] sm:$0xf]
  %v76 = vld [vmem:[%s1 + $0x74] sm:$0xf]
  %v77 = vld [vmem:[%s1 + $0x78] sm:$0xf]
  %v78 = vld [vmem:[%s1 + $0x7c] sm:$0xf]
  %v79 = vld [vmem:[%s1 + $0x80] sm:$0xf]
  %v80 = vld [vmem:[%s1 + $0x84] sm:$0xf]
  %v81 = vld [vmem:[%s1 + $0x88] sm:$0xf]
  %v82 = vld [vmem:[%s1 + $0x8c] sm:$0xf]
  %v83 = vld [vmem:[%s1 + $0x90] sm:$0xf]
  %v84 = vld [vmem:[%s1 + $0x94] sm:$0xf]
  %v85 = vld [vmem:[%s1 + $0x98] sm:$0xf]
  %v86 = vld [vmem:[%s1 + $0x9c] sm:$0xf]
  %v87 = vld [vmem:[%s1 + $0xa0] sm:$0xf]
  %v88 = vld [vmem:[%s1 + $0xa4] sm:$0xf]
  %v89 = vld [vmem:[%s1 + $0xa8] sm:$0xf]
  %v90 = vld [vmem:[%s1 + $0xac] sm:$0xf]
  %v91 = vld [vmem:[%s1 + $0xb0] sm:$0xf]
  %v92 = vld [vmem:[%s1 + $0xb4] sm:$0xf]
  %v93 = vld [vmem:[%s1 + $0xb8] sm:$0xf]
  %v94 = vld [vmem:[%s1 + $0xbc] sm:$0xf]
  %v95 = vld [vmem:[%s1 + $0xc0] sm:$0xf]
  %v96 = vld [vmem:[%s1 + $0xc4] sm:$0xf]
  %v97 = vld [vmem:[%s1 + $0xc8] sm:$0xf]
  %v98 = vld [vmem:[%s1 + $0xcc] sm:$0xf]
  %v99 = vld [vmem:[%s1 + $0xd0] sm:$0xf]
  %v100 = vld [vmem:[%s1 + $0xd4] sm:$0xf]
  %v101 = vld [vmem:[%s1 + $0xd8] sm:$0xf]
  %v102 = vld [vmem:[%s1 + $0xdc] sm:$0xf]
  %v103 = vld [vmem:[%s1 + $0xe0] sm:$0xf]
  %v104 = vld [vmem:[%s1 + $0xe4] sm:$0xf]
  %v105 = vld [vmem:[%s1 + $0xe8] sm:$0xf]
  %v106 = vld [vmem:[%s1 + $0xec] sm:$0xf]
  %v107 = vld [vmem:[%s1 + $0xf0] sm:$0xf]
  %v108 = vld [vmem:[%s1 + $0xf4] sm:$0xf]
  %v109 = vld [vmem:[%s1 + $0xf8] sm:$0xf]
  %v110 = vld [vmem:[%s1 + $0xfc] sm:$0xf]
  %v111 = vld [vmem:[%s1 + $0x100] sm:$0xf]
  %v112 = vld [vmem:[%s1 + $0x104] sm:$0xf]
  %v113 = vld [vmem:[%s1 + $0x108] sm:$0xf]
  %v114 = vld [vmem:[%s1 + $0x10c] sm:$0xf]
  %v115 = vld [vmem:[%s1 + $0x110] sm:$0xf]
  %v116 = vld [vmem:[%s1 + $0x114] sm:$0xf]
  %v117 = vld [vmem:[%s1 + $0x118] sm:$0xf]
  %v118 = vld [vmem:[%s1 + $0x11c] sm:$0xf]
  %v119 = vld [vmem:[%s1 + $0x120] sm:$0xf]
  %v120 = vld [vmem:[%s1 + $0x124] sm:$0xf]
  %v121 = vld [vmem:[%s1 + $0x128] sm:$0xf]
  %v122 = vld [vmem:[%s1 + $0x12c] sm:$0xf]
  %v123 = vld [vmem:[%s1 + $0x130] sm:$0xf]
  %v124 = vld [vmem:[%s1 + $0x134] sm:$0xf]
  %v125 = vld [vmem:[%s1 + $0x138] sm:$0xf]
  %v126 = vld [vmem:[%s1 + $0x13c] sm:$0xf]
  %v127 = vld [vmem:[%s1 + $0x140] sm:$0xf]
  %v128 = vld [vmem:[%s1 + $0x144] sm:$0xf]
  %v129 = vld [vmem:[%s1 + $0x148] sm:$0xf]
  %v130 = vld [vmem:[%s1 + $0x14c] sm:$0xf]
  %v131 = vld [vmem:[%s1 + $0x150] sm:$0xf]
  %v132 = vld [vmem:[%s1 + $0x154] sm:$0xf]
  %v133 = vld [vmem:[%s1 + $0x158] sm:$0xf]
  %v134 = vld [vmem:[%s1 + $0x15c] sm:$0xf]
  %v135 = vld [vmem:[%s1 + $0x160] sm:$0xf]
  %v136 = vld [vmem:[%s1 + $0x164] sm:$0xf]
  %v137 = vld [vmem:[%s1 + $0x168] sm:$0xf]
  %v138 = vld [vmem:[%s1 + $0x16c] sm:$0xf]
  %v139 = vld [vmem:[%s1 + $0x170] sm:$0xf]
  %v140 = vld [vmem:[%s1 + $0x174] sm:$0xf]
  %v141 = vld [vmem:[%s1 + $0x178] sm:$0xf]
  %v142 = vld [vmem:[%s1 + $0x17c] sm:$0xf]
  %v143 = vld [vmem:[%s1 + $0x180] sm:$0xf]
  %v144 = vld [vmem:[%s1 + $0x184] sm:$0xf]
  %v145 = vld [vmem:[%s1 + $0x188] sm:$0xf]
  %v146 = vld [vmem:[%s1 + $0x18c] sm:$0xf]
  %v147 = vld [vmem:[%s1 + $0x190] sm:$0xf]
  %v148 = vld [vmem:[%s1 + $0x194] sm:$0xf]
  %v149 = vld [vmem:[%s1 + $0x198] sm:$0xf]
  %v150 = vld [vmem:[%s1 + $0x19c] sm:$0xf]
  %v151 = vld [vmem:[%s1 + $0x1a0] sm:$0xf]
  %v152 = vld [vmem:[%s1 + $0x1a4] sm:$0xf]
  %v153 = vld [vmem:[%s1 + $0x1a8] sm:$0xf]
  %v154 = vld [vmem:[%s1 + $0x1ac] sm:$0xf]
  %v155 = vld [vmem:[%s1 + $0x1b0] sm:$0xf]
  %v156 = vld [vmem:[%s1 + $0x1b4] sm:$0xf]
  %v157 = vld [vmem:[%s1 + $0x1b8] sm:$0xf]
  %v158 = vld [vmem:[%s1 + $0x1bc] sm:$0xf]
  %v159 = vld [vmem:[%s1 + $0x1c0] sm:$0xf]
  %v160 = vld [vmem:[%s1 + $0x1c4] sm:$0xf]
  %v161 = vld [vmem:[%s1 + $0x1c8] sm:$0xf]
  %v162 = vld [vmem:[%s1 + $0x1cc] sm:$0xf]
  %v163 = vld [vmem:[%s1 + $0x1d0] sm:$0xf]
  %v164 = vld [vmem:[%s1 + $0x1d4] sm:$0xf]
  %v165 = vld [vmem:[%s1 + $0x1d8] sm:$0xf]
  %v166 = vld [vmem:[%s1 + $0x1dc] sm:$0xf]
  %v167 = vld [vmem:[%s1 + $0x1e0] sm:$0xf]
  %v168 = vld [vmem:[%s1 + $0x1e4] sm:$0xf]
  %v169 = vld [vmem:[%s1 + $0x1e8] sm:$0xf]
  %v170 = vld [vmem:[%s1 + $0x1ec] sm:$0xf]
  %v171 = vld [vmem:[%s1 + $0x1f0] sm:$0xf]
  %v172 = vld [vmem:[%s1 + $0x1f4] sm:$0xf]
  %v173 = vld [vmem:[%s1 + $0x1f8] sm:$0xf]
  %v174 = vld [vmem:[%s1 + $0x1fc] sm:$0xf]
  %v175 = vld [vmem:[%s1 + $0x200] sm:$0xf]
  %v176 = vld [vmem:[%s1 + $0x204] sm:$0xf]
  %v177 = vld [vmem:[%s1 + $0x208] sm:$0xf]
  %v178 = vld [vmem:[%s1 + $0x20c] sm:$0xf]
  %v179 = vld [vmem:[%s1 + $0x210] sm:$0xf]
  %v180 = vld [vmem:[%s1 + $0x214] sm:$0xf]
  %v181 = vld [vmem:[%s1 + $0x218] sm:$0xf]
  %v182 = vld [vmem:[%s1 + $0x21c] sm:$0xf]
  %v183 = vld [vmem:[%s1 + $0x220] sm:$0xf]
  %v184 = vld [vmem:[%s1 + $0x224] sm:$0xf]
  %v185 = vld [vmem:[%s1 + $0x228] sm:$0xf]
  %v186 = vld [vmem:[%s1 + $0x22c] sm:$0xf]
  %v187 = vld [vmem:[%s1 + $0x230] sm:$0xf]
  %v188 = vld [vmem:[%s1 + $0x234] sm:$0xf]
  %v189 = vld [vmem:[%s1 + $0x238] sm:$0xf]
  %v190 = vld [vmem:[%s1 + $0x23c] sm:$0xf]
  %v191 = vld [vmem:[%s1 + $0x240] sm:$0xf]
  %v192 = vld [vmem:[%s1 + $0x244] sm:$0xf]
  %v193 = vld [vmem:[%s1 + $0x248] sm:$0xf]
  %v194 = vld [vmem:[%s1 + $0x24c] sm:$0xf]
  %v195 = vld [vmem:[%s1 + $0x250] sm:$0xf]
  %v196 = vld [vmem:[%s1 + $0x254] sm:$0xf]
  %v197 = vld [vmem:[%s1 + $0x258] sm:$0xf]
  %v198 = vld [vmem:[%s1 + $0x25c] sm:$0xf]
  %v199 = vld [vmem:[%s1 + $0x260] sm:$0xf]
  %v200 = vld [vmem:[%s1 + $0x264] sm:$0xf]
  %v201 = vld [vmem:[%s1 + $0x268] sm:$0xf]
  %v202 = vld [vmem:[%s1 + $0x26c] sm:$0xf]
  %v203 = vld [vmem:[%s1 + $0x270] sm:$0xf]
  %v204 = vld [vmem:[%s1 + $0x274] sm:$0xf]
  %v205 = vld [vmem:[%s1 + $0x278] sm:$0xf]
  %v206 = vld [vmem:[%s1 + $0x27c] sm:$0xf]
  %v207 = vld [vmem:[%s1 + $0x280] sm:$0xf]
  %v208 = vld [vmem:[%s1 + $0x284] sm:$0xf]
  %v209 = vld [vmem:[%s1 + $0x288] sm:$0xf]
  %v210 = vld [vmem:[%s1 + $0x28c] sm:$0xf]
  %v211 = vld [vmem:[%s1 + $0x290] sm:$0xf]
  %v212 = vld [vmem:[%s1 + $0x294] sm:$0xf]
  %v213 = vld [vmem:[%s1 + $0x298] sm:$0xf]
  %v214 = vld [vmem:[%s1 + $0x29c] sm:$0xf]
  %v215 = vld [vmem:[%s1 + $0x2a0] sm:$0xf]
  %v216 = vld [vmem:[%s1 + $0x2a4] sm:$0xf]
  %v217 = vld [vmem:[%s1 + $0x2a8] sm:$0xf]
  %v218 = vld [vmem:[%s1 + $0x2ac] sm:$0xf]
  %v219 = vld [vmem:[%s1 + $0x2b0] sm:$0xf]
  %v220 = vld [vmem:[%s1 + $0x2b4] sm:$0xf]
  %v221 = vld [vmem:[%s1 + $0x2b8] sm:$0xf]
  %v222 = vld [vmem:[%s1 + $0x2bc] sm:$0xf]
  %v223 = vld [vmem:[%s1 + $0x2c0] sm:$0xf]
  %v224 = vld [vmem:[%s1 + $0x2c4] sm:$0xf]
  %v225 = vld [vmem:[%s1 + $0x2c8] sm:$0xf]
  %v226 = vld [vmem:[%s1 + $0x2cc] sm:$0xf]
  %v227 = vld [vmem:[%s1 + $0x2d0] sm:$0xf]
  %v228 = vld [vmem:[%s1 + $0x2d4] sm:$0xf]
  %v229 = vld [vmem:[%s1 + $0x2d8] sm:$0xf]
  %v230 = vld [vmem:[%s1 + $0x2dc] sm:$0xf]
  %v231 = vld [vmem:[%s1 + $0x2e0] sm:$0xf]
  %v232 = vld [vmem:[%s1 + $0x2e4] sm:$0xf]
  %v233 = vld [vmem:[%s1 + $0x2e8] sm:$0xf]
  %v234 = vld [vmem:[%s1 + $0x2ec] sm:$0xf]
  %v235 = vld [vmem:[%s1 + $0x2f0] sm:$0xf]
  %v236 = vld [vmem:[%s1 + $0x2f4] sm:$0xf]
  %v237 = vld [vmem:[%s1 + $0x2f8] sm:$0xf]
  %v238 = vld [vmem:[%s1 + $0x2fc] sm:$0xf]
  %v239 = vld [vmem:[%s1 + $0x300] sm:$0xf]
  %v240 = vld [vmem:[%s1 + $0x304] sm:$0xf]
  %v241 = vld [vmem:[%s1 + $0x308] sm:$0xf]
  %v242 = vld [vmem:[%s1 + $0x30c] sm:$0xf]
  %v243 = vld [vmem:[%s1 + $0x310] sm:$0xf]
  %v244 = vld [vmem:[%s1 + $0x314] sm:$0xf]
  %v245 = vld [vmem:[%s1 + $0x318] sm:$0xf]
  %v246 = vld [vmem:[%s1 + $0x31c] sm:$0xf]
  %v247 = vld [vmem:[%s1 + $0x320] sm:$0xf]
  %v248 = vld [vmem:[%s1 + $0x324] sm:$0xf]
  %v249 = vld [vmem:[%s1 + $0x328] sm:$0xf]
  %v250 = vld [vmem:[%s1 + $0x32c] sm:$0xf]
  %v251 = vld [vmem:[%s1 + $0x330] sm:$0xf]
  %v252 = vld [vmem:[%s1 + $0x334] sm:$0xf]
  %v253 = vld [vmem:[%s1 + $0x338] sm:$0xf]
  %v254 = vld [vmem:[%s1 + $0x33c] sm:$0xf]
  %v255 = vld [vmem:[%s1 + $0x340] sm:$0xf]
  %v256 = vld [vmem:[%s1 + $0x344] sm:$0xf]
  %v257 = vld [vmem:[%s1 + $0x348] sm:$0xf]
  %v258 = vld [vmem:[%s1 + $0x34c] sm:$0xf]
  %v259 = vld [vmem:[%s1 + $0x350] sm:$0xf]
  %v260 = vld [vmem:[%s1 + $0x354] sm:$0xf]
  %v261 = vld [vmem:[%s1 + $0x358] sm:$0xf]
  %v262 = vld [vmem:[%s1 + $0x35c] sm:$0xf]
  %v263 = vld [vmem:[%s1 + $0x360] sm:$0xf]
  %v264 = vld [vmem:[%s1 + $0x364] sm:$0xf]
  %v265 = vld [vmem:[%s1 + $0x368] sm:$0xf]
  %v266 = vld [vmem:[%s1 + $0x36c] sm:$0xf]
  %v267 = vld [vmem:[%s1 + $0x370] sm:$0xf]
  %v268 = vld [vmem:[%s1 + $0x374] sm:$0xf]
  %v269 = vld [vmem:[%s1 + $0x378] sm:$0xf]
  %v270 = vld [vmem:[%s1 + $0x37c] sm:$0xf]
  %v271 = vld [vmem:[%s1 + $0x380] sm:$0xf]
  %v272 = vld [vmem:[%s1 + $0x384] sm:$0xf]
  %v273 = vld [vmem:[%s1 + $0x388] sm:$0xf]
  %v274 = vld [vmem:[%s1 + $0x38c] sm:$0xf]
  %v275 = vld [vmem:[%s1 + $0x390] sm:$0xf]
  %v276 = vld [vmem:[%s1 + $0x394] sm:$0xf]
  %v277 = vld [vmem:[%s1 + $0x398] sm:$0xf]
  %v278 = vld [vmem:[%s1 + $0x39c] sm:$0xf]
  %v279 = vld [vmem:[%s1 + $0x3a0] sm:$0xf]
  %v280 = vld [vmem:[%s1 + $0x3a4] sm:$0xf]
  %v281 = vld [vmem:[%s1 + $0x3a8] sm:$0xf]
  %v282 = vld [vmem:[%s1 + $0x3ac] sm:$0xf]
  %v283 = vld [vmem:[%s1 + $0x3b0] sm:$0xf]
  %v284 = vld [vmem:[%s1 + $0x3b4] sm:$0xf]
  %v285 = vld [vmem:[%s1 + $0x3b8] sm:$0xf]
  %v286 = vld [vmem:[%s1 + $0x3bc] sm:$0xf]
  %v287 = vld [vmem:[%s1 + $0x3c0] sm:$0xf]
  %v288 = vld [vmem:[%s1 + $0x3c4] sm:$0xf]
  %v289 = vld [vmem:[%s1 + $0x3c8] sm:$0xf]
  %v290 = vld [vmem:[%s1 + $0x3cc] sm:$0xf]
  %v291 = vld [vmem:[%s1 + $0x3d0] sm:$0xf]
  %v292 = vld [vmem:[%s1 + $0x3d4] sm:$0xf]
  %v293 = vld [vmem:[%s1 + $0x3d8] sm:$0xf]
  %v294 = vld [vmem:[%s1 + $0x3dc] sm:$0xf]
  %v295 = vld [vmem:[%s1 + $0x3e0] sm:$0xf]
  %v296 = vld [vmem:[%s1 + $0x3e4] sm:$0xf]
  %v297 = vld [vmem:[%s1 + $0x3e8] sm:$0xf]
  %v298 = vld [vmem:[%s1 + $0x3ec] sm:$0xf]
  %v299 = vld [vmem:[%s1 + $0x3f0] sm:$0xf]
  %v300 = vld [vmem:[%s1 + $0x3f4] sm:$0xf]
  %v301 = vld [vmem:[%s1 + $0x3f8] sm:$0xf]
  %v302 = vld [vmem:[%s1 + $0x3fc] sm:$0xf]
  %v303 = vld [vmem:[%s2] sm:$0x1]
  %v305 = vlaneseq
  %v306 = vshrl.u32 %v305, 7
  %v307 = vsub.s32 0, %v306
  %v308 = vrot.slane %v303, %v307
  %v342 = vunpack.c.l.b16 %v15
  %v343 = vunpack.c.h.b16 %v15
  %v344 = vunpack.c.l.b16 %v16
  %v345 = vunpack.c.h.b16 %v16
  %v346 = vunpack.c.l.b16 %v17
  %v347 = vunpack.c.h.b16 %v17
  %v348 = vunpack.c.l.b16 %v18
  %v349 = vunpack.c.h.b16 %v18
  %v350 = vunpack.c.l.b16 %v19
  %v351 = vunpack.c.h.b16 %v19
  %v352 = vunpack.c.l.b16 %v20
  %v353 = vunpack.c.h.b16 %v20
  %v354 = vunpack.c.l.b16 %v21
  %v355 = vunpack.c.h.b16 %v21
  %v356 = vunpack.c.l.b16 %v22
  %v357 = vunpack.c.h.b16 %v22
  %v358 = vunpack.c.l.b16 %v23
  %v359 = vunpack.c.h.b16 %v23
  %v360 = vunpack.c.l.b16 %v24
  %v361 = vunpack.c.h.b16 %v24
  %v362 = vunpack.c.l.b16 %v25
  %v363 = vunpack.c.h.b16 %v25
  %v364 = vunpack.c.l.b16 %v26
  %v365 = vunpack.c.h.b16 %v26
  %v366 = vunpack.c.l.b16 %v27
  %v367 = vunpack.c.h.b16 %v27
  %v368 = vunpack.c.l.b16 %v28
  %v369 = vunpack.c.h.b16 %v28
  %v370 = vunpack.c.l.b16 %v29
  %v371 = vunpack.c.h.b16 %v29
  %v372 = vunpack.c.l.b16 %v30
  %v373 = vunpack.c.h.b16 %v30
  %v374 = vunpack.c.l.b16 %v31
  %v375 = vunpack.c.h.b16 %v31
  %v376 = vunpack.c.l.b16 %v32
  %v377 = vunpack.c.h.b16 %v32
  %v378 = vunpack.c.l.b16 %v33
  %v379 = vunpack.c.h.b16 %v33
  %v380 = vunpack.c.l.b16 %v34
  %v381 = vunpack.c.h.b16 %v34
  %v382 = vunpack.c.l.b16 %v35
  %v383 = vunpack.c.h.b16 %v35
  %v384 = vunpack.c.l.b16 %v36
  %v385 = vunpack.c.h.b16 %v36
  %v386 = vunpack.c.l.b16 %v37
  %v387 = vunpack.c.h.b16 %v37
  %v388 = vunpack.c.l.b16 %v38
  %v389 = vunpack.c.h.b16 %v38
  %v390 = vunpack.c.l.b16 %v39
  %v391 = vunpack.c.h.b16 %v39
  %v392 = vunpack.c.l.b16 %v40
  %v393 = vunpack.c.h.b16 %v40
  %v394 = vunpack.c.l.b16 %v41
  %v395 = vunpack.c.h.b16 %v41
  %v396 = vunpack.c.l.b16 %v42
  %v397 = vunpack.c.h.b16 %v42
  %v398 = vunpack.c.l.b16 %v43
  %v399 = vunpack.c.h.b16 %v43
  %v400 = vunpack.c.l.b16 %v44
  %v401 = vunpack.c.h.b16 %v44
  %v402 = vunpack.c.l.b16 %v45
  %v403 = vunpack.c.h.b16 %v45
  %v404 = vunpack.c.l.b16 %v46
  %v405 = vunpack.c.h.b16 %v46
  %v406 = vpack.c.b16 %v358, %v342
  %v407 = vpack.c.b16 %v359, %v343
  %v408 = vpack.c.b16 %v360, %v344
  %v409 = vpack.c.b16 %v361, %v345
  %v410 = vpack.c.b16 %v362, %v346
  %v411 = vpack.c.b16 %v363, %v347
  %v412 = vpack.c.b16 %v364, %v348
  %v413 = vpack.c.b16 %v365, %v349
  %v414 = vpack.c.b16 %v366, %v350
  %v415 = vpack.c.b16 %v367, %v351
  %v416 = vpack.c.b16 %v368, %v352
  %v417 = vpack.c.b16 %v369, %v353
  %v418 = vpack.c.b16 %v370, %v354
  %v419 = vpack.c.b16 %v371, %v355
  %v420 = vpack.c.b16 %v372, %v356
  %v421 = vpack.c.b16 %v373, %v357
  %v422 = vpack.c.b16 %v390, %v374
  %v423 = vpack.c.b16 %v391, %v375
  %v424 = vpack.c.b16 %v392, %v376
  %v425 = vpack.c.b16 %v393, %v377
  %v426 = vpack.c.b16 %v394, %v378
  %v427 = vpack.c.b16 %v395, %v379
  %v428 = vpack.c.b16 %v396, %v380
  %v429 = vpack.c.b16 %v397, %v381
  %v430 = vpack.c.b16 %v398, %v382
  %v431 = vpack.c.b16 %v399, %v383
  %v432 = vpack.c.b16 %v400, %v384
  %v433 = vpack.c.b16 %v401, %v385
  %v434 = vpack.c.b16 %v402, %v386
  %v435 = vpack.c.b16 %v403, %v387
  %v436 = vpack.c.b16 %v404, %v388
  %v437 = vpack.c.b16 %v405, %v389
  %v726 = vunpack.c.l.b16 %v47
  %v727 = vunpack.c.l.b16 %v48
  %v728 = vunpack.c.l.b16 %v49
  %v729 = vunpack.c.l.b16 %v50
  %v730 = vunpack.c.l.b16 %v51
  %v731 = vunpack.c.l.b16 %v52
  %v732 = vunpack.c.l.b16 %v53
  %v733 = vunpack.c.l.b16 %v54
  %v734 = vunpack.c.l.b16 %v55
  %v735 = vunpack.c.l.b16 %v56
  %v736 = vunpack.c.l.b16 %v57
  %v737 = vunpack.c.l.b16 %v58
  %v738 = vunpack.c.l.b16 %v59
  %v739 = vunpack.c.l.b16 %v60
  %v740 = vunpack.c.l.b16 %v61
  %v741 = vunpack.c.l.b16 %v62
  %v742 = vunpack.c.l.b16 %v63
  %v743 = vunpack.c.l.b16 %v64
  %v744 = vunpack.c.l.b16 %v65
  %v745 = vunpack.c.l.b16 %v66
  %v746 = vunpack.c.l.b16 %v67
  %v747 = vunpack.c.l.b16 %v68
  %v748 = vunpack.c.l.b16 %v69
  %v749 = vunpack.c.l.b16 %v70
  %v750 = vunpack.c.l.b16 %v71
  %v751 = vunpack.c.l.b16 %v72
  %v752 = vunpack.c.l.b16 %v73
  %v753 = vunpack.c.l.b16 %v74
  %v754 = vunpack.c.l.b16 %v75
  %v755 = vunpack.c.l.b16 %v76
  %v756 = vunpack.c.l.b16 %v77
  %v757 = vunpack.c.l.b16 %v78
  %v758 = vunpack.c.l.b16 %v79
  %v759 = vunpack.c.l.b16 %v80
  %v760 = vunpack.c.l.b16 %v81
  %v761 = vunpack.c.l.b16 %v82
  %v762 = vunpack.c.l.b16 %v83
  %v763 = vunpack.c.l.b16 %v84
  %v764 = vunpack.c.l.b16 %v85
  %v765 = vunpack.c.l.b16 %v86
  %v766 = vunpack.c.l.b16 %v87
  %v767 = vunpack.c.l.b16 %v88
  %v768 = vunpack.c.l.b16 %v89
  %v769 = vunpack.c.l.b16 %v90
  %v770 = vunpack.c.l.b16 %v91
  %v771 = vunpack.c.l.b16 %v92
  %v772 = vunpack.c.l.b16 %v93
  %v773 = vunpack.c.l.b16 %v94
  %v774 = vunpack.c.l.b16 %v95
  %v775 = vunpack.c.l.b16 %v96
  %v776 = vunpack.c.l.b16 %v97
  %v777 = vunpack.c.l.b16 %v98
  %v778 = vunpack.c.l.b16 %v99
  %v779 = vunpack.c.l.b16 %v100
  %v780 = vunpack.c.l.b16 %v101
  %v781 = vunpack.c.l.b16 %v102
  %v782 = vunpack.c.l.b16 %v103
  %v783 = vunpack.c.l.b16 %v104
  %v784 = vunpack.c.l.b16 %v105
  %v785 = vunpack.c.l.b16 %v106
  %v786 = vunpack.c.l.b16 %v107
  %v787 = vunpack.c.l.b16 %v108
  %v788 = vunpack.c.l.b16 %v109
  %v789 = vunpack.c.l.b16 %v110
  %v790 = vunpack.c.l.b16 %v111
  %v791 = vunpack.c.l.b16 %v112
  %v792 = vunpack.c.l.b16 %v113
  %v793 = vunpack.c.l.b16 %v114
  %v794 = vunpack.c.l.b16 %v115
  %v795 = vunpack.c.l.b16 %v116
  %v796 = vunpack.c.l.b16 %v117
  %v797 = vunpack.c.l.b16 %v118
  %v798 = vunpack.c.l.b16 %v119
  %v799 = vunpack.c.l.b16 %v120
  %v800 = vunpack.c.l.b16 %v121
  %v801 = vunpack.c.l.b16 %v122
  %v802 = vunpack.c.l.b16 %v123
  %v803 = vunpack.c.l.b16 %v124
  %v804 = vunpack.c.l.b16 %v125
  %v805 = vunpack.c.l.b16 %v126
  %v806 = vunpack.c.l.b16 %v127
  %v807 = vunpack.c.l.b16 %v128
  %v808 = vunpack.c.l.b16 %v129
  %v809 = vunpack.c.l.b16 %v130
  %v810 = vunpack.c.l.b16 %v131
  %v811 = vunpack.c.l.b16 %v132
  %v812 = vunpack.c.l.b16 %v133
  %v813 = vunpack.c.l.b16 %v134
  %v814 = vunpack.c.l.b16 %v135
  %v815 = vunpack.c.l.b16 %v136
  %v816 = vunpack.c.l.b16 %v137
  %v817 = vunpack.c.l.b16 %v138
  %v818 = vunpack.c.l.b16 %v139
  %v819 = vunpack.c.l.b16 %v140
  %v820 = vunpack.c.l.b16 %v141
  %v821 = vunpack.c.l.b16 %v142
  %v822 = vunpack.c.l.b16 %v143
  %v823 = vunpack.c.l.b16 %v144
  %v824 = vunpack.c.l.b16 %v145
  %v825 = vunpack.c.l.b16 %v146
  %v826 = vunpack.c.l.b16 %v147
  %v827 = vunpack.c.l.b16 %v148
  %v828 = vunpack.c.l.b16 %v149
  %v829 = vunpack.c.l.b16 %v150
  %v830 = vunpack.c.l.b16 %v151
  %v831 = vunpack.c.l.b16 %v152
  %v832 = vunpack.c.l.b16 %v153
  %v833 = vunpack.c.l.b16 %v154
  %v834 = vunpack.c.l.b16 %v155
  %v835 = vunpack.c.l.b16 %v156
  %v836 = vunpack.c.l.b16 %v157
  %v837 = vunpack.c.l.b16 %v158
  %v838 = vunpack.c.l.b16 %v159
  %v839 = vunpack.c.l.b16 %v160
  %v840 = vunpack.c.l.b16 %v161
  %v841 = vunpack.c.l.b16 %v162
  %v842 = vunpack.c.l.b16 %v163
  %v843 = vunpack.c.l.b16 %v164
  %v844 = vunpack.c.l.b16 %v165
  %v845 = vunpack.c.l.b16 %v166
  %v846 = vunpack.c.l.b16 %v167
  %v847 = vunpack.c.l.b16 %v168
  %v848 = vunpack.c.l.b16 %v169
  %v849 = vunpack.c.l.b16 %v170
  %v850 = vunpack.c.l.b16 %v171
  %v851 = vunpack.c.l.b16 %v172
  %v852 = vunpack.c.l.b16 %v173
  %v853 = vunpack.c.l.b16 %v174
  %v854 = vunpack.c.l.b16 %v175
  %v855 = vunpack.c.l.b16 %v176
  %v856 = vunpack.c.l.b16 %v177
  %v857 = vunpack.c.l.b16 %v178
  %v858 = vunpack.c.l.b16 %v179
  %v859 = vunpack.c.l.b16 %v180
  %v860 = vunpack.c.l.b16 %v181
  %v861 = vunpack.c.l.b16 %v182
  %v862 = vunpack.c.l.b16 %v183
  %v863 = vunpack.c.l.b16 %v184
  %v864 = vunpack.c.l.b16 %v185
  %v865 = vunpack.c.l.b16 %v186
  %v866 = vunpack.c.l.b16 %v187
  %v867 = vunpack.c.l.b16 %v188
  %v868 = vunpack.c.l.b16 %v189
  %v869 = vunpack.c.l.b16 %v190
  %v870 = vunpack.c.l.b16 %v191
  %v871 = vunpack.c.l.b16 %v192
  %v872 = vunpack.c.l.b16 %v193
  %v873 = vunpack.c.l.b16 %v194
  %v874 = vunpack.c.l.b16 %v195
  %v875 = vunpack.c.l.b16 %v196
  %v876 = vunpack.c.l.b16 %v197
  %v877 = vunpack.c.l.b16 %v198
  %v878 = vunpack.c.l.b16 %v199
  %v879 = vunpack.c.l.b16 %v200
  %v880 = vunpack.c.l.b16 %v201
  %v881 = vunpack.c.l.b16 %v202
  %v882 = vunpack.c.l.b16 %v203
  %v883 = vunpack.c.l.b16 %v204
  %v884 = vunpack.c.l.b16 %v205
  %v885 = vunpack.c.l.b16 %v206
  %v886 = vunpack.c.l.b16 %v207
  %v887 = vunpack.c.l.b16 %v208
  %v888 = vunpack.c.l.b16 %v209
  %v889 = vunpack.c.l.b16 %v210
  %v890 = vunpack.c.l.b16 %v211
  %v891 = vunpack.c.l.b16 %v212
  %v892 = vunpack.c.l.b16 %v213
  %v893 = vunpack.c.l.b16 %v214
  %v894 = vunpack.c.l.b16 %v215
  %v895 = vunpack.c.l.b16 %v216
  %v896 = vunpack.c.l.b16 %v217
  %v897 = vunpack.c.l.b16 %v218
  %v898 = vunpack.c.l.b16 %v219
  %v899 = vunpack.c.l.b16 %v220
  %v900 = vunpack.c.l.b16 %v221
  %v901 = vunpack.c.l.b16 %v222
  %v902 = vunpack.c.l.b16 %v223
  %v903 = vunpack.c.l.b16 %v224
  %v904 = vunpack.c.l.b16 %v225
  %v905 = vunpack.c.l.b16 %v226
  %v906 = vunpack.c.l.b16 %v227
  %v907 = vunpack.c.l.b16 %v228
  %v908 = vunpack.c.l.b16 %v229
  %v909 = vunpack.c.l.b16 %v230
  %v910 = vunpack.c.l.b16 %v231
  %v911 = vunpack.c.l.b16 %v232
  %v912 = vunpack.c.l.b16 %v233
  %v913 = vunpack.c.l.b16 %v234
  %v914 = vunpack.c.l.b16 %v235
  %v915 = vunpack.c.l.b16 %v236
  %v916 = vunpack.c.l.b16 %v237
  %v917 = vunpack.c.l.b16 %v238
  %v918 = vunpack.c.l.b16 %v239
  %v919 = vunpack.c.l.b16 %v240
  %v920 = vunpack.c.l.b16 %v241
  %v921 = vunpack.c.l.b16 %v242
  %v922 = vunpack.c.l.b16 %v243
  %v923 = vunpack.c.l.b16 %v244
  %v924 = vunpack.c.l.b16 %v245
  %v925 = vunpack.c.l.b16 %v246
  %v926 = vunpack.c.l.b16 %v247
  %v927 = vunpack.c.l.b16 %v248
  %v928 = vunpack.c.l.b16 %v249
  %v929 = vunpack.c.l.b16 %v250
  %v930 = vunpack.c.l.b16 %v251
  %v931 = vunpack.c.l.b16 %v252
  %v932 = vunpack.c.l.b16 %v253
  %v933 = vunpack.c.l.b16 %v254
  %v934 = vunpack.c.l.b16 %v255
  %v935 = vunpack.c.l.b16 %v256
  %v936 = vunpack.c.l.b16 %v257
  %v937 = vunpack.c.l.b16 %v258
  %v938 = vunpack.c.l.b16 %v259
  %v939 = vunpack.c.l.b16 %v260
  %v940 = vunpack.c.l.b16 %v261
  %v941 = vunpack.c.l.b16 %v262
  %v942 = vunpack.c.l.b16 %v263
  %v943 = vunpack.c.l.b16 %v264
  %v944 = vunpack.c.l.b16 %v265
  %v945 = vunpack.c.l.b16 %v266
  %v946 = vunpack.c.l.b16 %v267
  %v947 = vunpack.c.l.b16 %v268
  %v948 = vunpack.c.l.b16 %v269
  %v949 = vunpack.c.l.b16 %v270
  %v950 = vunpack.c.l.b16 %v271
  %v951 = vunpack.c.l.b16 %v272
  %v952 = vunpack.c.l.b16 %v273
  %v953 = vunpack.c.l.b16 %v274
  %v954 = vunpack.c.l.b16 %v275
  %v955 = vunpack.c.l.b16 %v276
  %v956 = vunpack.c.l.b16 %v277
  %v957 = vunpack.c.l.b16 %v278
  %v958 = vunpack.c.l.b16 %v279
  %v959 = vunpack.c.l.b16 %v280
  %v960 = vunpack.c.l.b16 %v281
  %v961 = vunpack.c.l.b16 %v282
  %v962 = vunpack.c.l.b16 %v283
  %v963 = vunpack.c.l.b16 %v284
  %v964 = vunpack.c.l.b16 %v285
  %v965 = vunpack.c.l.b16 %v286
  %v966 = vunpack.c.l.b16 %v287
  %v967 = vunpack.c.l.b16 %v288
  %v968 = vunpack.c.l.b16 %v289
  %v969 = vunpack.c.l.b16 %v290
  %v970 = vunpack.c.l.b16 %v291
  %v971 = vunpack.c.l.b16 %v292
  %v972 = vunpack.c.l.b16 %v293
  %v973 = vunpack.c.l.b16 %v294
  %v974 = vunpack.c.l.b16 %v295
  %v975 = vunpack.c.l.b16 %v296
  %v976 = vunpack.c.l.b16 %v297
  %v977 = vunpack.c.l.b16 %v298
  %v978 = vunpack.c.l.b16 %v299
  %v979 = vunpack.c.l.b16 %v300
  %v980 = vunpack.c.l.b16 %v301
  %v981 = vunpack.c.l.b16 %v302
  %v982 = vpack.c.b16 %v727, %v726
  %v983 = vpack.c.b16 %v729, %v728
  %v984 = vpack.c.b16 %v731, %v730
  %v985 = vpack.c.b16 %v733, %v732
  %v986 = vpack.c.b16 %v735, %v734
  %v987 = vpack.c.b16 %v737, %v736
  %v988 = vpack.c.b16 %v739, %v738
  %v989 = vpack.c.b16 %v741, %v740
  %v990 = vpack.c.b16 %v743, %v742
  %v991 = vpack.c.b16 %v745, %v744
  %v992 = vpack.c.b16 %v747, %v746
  %v993 = vpack.c.b16 %v749, %v748
  %v994 = vpack.c.b16 %v751, %v750
  %v995 = vpack.c.b16 %v753, %v752
  %v996 = vpack.c.b16 %v755, %v754
  %v997 = vpack.c.b16 %v757, %v756
  %v998 = vpack.c.b16 %v759, %v758
  %v999 = vpack.c.b16 %v761, %v760
  %v1000 = vpack.c.b16 %v763, %v762
  %v1001 = vpack.c.b16 %v765, %v764
  %v1002 = vpack.c.b16 %v767, %v766
  %v1003 = vpack.c.b16 %v769, %v768
  %v1004 = vpack.c.b16 %v771, %v770
  %v1005 = vpack.c.b16 %v773, %v772
  %v1006 = vpack.c.b16 %v775, %v774
  %v1007 = vpack.c.b16 %v777, %v776
  %v1008 = vpack.c.b16 %v779, %v778
  %v1009 = vpack.c.b16 %v781, %v780
  %v1010 = vpack.c.b16 %v783, %v782
  %v1011 = vpack.c.b16 %v785, %v784
  %v1012 = vpack.c.b16 %v787, %v786
  %v1013 = vpack.c.b16 %v789, %v788
  %v1014 = vpack.c.b16 %v791, %v790
  %v1015 = vpack.c.b16 %v793, %v792
  %v1016 = vpack.c.b16 %v795, %v794
  %v1017 = vpack.c.b16 %v797, %v796
  %v1018 = vpack.c.b16 %v799, %v798
  %v1019 = vpack.c.b16 %v801, %v800
  %v1020 = vpack.c.b16 %v803, %v802
  %v1021 = vpack.c.b16 %v805, %v804
  %v1022 = vpack.c.b16 %v807, %v806
  %v1023 = vpack.c.b16 %v809, %v808
  %v1024 = vpack.c.b16 %v811, %v810
  %v1025 = vpack.c.b16 %v813, %v812
  %v1026 = vpack.c.b16 %v815, %v814
  %v1027 = vpack.c.b16 %v817, %v816
  %v1028 = vpack.c.b16 %v819, %v818
  %v1029 = vpack.c.b16 %v821, %v820
  %v1030 = vpack.c.b16 %v823, %v822
  %v1031 = vpack.c.b16 %v825, %v824
  %v1032 = vpack.c.b16 %v827, %v826
  %v1033 = vpack.c.b16 %v829, %v828
  %v1034 = vpack.c.b16 %v831, %v830
  %v1035 = vpack.c.b16 %v833, %v832
  %v1036 = vpack.c.b16 %v835, %v834
  %v1037 = vpack.c.b16 %v837, %v836
  %v1038 = vpack.c.b16 %v839, %v838
  %v1039 = vpack.c.b16 %v841, %v840
  %v1040 = vpack.c.b16 %v843, %v842
  %v1041 = vpack.c.b16 %v845, %v844
  %v1042 = vpack.c.b16 %v847, %v846
  %v1043 = vpack.c.b16 %v849, %v848
  %v1044 = vpack.c.b16 %v851, %v850
  %v1045 = vpack.c.b16 %v853, %v852
  %v1046 = vpack.c.b16 %v855, %v854
  %v1047 = vpack.c.b16 %v857, %v856
  %v1048 = vpack.c.b16 %v859, %v858
  %v1049 = vpack.c.b16 %v861, %v860
  %v1050 = vpack.c.b16 %v863, %v862
  %v1051 = vpack.c.b16 %v865, %v864
  %v1052 = vpack.c.b16 %v867, %v866
  %v1053 = vpack.c.b16 %v869, %v868
  %v1054 = vpack.c.b16 %v871, %v870
  %v1055 = vpack.c.b16 %v873, %v872
  %v1056 = vpack.c.b16 %v875, %v874
  %v1057 = vpack.c.b16 %v877, %v876
  %v1058 = vpack.c.b16 %v879, %v878
  %v1059 = vpack.c.b16 %v881, %v880
  %v1060 = vpack.c.b16 %v883, %v882
  %v1061 = vpack.c.b16 %v885, %v884
  %v1062 = vpack.c.b16 %v887, %v886
  %v1063 = vpack.c.b16 %v889, %v888
  %v1064 = vpack.c.b16 %v891, %v890
  %v1065 = vpack.c.b16 %v893, %v892
  %v1066 = vpack.c.b16 %v895, %v894
  %v1067 = vpack.c.b16 %v897, %v896
  %v1068 = vpack.c.b16 %v899, %v898
  %v1069 = vpack.c.b16 %v901, %v900
  %v1070 = vpack.c.b16 %v903, %v902
  %v1071 = vpack.c.b16 %v905, %v904
  %v1072 = vpack.c.b16 %v907, %v906
  %v1073 = vpack.c.b16 %v909, %v908
  %v1074 = vpack.c.b16 %v911, %v910
  %v1075 = vpack.c.b16 %v913, %v912
  %v1076 = vpack.c.b16 %v915, %v914
  %v1077 = vpack.c.b16 %v917, %v916
  %v1078 = vpack.c.b16 %v919, %v918
  %v1079 = vpack.c.b16 %v921, %v920
  %v1080 = vpack.c.b16 %v923, %v922
  %v1081 = vpack.c.b16 %v925, %v924
  %v1082 = vpack.c.b16 %v927, %v926
  %v1083 = vpack.c.b16 %v929, %v928
  %v1084 = vpack.c.b16 %v931, %v930
  %v1085 = vpack.c.b16 %v933, %v932
  %v1086 = vpack.c.b16 %v935, %v934
  %v1087 = vpack.c.b16 %v937, %v936
  %v1088 = vpack.c.b16 %v939, %v938
  %v1089 = vpack.c.b16 %v941, %v940
  %v1090 = vpack.c.b16 %v943, %v942
  %v1091 = vpack.c.b16 %v945, %v944
  %v1092 = vpack.c.b16 %v947, %v946
  %v1093 = vpack.c.b16 %v949, %v948
  %v1094 = vpack.c.b16 %v951, %v950
  %v1095 = vpack.c.b16 %v953, %v952
  %v1096 = vpack.c.b16 %v955, %v954
  %v1097 = vpack.c.b16 %v957, %v956
  %v1098 = vpack.c.b16 %v959, %v958
  %v1099 = vpack.c.b16 %v961, %v960
  %v1100 = vpack.c.b16 %v963, %v962
  %v1101 = vpack.c.b16 %v965, %v964
  %v1102 = vpack.c.b16 %v967, %v966
  %v1103 = vpack.c.b16 %v969, %v968
  %v1104 = vpack.c.b16 %v971, %v970
  %v1105 = vpack.c.b16 %v973, %v972
  %v1106 = vpack.c.b16 %v975, %v974
  %v1107 = vpack.c.b16 %v977, %v976
  %v1108 = vpack.c.b16 %v979, %v978
  %v1109 = vpack.c.b16 %v981, %v980
  %1238 = vmatprep.subr.bf16.mxu0 0
  %1239 = vmatpush1.bf16.msra.mxu0 %v982
  %1240 = vmatprep.subr.bf16.mxu0 0
  %1241 = vmatpush1.bf16.msra.mxu0 %v983
  %1242 = vmatprep.subr.bf16.mxu0 0
  %1243 = vmatpush1.bf16.msra.mxu0 %v984
  %1244 = vmatprep.subr.bf16.mxu0 0
  %1245 = vmatpush1.bf16.msra.mxu0 %v985
  %1246 = vmatprep.subr.bf16.mxu0 0
  %1247 = vmatpush1.bf16.msra.mxu0 %v986
  %1248 = vmatprep.subr.bf16.mxu0 0
  %1249 = vmatpush1.bf16.msra.mxu0 %v987
  %1250 = vmatprep.subr.bf16.mxu0 0
  %1251 = vmatpush1.bf16.msra.mxu0 %v988
  %1252 = vmatprep.subr.bf16.mxu0 0
  %1253 = vmatpush1.bf16.msra.mxu0 %v989
  %1254 = vmatprep.subr.bf16.mxu0 0
  %1255 = vmatpush1.bf16.msra.mxu0 %v990
  %1256 = vmatprep.subr.bf16.mxu0 0
  %1257 = vmatpush1.bf16.msra.mxu0 %v991
  %1258 = vmatprep.subr.bf16.mxu0 0
  %1259 = vmatpush1.bf16.msra.mxu0 %v992
  %1260 = vmatprep.subr.bf16.mxu0 0
  %1261 = vmatpush1.bf16.msra.mxu0 %v993
  %1262 = vmatprep.subr.bf16.mxu0 0
  %1263 = vmatpush1.bf16.msra.mxu0 %v994
  %1264 = vmatprep.subr.bf16.mxu0 0
  %1265 = vmatpush1.bf16.msra.mxu0 %v995
  %1266 = vmatprep.subr.bf16.mxu0 0
  %1267 = vmatpush1.bf16.msra.mxu0 %v996
  %1268 = vmatprep.subr.bf16.mxu0 0
  %1269 = vmatpush1.bf16.msra.mxu0 %v997
  %1270 = vmatprep.mubr.bf16.mxu0 %v407
  %1271 = vmatmul.mubr.bf16.gmra.mrb[0].mxu0 %v406
  %v1272 = vpop.f32.mrb[0].mxu0
  %v1273 = vadd.f32 %v308, %v1272
  %v1274 = vpop.f32.mrb[0].mxu0
  %v1275 = vpop.f32.mrb[0].mxu0
  %v1276 = vadd.f32 %v308, %v1275
  %v1277 = vpop.f32.mrb[0].mxu0
  %1278 = vmatprep.mubr.bf16.mxu0 %v423
  %1279 = vmatmul.mubr.bf16.gmra.mrb[0].mxu0 %v422
  %v1280 = vpop.f32.mrb[0].mxu0
  %v1281 = vadd.f32 %v308, %v1280
  %v1282 = vpop.f32.mrb[0].mxu0
  %v1283 = vpop.f32.mrb[0].mxu0
  %v1284 = vadd.f32 %v308, %v1283
  %v1285 = vpop.f32.mrb[0].mxu0
  %1286 = vdwg.mxu0
  %1287 = vmatprep.subr.bf16.mxu0 0
  %1288 = vmatpush1.bf16.msra.mxu0 %v998
  %1289 = vmatprep.subr.bf16.mxu0 0
  %1290 = vmatpush1.bf16.msra.mxu0 %v999
  %1291 = vmatprep.subr.bf16.mxu0 0
  %1292 = vmatpush1.bf16.msra.mxu0 %v1000
  %1293 = vmatprep.subr.bf16.mxu0 0
  %1294 = vmatpush1.bf16.msra.mxu0 %v1001
  %1295 = vmatprep.subr.bf16.mxu0 0
  %1296 = vmatpush1.bf16.msra.mxu0 %v1002
  %1297 = vmatprep.subr.bf16.mxu0 0
  %1298 = vmatpush1.bf16.msra.mxu0 %v1003
  %1299 = vmatprep.subr.bf16.mxu0 0
  %1300 = vmatpush1.bf16.msra.mxu0 %v1004
  %1301 = vmatprep.subr.bf16.mxu0 0
  %1302 = vmatpush1.bf16.msra.mxu0 %v1005
  %1303 = vmatprep.subr.bf16.mxu0 0
  %1304 = vmatpush1.bf16.msra.mxu0 %v1006
  %1305 = vmatprep.subr.bf16.mxu0 0
  %1306 = vmatpush1.bf16.msra.mxu0 %v1007
  %1307 = vmatprep.subr.bf16.mxu0 0
  %1308 = vmatpush1.bf16.msra.mxu0 %v1008
  %1309 = vmatprep.subr.bf16.mxu0 0
  %1310 = vmatpush1.bf16.msra.mxu0 %v1009
  %1311 = vmatprep.subr.bf16.mxu0 0
  %1312 = vmatpush1.bf16.msra.mxu0 %v1010
  %1313 = vmatprep.subr.bf16.mxu0 0
  %1314 = vmatpush1.bf16.msra.mxu0 %v1011
  %1315 = vmatprep.subr.bf16.mxu0 0
  %1316 = vmatpush1.bf16.msra.mxu0 %v1012
  %1317 = vmatprep.subr.bf16.mxu0 0
  %1318 = vmatpush1.bf16.msra.mxu0 %v1013
  %1319 = vmatprep.mubr.bf16.mxu0 %v409
  %1320 = vmatmul.mubr.bf16.gmra.mrb[0].mxu0 %v408
  %v1321 = vpop.f32.mrb[0].mxu0
  %v1322 = vadd.f32 %v1273, %v1321
  %v1323 = vpop.f32.mrb[0].mxu0
  %v1324 = vpop.f32.mrb[0].mxu0
  %v1325 = vadd.f32 %v1276, %v1324
  %v1326 = vpop.f32.mrb[0].mxu0
  %1327 = vmatprep.mubr.bf16.mxu0 %v425
  %1328 = vmatmul.mubr.bf16.gmra.mrb[0].mxu0 %v424
  %v1329 = vpop.f32.mrb[0].mxu0
  %v1330 = vadd.f32 %v1281, %v1329
  %v1331 = vpop.f32.mrb[0].mxu0
  %v1332 = vpop.f32.mrb[0].mxu0
  %v1333 = vadd.f32 %v1284, %v1332
  %v1334 = vpop.f32.mrb[0].mxu0
  %1335 = vdwg.mxu0
  %1336 = vmatprep.subr.bf16.mxu0 0
  %1337 = vmatpush1.bf16.msra.mxu0 %v1014
  %1338 = vmatprep.subr.bf16.mxu0 0
  %1339 = vmatpush1.bf16.msra.mxu0 %v1015
  %1340 = vmatprep.subr.bf16.mxu0 0
  %1341 = vmatpush1.bf16.msra.mxu0 %v1016
  %1342 = vmatprep.subr.bf16.mxu0 0
  %1343 = vmatpush1.bf16.msra.mxu0 %v1017
  %1344 = vmatprep.subr.bf16.mxu0 0
  %1345 = vmatpush1.bf16.msra.mxu0 %v1018
  %1346 = vmatprep.subr.bf16.mxu0 0
  %1347 = vmatpush1.bf16.msra.mxu0 %v1019
  %1348 = vmatprep.subr.bf16.mxu0 0
  %1349 = vmatpush1.bf16.msra.mxu0 %v1020
  %1350 = vmatprep.subr.bf16.mxu0 0
  %1351 = vmatpush1.bf16.msra.mxu0 %v1021
  %1352 = vmatprep.subr.bf16.mxu0 0
  %1353 = vmatpush1.bf16.msra.mxu0 %v1022
  %1354 = vmatprep.subr.bf16.mxu0 0
  %1355 = vmatpush1.bf16.msra.mxu0 %v1023
  %1356 = vmatprep.subr.bf16.mxu0 0
  %1357 = vmatpush1.bf16.msra.mxu0 %v1024
  %1358 = vmatprep.subr.bf16.mxu0 0
  %1359 = vmatpush1.bf16.msra.mxu0 %v1025
  %1360 = vmatprep.subr.bf16.mxu0 0
  %1361 = vmatpush1.bf16.msra.mxu0 %v1026
  %1362 = vmatprep.subr.bf16.mxu0 0
  %1363 = vmatpush1.bf16.msra.mxu0 %v1027
  %1364 = vmatprep.subr.bf16.mxu0 0
  %1365 = vmatpush1.bf16.msra.mxu0 %v1028
  %1366 = vmatprep.subr.bf16.mxu0 0
  %1367 = vmatpush1.bf16.msra.mxu0 %v1029
  %1368 = vmatprep.mubr.bf16.mxu0 %v411
  %1369 = vmatmul.mubr.bf16.gmra.mrb[0].mxu0 %v410
  %v1370 = vpop.f32.mrb[0].mxu0
  %v1371 = vadd.f32 %v1322, %v1370
  %v1372 = vpop.f32.mrb[0].mxu0
  %v1373 = vpop.f32.mrb[0].mxu0
  %v1374 = vadd.f32 %v1325, %v1373
  %v1375 = vpop.f32.mrb[0].mxu0
  %1376 = vmatprep.mubr.bf16.mxu0 %v427
  %1377 = vmatmul.mubr.bf16.gmra.mrb[0].mxu0 %v426
  %v1378 = vpop.f32.mrb[0].mxu0
  %v1379 = vadd.f32 %v1330, %v1378
  %v1380 = vpop.f32.mrb[0].mxu0
  %v1381 = vpop.f32.mrb[0].mxu0
  %v1382 = vadd.f32 %v1333, %v1381
  %v1383 = vpop.f32.mrb[0].mxu0
  %1384 = vdwg.mxu0
  %1385 = vmatprep.subr.bf16.mxu0 0
  %1386 = vmatpush1.bf16.msra.mxu0 %v1030
  %1387 = vmatprep.subr.bf16.mxu0 0
  %1388 = vmatpush1.bf16.msra.mxu0 %v1031
  %1389 = vmatprep.subr.bf16.mxu0 0
  %1390 = vmatpush1.bf16.msra.mxu0 %v1032
  %1391 = vmatprep.subr.bf16.mxu0 0
  %1392 = vmatpush1.bf16.msra.mxu0 %v1033
  %1393 = vmatprep.subr.bf16.mxu0 0
  %1394 = vmatpush1.bf16.msra.mxu0 %v1034
  %1395 = vmatprep.subr.bf16.mxu0 0
  %1396 = vmatpush1.bf16.msra.mxu0 %v1035
  %1397 = vmatprep.subr.bf16.mxu0 0
  %1398 = vmatpush1.bf16.msra.mxu0 %v1036
  %1399 = vmatprep.subr.bf16.mxu0 0
  %1400 = vmatpush1.bf16.msra.mxu0 %v1037
  %1401 = vmatprep.subr.bf16.mxu0 0
  %1402 = vmatpush1.bf16.msra.mxu0 %v1038
  %1403 = vmatprep.subr.bf16.mxu0 0
  %1404 = vmatpush1.bf16.msra.mxu0 %v1039
  %1405 = vmatprep.subr.bf16.mxu0 0
  %1406 = vmatpush1.bf16.msra.mxu0 %v1040
  %1407 = vmatprep.subr.bf16.mxu0 0
  %1408 = vmatpush1.bf16.msra.mxu0 %v1041
  %1409 = vmatprep.subr.bf16.mxu0 0
  %1410 = vmatpush1.bf16.msra.mxu0 %v1042
  %1411 = vmatprep.subr.bf16.mxu0 0
  %1412 = vmatpush1.bf16.msra.mxu0 %v1043
  %1413 = vmatprep.subr.bf16.mxu0 0
  %1414 = vmatpush1.bf16.msra.mxu0 %v1044
  %1415 = vmatprep.subr.bf16.mxu0 0
  %1416 = vmatpush1.bf16.msra.mxu0 %v1045
  %1417 = vmatprep.mubr.bf16.mxu0 %v413
  %1418 = vmatmul.mubr.bf16.gmra.mrb[0].mxu0 %v412
  %v1419 = vpop.f32.mrb[0].mxu0
  %v1420 = vadd.f32 %v1371, %v1419
  %v1421 = vpop.f32.mrb[0].mxu0
  %v1422 = vpop.f32.mrb[0].mxu0
  %v1423 = vadd.f32 %v1374, %v1422
  %v1424 = vpop.f32.mrb[0].mxu0
  %1425 = vmatprep.mubr.bf16.mxu0 %v429
  %1426 = vmatmul.mubr.bf16.gmra.mrb[0].mxu0 %v428
  %v1427 = vpop.f32.mrb[0].mxu0
  %v1428 = vadd.f32 %v1379, %v1427
  %v1429 = vpop.f32.mrb[0].mxu0
  %v1430 = vpop.f32.mrb[0].mxu0
  %v1431 = vadd.f32 %v1382, %v1430
  %v1432 = vpop.f32.mrb[0].mxu0
  %1433 = vdwg.mxu0
  %1434 = vmatprep.subr.bf16.mxu0 0
  %1435 = vmatpush1.bf16.msra.mxu0 %v1046
  %1436 = vmatprep.subr.bf16.mxu0 0
  %1437 = vmatpush1.bf16.msra.mxu0 %v1047
  %1438 = vmatprep.subr.bf16.mxu0 0
  %1439 = vmatpush1.bf16.msra.mxu0 %v1048
  %1440 = vmatprep.subr.bf16.mxu0 0
  %1441 = vmatpush1.bf16.msra.mxu0 %v1049
  %1442 = vmatprep.subr.bf16.mxu0 0
  %1443 = vmatpush1.bf16.msra.mxu0 %v1050
  %1444 = vmatprep.subr.bf16.mxu0 0
  %1445 = vmatpush1.bf16.msra.mxu0 %v1051
  %1446 = vmatprep.subr.bf16.mxu0 0
  %1447 = vmatpush1.bf16.msra.mxu0 %v1052
  %1448 = vmatprep.subr.bf16.mxu0 0
  %1449 = vmatpush1.bf16.msra.mxu0 %v1053
  %1450 = vmatprep.subr.bf16.mxu0 0
  %1451 = vmatpush1.bf16.msra.mxu0 %v1054
  %1452 = vmatprep.subr.bf16.mxu0 0
  %1453 = vmatpush1.bf16.msra.mxu0 %v1055
  %1454 = vmatprep.subr.bf16.mxu0 0
  %1455 = vmatpush1.bf16.msra.mxu0 %v1056
  %1456 = vmatprep.subr.bf16.mxu0 0
  %1457 = vmatpush1.bf16.msra.mxu0 %v1057
  %1458 = vmatprep.subr.bf16.mxu0 0
  %1459 = vmatpush1.bf16.msra.mxu0 %v1058
  %1460 = vmatprep.subr.bf16.mxu0 0
  %1461 = vmatpush1.bf16.msra.mxu0 %v1059
  %1462 = vmatprep.subr.bf16.mxu0 0
  %1463 = vmatpush1.bf16.msra.mxu0 %v1060
  %1464 = vmatprep.subr.bf16.mxu0 0
  %1465 = vmatpush1.bf16.msra.mxu0 %v1061
  %1466 = vmatprep.mubr.bf16.mxu0 %v415
  %1467 = vmatmul.mubr.bf16.gmra.mrb[0].mxu0 %v414
  %v1468 = vpop.f32.mrb[0].mxu0
  %v1469 = vadd.f32 %v1420, %v1468
  %v1470 = vpop.f32.mrb[0].mxu0
  %v1471 = vpop.f32.mrb[0].mxu0
  %v1472 = vadd.f32 %v1423, %v1471
  %v1473 = vpop.f32.mrb[0].mxu0
  %1474 = vmatprep.mubr.bf16.mxu0 %v431
  %1475 = vmatmul.mubr.bf16.gmra.mrb[0].mxu0 %v430
  %v1476 = vpop.f32.mrb[0].mxu0
  %v1477 = vadd.f32 %v1428, %v1476
  %v1478 = vpop.f32.mrb[0].mxu0
  %v1479 = vpop.f32.mrb[0].mxu0
  %v1480 = vadd.f32 %v1431, %v1479
  %v1481 = vpop.f32.mrb[0].mxu0
  %1482 = vdwg.mxu0
  %1483 = vmatprep.subr.bf16.mxu0 0
  %1484 = vmatpush1.bf16.msra.mxu0 %v1062
  %1485 = vmatprep.subr.bf16.mxu0 0
  %1486 = vmatpush1.bf16.msra.mxu0 %v1063
  %1487 = vmatprep.subr.bf16.mxu0 0
  %1488 = vmatpush1.bf16.msra.mxu0 %v1064
  %1489 = vmatprep.subr.bf16.mxu0 0
  %1490 = vmatpush1.bf16.msra.mxu0 %v1065
  %1491 = vmatprep.subr.bf16.mxu0 0
  %1492 = vmatpush1.bf16.msra.mxu0 %v1066
  %1493 = vmatprep.subr.bf16.mxu0 0
  %1494 = vmatpush1.bf16.msra.mxu0 %v1067
  %1495 = vmatprep.subr.bf16.mxu0 0
  %1496 = vmatpush1.bf16.msra.mxu0 %v1068
  %1497 = vmatprep.subr.bf16.mxu0 0
  %1498 = vmatpush1.bf16.msra.mxu0 %v1069
  %1499 = vmatprep.subr.bf16.mxu0 0
  %1500 = vmatpush1.bf16.msra.mxu0 %v1070
  %1501 = vmatprep.subr.bf16.mxu0 0
  %1502 = vmatpush1.bf16.msra.mxu0 %v1071
  %1503 = vmatprep.subr.bf16.mxu0 0
  %1504 = vmatpush1.bf16.msra.mxu0 %v1072
  %1505 = vmatprep.subr.bf16.mxu0 0
  %1506 = vmatpush1.bf16.msra.mxu0 %v1073
  %1507 = vmatprep.subr.bf16.mxu0 0
  %1508 = vmatpush1.bf16.msra.mxu0 %v1074
  %1509 = vmatprep.subr.bf16.mxu0 0
  %1510 = vmatpush1.bf16.msra.mxu0 %v1075
  %1511 = vmatprep.subr.bf16.mxu0 0
  %1512 = vmatpush1.bf16.msra.mxu0 %v1076
  %1513 = vmatprep.subr.bf16.mxu0 0
  %1514 = vmatpush1.bf16.msra.mxu0 %v1077
  %1515 = vmatprep.mubr.bf16.mxu0 %v417
  %1516 = vmatmul.mubr.bf16.gmra.mrb[0].mxu0 %v416
  %v1517 = vpop.f32.mrb[0].mxu0
  %v1518 = vadd.f32 %v1469, %v1517
  %v1519 = vpop.f32.mrb[0].mxu0
  %v1520 = vpop.f32.mrb[0].mxu0
  %v1521 = vadd.f32 %v1472, %v1520
  %v1522 = vpop.f32.mrb[0].mxu0
  %1523 = vmatprep.mubr.bf16.mxu0 %v433
  %1524 = vmatmul.mubr.bf16.gmra.mrb[0].mxu0 %v432
  %v1525 = vpop.f32.mrb[0].mxu0
  %v1526 = vadd.f32 %v1477, %v1525
  %v1527 = vpop.f32.mrb[0].mxu0
  %v1528 = vpop.f32.mrb[0].mxu0
  %v1529 = vadd.f32 %v1480, %v1528
  %v1530 = vpop.f32.mrb[0].mxu0
  %1531 = vdwg.mxu0
  %1532 = vmatprep.subr.bf16.mxu0 0
  %1533 = vmatpush1.bf16.msra.mxu0 %v1078
  %1534 = vmatprep.subr.bf16.mxu0 0
  %1535 = vmatpush1.bf16.msra.mxu0 %v1079
  %1536 = vmatprep.subr.bf16.mxu0 0
  %1537 = vmatpush1.bf16.msra.mxu0 %v1080
  %1538 = vmatprep.subr.bf16.mxu0 0
  %1539 = vmatpush1.bf16.msra.mxu0 %v1081
  %1540 = vmatprep.subr.bf16.mxu0 0
  %1541 = vmatpush1.bf16.msra.mxu0 %v1082
  %1542 = vmatprep.subr.bf16.mxu0 0
  %1543 = vmatpush1.bf16.msra.mxu0 %v1083
  %1544 = vmatprep.subr.bf16.mxu0 0
  %1545 = vmatpush1.bf16.msra.mxu0 %v1084
  %1546 = vmatprep.subr.bf16.mxu0 0
  %1547 = vmatpush1.bf16.msra.mxu0 %v1085
  %1548 = vmatprep.subr.bf16.mxu0 0
  %1549 = vmatpush1.bf16.msra.mxu0 %v1086
  %1550 = vmatprep.subr.bf16.mxu0 0
  %1551 = vmatpush1.bf16.msra.mxu0 %v1087
  %1552 = vmatprep.subr.bf16.mxu0 0
  %1553 = vmatpush1.bf16.msra.mxu0 %v1088
  %1554 = vmatprep.subr.bf16.mxu0 0
  %1555 = vmatpush1.bf16.msra.mxu0 %v1089
  %1556 = vmatprep.subr.bf16.mxu0 0
  %1557 = vmatpush1.bf16.msra.mxu0 %v1090
  %1558 = vmatprep.subr.bf16.mxu0 0
  %1559 = vmatpush1.bf16.msra.mxu0 %v1091
  %1560 = vmatprep.subr.bf16.mxu0 0
  %1561 = vmatpush1.bf16.msra.mxu0 %v1092
  %1562 = vmatprep.subr.bf16.mxu0 0
  %1563 = vmatpush1.bf16.msra.mxu0 %v1093
  %1564 = vmatprep.mubr.bf16.mxu0 %v419
  %1565 = vmatmul.mubr.bf16.gmra.mrb[0].mxu0 %v418
  %v1566 = vpop.f32.mrb[0].mxu0
  %v1567 = vadd.f32 %v1518, %v1566
  %v1568 = vpop.f32.mrb[0].mxu0
  %v1569 = vpop.f32.mrb[0].mxu0
  %v1570 = vadd.f32 %v1521, %v1569
  %v1571 = vpop.f32.mrb[0].mxu0
  %1572 = vmatprep.mubr.bf16.mxu0 %v435
  %1573 = vmatmul.mubr.bf16.gmra.mrb[0].mxu0 %v434
  %v1574 = vpop.f32.mrb[0].mxu0
  %v1575 = vadd.f32 %v1526, %v1574
  %v1576 = vpop.f32.mrb[0].mxu0
  %v1577 = vpop.f32.mrb[0].mxu0
  %v1578 = vadd.f32 %v1529, %v1577
  %v1579 = vpop.f32.mrb[0].mxu0
  %1580 = vdwg.mxu0
  %1581 = vmatprep.subr.bf16.mxu0 0
  %1582 = vmatpush1.bf16.msra.mxu0 %v1094
  %1583 = vmatprep.subr.bf16.mxu0 0
  %1584 = vmatpush1.bf16.msra.mxu0 %v1095
  %1585 = vmatprep.subr.bf16.mxu0 0
  %1586 = vmatpush1.bf16.msra.mxu0 %v1096
  %1587 = vmatprep.subr.bf16.mxu0 0
  %1588 = vmatpush1.bf16.msra.mxu0 %v1097
  %1589 = vmatprep.subr.bf16.mxu0 0
  %1590 = vmatpush1.bf16.msra.mxu0 %v1098
  %1591 = vmatprep.subr.bf16.mxu0 0
  %1592 = vmatpush1.bf16.msra.mxu0 %v1099
  %1593 = vmatprep.subr.bf16.mxu0 0
  %1594 = vmatpush1.bf16.msra.mxu0 %v1100
  %1595 = vmatprep.subr.bf16.mxu0 0
  %1596 = vmatpush1.bf16.msra.mxu0 %v1101
  %1597 = vmatprep.subr.bf16.mxu0 0
  %1598 = vmatpush1.bf16.msra.mxu0 %v1102
  %1599 = vmatprep.subr.bf16.mxu0 0
  %1600 = vmatpush1.bf16.msra.mxu0 %v1103
  %1601 = vmatprep.subr.bf16.mxu0 0
  %1602 = vmatpush1.bf16.msra.mxu0 %v1104
  %1603 = vmatprep.subr.bf16.mxu0 0
  %1604 = vmatpush1.bf16.msra.mxu0 %v1105
  %1605 = vmatprep.subr.bf16.mxu0 0
  %1606 = vmatpush1.bf16.msra.mxu0 %v1106
  %1607 = vmatprep.subr.bf16.mxu0 0
  %1608 = vmatpush1.bf16.msra.mxu0 %v1107
  %1609 = vmatprep.subr.bf16.mxu0 0
  %1610 = vmatpush1.bf16.msra.mxu0 %v1108
  %1611 = vmatprep.subr.bf16.mxu0 0
  %1612 = vmatpush1.bf16.msra.mxu0 %v1109
  %1613 = vmatprep.mubr.bf16.mxu0 %v421
  %1614 = vmatmul.mubr.bf16.gmra.mrb[0].mxu0 %v420
  %v1615 = vpop.f32.mrb[0].mxu0
  %v1616 = vadd.f32 %v1567, %v1615
  %v1617 = vpop.f32.mrb[0].mxu0
  %v1618 = vpop.f32.mrb[0].mxu0
  %v1619 = vadd.f32 %v1570, %v1618
  %v1620 = vpop.f32.mrb[0].mxu0
  %1621 = vmatprep.mubr.bf16.mxu0 %v437
  %1622 = vmatmul.mubr.bf16.gmra.mrb[0].mxu0 %v436
  %v1623 = vpop.f32.mrb[0].mxu0
  %v1624 = vadd.f32 %v1575, %v1623
  %v1625 = vpop.f32.mrb[0].mxu0
  %v1626 = vpop.f32.mrb[0].mxu0
  %v1627 = vadd.f32 %v1578, %v1626
  %v1628 = vpop.f32.mrb[0].mxu0
  %1629 = vdwg.mxu0
  %vm1630 = vcmp.ge.f32.partialorder %v1616, 0.0
  %vm1631 = vcmp.ge.f32.partialorder %v1619, 0.0
  %vm1632 = vcmp.ge.f32.partialorder %v1624, 0.0
  %vm1633 = vcmp.ge.f32.partialorder %v1627, 0.0
  %v1634 = vmul.f32 %v1616, 0.01
  %v1635 = vmul.f32 %v1619, 0.01
  %v1636 = vmul.f32 %v1624, 0.01
  %v1637 = vmul.f32 %v1627, 0.01
  %v1638 = vsel %vm1630, %v1616, %v1634
  %v1639 = vsel %vm1631, %v1619, %v1635
  %v1640 = vsel %vm1632, %v1624, %v1636
  %v1641 = vsel %vm1633, %v1627, %v1637
  %v1642 = vpack.c.bf16 %v1639, %v1638
  %v1643 = vpack.c.bf16 %v1641, %v1640
  %v1646 = vunpack.c.l.b16 %v1642
  %v1647 = vunpack.c.h.b16 %v1642
  %v1648 = vunpack.c.l.b16 %v1643
  %v1649 = vunpack.c.h.b16 %v1643
  %v1650 = vpack.c.b16 %v1646, %v1646
  %v1651 = vpack.c.b16 %v1647, %v1647
  %v1652 = vpack.c.b16 %v1648, %v1648
  %v1653 = vpack.c.b16 %v1649, %v1649
  %1658 = vst [vmem:[%s3] sm:$0xf] %v1650
  %1659 = vst [vmem:[%s3 + $0x4] sm:$0xf] %v1651
  %1660 = vst [vmem:[%s3 + $0x8] sm:$0xf] %v1652
  %1661 = vst [vmem:[%s3 + $0xc] sm:$0xf] %v1653
  // Predicated region
  $region14: #{discriminator_forward.5} parent=0 // pred_check
    _
  $region15: #{discriminator_forward.5} parent=0 // pred_check_branch
    %1663 = sbr.rel (0) target = $region17
  $region16: #{discriminator_forward.5} parent=0 // pred_region
    _
  $region17: #{discriminator_forward.5} parent=0 // pred_fallthru
    _
  // Predicated region
  $region18: #{discriminator_forward.5} parent=0 // pred_check
    _
  $region19: #{discriminator_forward.5} parent=0 // pred_check_branch
    %1665 = sbr.rel (0) target = $region21
  $region20: #{discriminator_forward.5} parent=0 // pred_region
    _
  $region21: #{discriminator_forward.5} parent=0 // pred_fallthru
    _

// kernel: discriminator_forward.6
$region0: #{discriminator_forward.6}
  #allocation0 [shape = 'u32[]', space=smem, size = 0x4, offset = 0x4, fixed_abs, tag = 'smem constant byte address 0x4 - core index']
  #allocation1 [shape = 'u32[144,128]{1,0:T(1,128)}', space=vmem, size = 0x12000, scoped, tag = 'internal scratch']
  %s0 = inlined_call_operand.vmem [shape: bf16[8,2048], index: 0, kind: input, shape index: {}]
  %s1 = inlined_call_operand.vmem [shape: bf16[2048,128], index: 1, kind: input, shape index: {}]
  %s2 = inlined_call_operand.vmem [shape: f32[1,128], index: 2, kind: input, shape index: {}]
  %s3 = inlined_call_operand.vmem [shape: bf16[8,128], index: 3, kind: output, shape index: {}]
  %s4 = sld [smem:[#allocation0]]
  $region22: #{discriminator_forward.6} parent=0
    _
  %s6 = ssub.s32 1, %s4
  %s7 = scalar_select 0, %s6, %s4
  // Predicated region
  $region2: #{discriminator_forward.6} parent=0 // pred_check
    _
  $region3: #{discriminator_forward.6} parent=0 // pred_check_branch
    %9 = sbr.rel (0) target = $region5
  $region4: #{discriminator_forward.6} parent=0 // pred_region
    _
  $region5: #{discriminator_forward.6} parent=0 // pred_fallthru
    _
  // Predicated region
  $region6: #{discriminator_forward.6} parent=0 // pred_check
    _
  $region7: #{discriminator_forward.6} parent=0 // pred_check_branch
    %11 = sbr.rel (0) target = $region9
  $region8: #{discriminator_forward.6} parent=0 // pred_region
    _
  $region9: #{discriminator_forward.6} parent=0 // pred_fallthru
    _
  // Predicated region
  $region10: #{discriminator_forward.6} parent=0 // pred_check
    _
  $region11: #{discriminator_forward.6} parent=0 // pred_check_branch
    %13 = sbr.rel (0) target = $region13
  $region12: #{discriminator_forward.6} parent=0 // pred_region
    _
  $region13: #{discriminator_forward.6} parent=0 // pred_fallthru
    _
  %v15 = vld [vmem:[%s0] sm:$0xff]
  %v16 = vld [vmem:[%s0 + $0x8] sm:$0xff]
  %v17 = vld [vmem:[%s0 + $0x10] sm:$0xff]
  %v18 = vld [vmem:[%s0 + $0x18] sm:$0xff]
  %v19 = vld [vmem:[%s0 + $0x20] sm:$0xff]
  %v20 = vld [vmem:[%s0 + $0x28] sm:$0xff]
  %v21 = vld [vmem:[%s0 + $0x30] sm:$0xff]
  %v22 = vld [vmem:[%s0 + $0x38] sm:$0xff]
  %v23 = vld [vmem:[%s1] sm:$0xf]
  %v24 = vld [vmem:[%s1 + $0x4] sm:$0xf]
  %v25 = vld [vmem:[%s1 + $0x8] sm:$0xf]
  %v26 = vld [vmem:[%s1 + $0xc] sm:$0xf]
  %v27 = vld [vmem:[%s1 + $0x10] sm:$0xf]
  %v28 = vld [vmem:[%s1 + $0x14] sm:$0xf]
  %v29 = vld [vmem:[%s1 + $0x18] sm:$0xf]
  %v30 = vld [vmem:[%s1 + $0x1c] sm:$0xf]
  %v31 = vld [vmem:[%s1 + $0x20] sm:$0xf]
  %v32 = vld [vmem:[%s1 + $0x24] sm:$0xf]
  %v33 = vld [vmem:[%s1 + $0x28] sm:$0xf]
  %v34 = vld [vmem:[%s1 + $0x2c] sm:$0xf]
  %v35 = vld [vmem:[%s1 + $0x30] sm:$0xf]
  %v36 = vld [vmem:[%s1 + $0x34] sm:$0xf]
  %v37 = vld [vmem:[%s1 + $0x38] sm:$0xf]
  %v38 = vld [vmem:[%s1 + $0x3c] sm:$0xf]
  %v39 = vld [vmem:[%s1 + $0x40] sm:$0xf]
  %v40 = vld [vmem:[%s1 + $0x44] sm:$0xf]
  %v41 = vld [vmem:[%s1 + $0x48] sm:$0xf]
  %v42 = vld [vmem:[%s1 + $0x4c] sm:$0xf]
  %v43 = vld [vmem:[%s1 + $0x50] sm:$0xf]
  %v44 = vld [vmem:[%s1 + $0x54] sm:$0xf]
  %v45 = vld [vmem:[%s1 + $0x58] sm:$0xf]
  %v46 = vld [vmem:[%s1 + $0x5c] sm:$0xf]
  %v47 = vld [vmem:[%s1 + $0x60] sm:$0xf]
  %v48 = vld [vmem:[%s1 + $0x64] sm:$0xf]
  %v49 = vld [vmem:[%s1 + $0x68] sm:$0xf]
  %v50 = vld [vmem:[%s1 + $0x6c] sm:$0xf]
  %v51 = vld [vmem:[%s1 + $0x70] sm:$0xf]
  %v52 = vld [vmem:[%s1 + $0x74] sm:$0xf]
  %v53 = vld [vmem:[%s1 + $0x78] sm:$0xf]
  %v54 = vld [vmem:[%s1 + $0x7c] sm:$0xf]
  %v55 = vld [vmem:[%s1 + $0x80] sm:$0xf]
  %v56 = vld [vmem:[%s1 + $0x84] sm:$0xf]
  %v57 = vld [vmem:[%s1 + $0x88] sm:$0xf]
  %v58 = vld [vmem:[%s1 + $0x8c] sm:$0xf]
  %v59 = vld [vmem:[%s1 + $0x90] sm:$0xf]
  %v60 = vld [vmem:[%s1 + $0x94] sm:$0xf]
  %v61 = vld [vmem:[%s1 + $0x98] sm:$0xf]
  %v62 = vld [vmem:[%s1 + $0x9c] sm:$0xf]
  %v63 = vld [vmem:[%s1 + $0xa0] sm:$0xf]
  %v64 = vld [vmem:[%s1 + $0xa4] sm:$0xf]
  %v65 = vld [vmem:[%s1 + $0xa8] sm:$0xf]
  %v66 = vld [vmem:[%s1 + $0xac] sm:$0xf]
  %v67 = vld [vmem:[%s1 + $0xb0] sm:$0xf]
  %v68 = vld [vmem:[%s1 + $0xb4] sm:$0xf]
  %v69 = vld [vmem:[%s1 + $0xb8] sm:$0xf]
  %v70 = vld [vmem:[%s1 + $0xbc] sm:$0xf]
  %v71 = vld [vmem:[%s1 + $0xc0] sm:$0xf]
  %v72 = vld [vmem:[%s1 + $0xc4] sm:$0xf]
  %v73 = vld [vmem:[%s1 + $0xc8] sm:$0xf]
  %v74 = vld [vmem:[%s1 + $0xcc] sm:$0xf]
  %v75 = vld [vmem:[%s1 + $0xd0] sm:$0xf]
  %v76 = vld [vmem:[%s1 + $0xd4] sm:$0xf]
  %v77 = vld [vmem:[%s1 + $0xd8] sm:$0xf]
  %v78 = vld [vmem:[%s1 + $0xdc] sm:$0xf]
  %v79 = vld [vmem:[%s1 + $0xe0] sm:$0xf]
  %v80 = vld [vmem:[%s1 + $0xe4] sm:$0xf]
  %v81 = vld [vmem:[%s1 + $0xe8] sm:$0xf]
  %v82 = vld [vmem:[%s1 + $0xec] sm:$0xf]
  %v83 = vld [vmem:[%s1 + $0xf0] sm:$0xf]
  %v84 = vld [vmem:[%s1 + $0xf4] sm:$0xf]
  %v85 = vld [vmem:[%s1 + $0xf8] sm:$0xf]
  %v86 = vld [vmem:[%s1 + $0xfc] sm:$0xf]
  %v87 = vld [vmem:[%s1 + $0x100] sm:$0xf]
  %v88 = vld [vmem:[%s1 + $0x104] sm:$0xf]
  %v89 = vld [vmem:[%s1 + $0x108] sm:$0xf]
  %v90 = vld [vmem:[%s1 + $0x10c] sm:$0xf]
  %v91 = vld [vmem:[%s1 + $0x110] sm:$0xf]
  %v92 = vld [vmem:[%s1 + $0x114] sm:$0xf]
  %v93 = vld [vmem:[%s1 + $0x118] sm:$0xf]
  %v94 = vld [vmem:[%s1 + $0x11c] sm:$0xf]
  %v95 = vld [vmem:[%s1 + $0x120] sm:$0xf]
  %v96 = vld [vmem:[%s1 + $0x124] sm:$0xf]
  %v97 = vld [vmem:[%s1 + $0x128] sm:$0xf]
  %v98 = vld [vmem:[%s1 + $0x12c] sm:$0xf]
  %v99 = vld [vmem:[%s1 + $0x130] sm:$0xf]
  %v100 = vld [vmem:[%s1 + $0x134] sm:$0xf]
  %v101 = vld [vmem:[%s1 + $0x138] sm:$0xf]
  %v102 = vld [vmem:[%s1 + $0x13c] sm:$0xf]
  %v103 = vld [vmem:[%s1 + $0x140] sm:$0xf]
  %v104 = vld [vmem:[%s1 + $0x144] sm:$0xf]
  %v105 = vld [vmem:[%s1 + $0x148] sm:$0xf]
  %v106 = vld [vmem:[%s1 + $0x14c] sm:$0xf]
  %v107 = vld [vmem:[%s1 + $0x150] sm:$0xf]
  %v108 = vld [vmem:[%s1 + $0x154] sm:$0xf]
  %v109 = vld [vmem:[%s1 + $0x158] sm:$0xf]
  %v110 = vld [vmem:[%s1 + $0x15c] sm:$0xf]
  %v111 = vld [vmem:[%s1 + $0x160] sm:$0xf]
  %v112 = vld [vmem:[%s1 + $0x164] sm:$0xf]
  %v113 = vld [vmem:[%s1 + $0x168] sm:$0xf]
  %v114 = vld [vmem:[%s1 + $0x16c] sm:$0xf]
  %v115 = vld [vmem:[%s1 + $0x170] sm:$0xf]
  %v116 = vld [vmem:[%s1 + $0x174] sm:$0xf]
  %v117 = vld [vmem:[%s1 + $0x178] sm:$0xf]
  %v118 = vld [vmem:[%s1 + $0x17c] sm:$0xf]
  %v119 = vld [vmem:[%s1 + $0x180] sm:$0xf]
  %v120 = vld [vmem:[%s1 + $0x184] sm:$0xf]
  %v121 = vld [vmem:[%s1 + $0x188] sm:$0xf]
  %v122 = vld [vmem:[%s1 + $0x18c] sm:$0xf]
  %v123 = vld [vmem:[%s1 + $0x190] sm:$0xf]
  %v124 = vld [vmem:[%s1 + $0x194] sm:$0xf]
  %v125 = vld [vmem:[%s1 + $0x198] sm:$0xf]
  %v126 = vld [vmem:[%s1 + $0x19c] sm:$0xf]
  %v127 = vld [vmem:[%s1 + $0x1a0] sm:$0xf]
  %v128 = vld [vmem:[%s1 + $0x1a4] sm:$0xf]
  %v129 = vld [vmem:[%s1 + $0x1a8] sm:$0xf]
  %v130 = vld [vmem:[%s1 + $0x1ac] sm:$0xf]
  %v131 = vld [vmem:[%s1 + $0x1b0] sm:$0xf]
  %v132 = vld [vmem:[%s1 + $0x1b4] sm:$0xf]
  %v133 = vld [vmem:[%s1 + $0x1b8] sm:$0xf]
  %v134 = vld [vmem:[%s1 + $0x1bc] sm:$0xf]
  %v135 = vld [vmem:[%s1 + $0x1c0] sm:$0xf]
  %v136 = vld [vmem:[%s1 + $0x1c4] sm:$0xf]
  %v137 = vld [vmem:[%s1 + $0x1c8] sm:$0xf]
  %v138 = vld [vmem:[%s1 + $0x1cc] sm:$0xf]
  %v139 = vld [vmem:[%s1 + $0x1d0] sm:$0xf]
  %v140 = vld [vmem:[%s1 + $0x1d4] sm:$0xf]
  %v141 = vld [vmem:[%s1 + $0x1d8] sm:$0xf]
  %v142 = vld [vmem:[%s1 + $0x1dc] sm:$0xf]
  %v143 = vld [vmem:[%s1 + $0x1e0] sm:$0xf]
  %v144 = vld [vmem:[%s1 + $0x1e4] sm:$0xf]
  %v145 = vld [vmem:[%s1 + $0x1e8] sm:$0xf]
  %v146 = vld [vmem:[%s1 + $0x1ec] sm:$0xf]
  %v147 = vld [vmem:[%s1 + $0x1f0] sm:$0xf]
  %v148 = vld [vmem:[%s1 + $0x1f4] sm:$0xf]
  %v149 = vld [vmem:[%s1 + $0x1f8] sm:$0xf]
  %v150 = vld [vmem:[%s1 + $0x1fc] sm:$0xf]
  %v151 = vld [vmem:[%s1 + $0x200] sm:$0xf]
  %v152 = vld [vmem:[%s1 + $0x204] sm:$0xf]
  %v153 = vld [vmem:[%s1 + $0x208] sm:$0xf]
  %v154 = vld [vmem:[%s1 + $0x20c] sm:$0xf]
  %v155 = vld [vmem:[%s1 + $0x210] sm:$0xf]
  %v156 = vld [vmem:[%s1 + $0x214] sm:$0xf]
  %v157 = vld [vmem:[%s1 + $0x218] sm:$0xf]
  %v158 = vld [vmem:[%s1 + $0x21c] sm:$0xf]
  %v159 = vld [vmem:[%s1 + $0x220] sm:$0xf]
  %v160 = vld [vmem:[%s1 + $0x224] sm:$0xf]
  %v161 = vld [vmem:[%s1 + $0x228] sm:$0xf]
  %v162 = vld [vmem:[%s1 + $0x22c] sm:$0xf]
  %v163 = vld [vmem:[%s1 + $0x230] sm:$0xf]
  %v164 = vld [vmem:[%s1 + $0x234] sm:$0xf]
  %v165 = vld [vmem:[%s1 + $0x238] sm:$0xf]
  %v166 = vld [vmem:[%s1 + $0x23c] sm:$0xf]
  %v167 = vld [vmem:[%s1 + $0x240] sm:$0xf]
  %v168 = vld [vmem:[%s1 + $0x244] sm:$0xf]
  %v169 = vld [vmem:[%s1 + $0x248] sm:$0xf]
  %v170 = vld [vmem:[%s1 + $0x24c] sm:$0xf]
  %v171 = vld [vmem:[%s1 + $0x250] sm:$0xf]
  %v172 = vld [vmem:[%s1 + $0x254] sm:$0xf]
  %v173 = vld [vmem:[%s1 + $0x258] sm:$0xf]
  %v174 = vld [vmem:[%s1 + $0x25c] sm:$0xf]
  %v175 = vld [vmem:[%s1 + $0x260] sm:$0xf]
  %v176 = vld [vmem:[%s1 + $0x264] sm:$0xf]
  %v177 = vld [vmem:[%s1 + $0x268] sm:$0xf]
  %v178 = vld [vmem:[%s1 + $0x26c] sm:$0xf]
  %v179 = vld [vmem:[%s1 + $0x270] sm:$0xf]
  %v180 = vld [vmem:[%s1 + $0x274] sm:$0xf]
  %v181 = vld [vmem:[%s1 + $0x278] sm:$0xf]
  %v182 = vld [vmem:[%s1 + $0x27c] sm:$0xf]
  %v183 = vld [vmem:[%s1 + $0x280] sm:$0xf]
  %v184 = vld [vmem:[%s1 + $0x284] sm:$0xf]
  %v185 = vld [vmem:[%s1 + $0x288] sm:$0xf]
  %v186 = vld [vmem:[%s1 + $0x28c] sm:$0xf]
  %v187 = vld [vmem:[%s1 + $0x290] sm:$0xf]
  %v188 = vld [vmem:[%s1 + $0x294] sm:$0xf]
  %v189 = vld [vmem:[%s1 + $0x298] sm:$0xf]
  %v190 = vld [vmem:[%s1 + $0x29c] sm:$0xf]
  %v191 = vld [vmem:[%s1 + $0x2a0] sm:$0xf]
  %v192 = vld [vmem:[%s1 + $0x2a4] sm:$0xf]
  %v193 = vld [vmem:[%s1 + $0x2a8] sm:$0xf]
  %v194 = vld [vmem:[%s1 + $0x2ac] sm:$0xf]
  %v195 = vld [vmem:[%s1 + $0x2b0] sm:$0xf]
  %v196 = vld [vmem:[%s1 + $0x2b4] sm:$0xf]
  %v197 = vld [vmem:[%s1 + $0x2b8] sm:$0xf]
  %v198 = vld [vmem:[%s1 + $0x2bc] sm:$0xf]
  %v199 = vld [vmem:[%s1 + $0x2c0] sm:$0xf]
  %v200 = vld [vmem:[%s1 + $0x2c4] sm:$0xf]
  %v201 = vld [vmem:[%s1 + $0x2c8] sm:$0xf]
  %v202 = vld [vmem:[%s1 + $0x2cc] sm:$0xf]
  %v203 = vld [vmem:[%s1 + $0x2d0] sm:$0xf]
  %v204 = vld [vmem:[%s1 + $0x2d4] sm:$0xf]
  %v205 = vld [vmem:[%s1 + $0x2d8] sm:$0xf]
  %v206 = vld [vmem:[%s1 + $0x2dc] sm:$0xf]
  %v207 = vld [vmem:[%s1 + $0x2e0] sm:$0xf]
  %v208 = vld [vmem:[%s1 + $0x2e4] sm:$0xf]
  %v209 = vld [vmem:[%s1 + $0x2e8] sm:$0xf]
  %v210 = vld [vmem:[%s1 + $0x2ec] sm:$0xf]
  %v211 = vld [vmem:[%s1 + $0x2f0] sm:$0xf]
  %v212 = vld [vmem:[%s1 + $0x2f4] sm:$0xf]
  %v213 = vld [vmem:[%s1 + $0x2f8] sm:$0xf]
  %v214 = vld [vmem:[%s1 + $0x2fc] sm:$0xf]
  %v215 = vld [vmem:[%s1 + $0x300] sm:$0xf]
  %v216 = vld [vmem:[%s1 + $0x304] sm:$0xf]
  %v217 = vld [vmem:[%s1 + $0x308] sm:$0xf]
  %v218 = vld [vmem:[%s1 + $0x30c] sm:$0xf]
  %v219 = vld [vmem:[%s1 + $0x310] sm:$0xf]
  %v220 = vld [vmem:[%s1 + $0x314] sm:$0xf]
  %v221 = vld [vmem:[%s1 + $0x318] sm:$0xf]
  %v222 = vld [vmem:[%s1 + $0x31c] sm:$0xf]
  %v223 = vld [vmem:[%s1 + $0x320] sm:$0xf]
  %v224 = vld [vmem:[%s1 + $0x324] sm:$0xf]
  %v225 = vld [vmem:[%s1 + $0x328] sm:$0xf]
  %v226 = vld [vmem:[%s1 + $0x32c] sm:$0xf]
  %v227 = vld [vmem:[%s1 + $0x330] sm:$0xf]
  %v228 = vld [vmem:[%s1 + $0x334] sm:$0xf]
  %v229 = vld [vmem:[%s1 + $0x338] sm:$0xf]
  %v230 = vld [vmem:[%s1 + $0x33c] sm:$0xf]
  %v231 = vld [vmem:[%s1 + $0x340] sm:$0xf]
  %v232 = vld [vmem:[%s1 + $0x344] sm:$0xf]
  %v233 = vld [vmem:[%s1 + $0x348] sm:$0xf]
  %v234 = vld [vmem:[%s1 + $0x34c] sm:$0xf]
  %v235 = vld [vmem:[%s1 + $0x350] sm:$0xf]
  %v236 = vld [vmem:[%s1 + $0x354] sm:$0xf]
  %v237 = vld [vmem:[%s1 + $0x358] sm:$0xf]
  %v238 = vld [vmem:[%s1 + $0x35c] sm:$0xf]
  %v239 = vld [vmem:[%s1 + $0x360] sm:$0xf]
  %v240 = vld [vmem:[%s1 + $0x364] sm:$0xf]
  %v241 = vld [vmem:[%s1 + $0x368] sm:$0xf]
  %v242 = vld [vmem:[%s1 + $0x36c] sm:$0xf]
  %v243 = vld [vmem:[%s1 + $0x370] sm:$0xf]
  %v244 = vld [vmem:[%s1 + $0x374] sm:$0xf]
  %v245 = vld [vmem:[%s1 + $0x378] sm:$0xf]
  %v246 = vld [vmem:[%s1 + $0x37c] sm:$0xf]
  %v247 = vld [vmem:[%s1 + $0x380] sm:$0xf]
  %v248 = vld [vmem:[%s1 + $0x384] sm:$0xf]
  %v249 = vld [vmem:[%s1 + $0x388] sm:$0xf]
  %v250 = vld [vmem:[%s1 + $0x38c] sm:$0xf]
  %v251 = vld [vmem:[%s1 + $0x390] sm:$0xf]
  %v252 = vld [vmem:[%s1 + $0x394] sm:$0xf]
  %v253 = vld [vmem:[%s1 + $0x398] sm:$0xf]
  %v254 = vld [vmem:[%s1 + $0x39c] sm:$0xf]
  %v255 = vld [vmem:[%s1 + $0x3a0] sm:$0xf]
  %v256 = vld [vmem:[%s1 + $0x3a4] sm:$0xf]
  %v257 = vld [vmem:[%s1 + $0x3a8] sm:$0xf]
  %v258 = vld [vmem:[%s1 + $0x3ac] sm:$0xf]
  %v259 = vld [vmem:[%s1 + $0x3b0] sm:$0xf]
  %v260 = vld [vmem:[%s1 + $0x3b4] sm:$0xf]
  %v261 = vld [vmem:[%s1 + $0x3b8] sm:$0xf]
  %v262 = vld [vmem:[%s1 + $0x3bc] sm:$0xf]
  %v263 = vld [vmem:[%s1 + $0x3c0] sm:$0xf]
  %v264 = vld [vmem:[%s1 + $0x3c4] sm:$0xf]
  %v265 = vld [vmem:[%s1 + $0x3c8] sm:$0xf]
  %v266 = vld [vmem:[%s1 + $0x3cc] sm:$0xf]
  %v267 = vld [vmem:[%s1 + $0x3d0] sm:$0xf]
  %v268 = vld [vmem:[%s1 + $0x3d4] sm:$0xf]
  %v269 = vld [vmem:[%s1 + $0x3d8] sm:$0xf]
  %v270 = vld [vmem:[%s1 + $0x3dc] sm:$0xf]
  %v271 = vld [vmem:[%s1 + $0x3e0] sm:$0xf]
  %v272 = vld [vmem:[%s1 + $0x3e4] sm:$0xf]
  %v273 = vld [vmem:[%s1 + $0x3e8] sm:$0xf]
  %v274 = vld [vmem:[%s1 + $0x3ec] sm:$0xf]
  %v275 = vld [vmem:[%s1 + $0x3f0] sm:$0xf]
  %v276 = vld [vmem:[%s1 + $0x3f4] sm:$0xf]
  %v277 = vld [vmem:[%s1 + $0x3f8] sm:$0xf]
  %v278 = vld [vmem:[%s1 + $0x3fc] sm:$0xf]
  %v279 = vld [vmem:[%s2] sm:$0x1]
  %v281 = vlaneseq
  %v282 = vshrl.u32 %v281, 7
  %v283 = vsub.s32 0, %v282
  %v284 = vrot.slane %v279, %v283
  %v294 = vunpack.c.l.b16 %v15
  %v295 = vunpack.c.h.b16 %v15
  %v296 = vunpack.c.l.b16 %v16
  %v297 = vunpack.c.h.b16 %v16
  %v298 = vunpack.c.l.b16 %v17
  %v299 = vunpack.c.h.b16 %v17
  %v300 = vunpack.c.l.b16 %v18
  %v301 = vunpack.c.h.b16 %v18
  %v302 = vunpack.c.l.b16 %v19
  %v303 = vunpack.c.h.b16 %v19
  %v304 = vunpack.c.l.b16 %v20
  %v305 = vunpack.c.h.b16 %v20
  %v306 = vunpack.c.l.b16 %v21
  %v307 = vunpack.c.h.b16 %v21
  %v308 = vunpack.c.l.b16 %v22
  %v309 = vunpack.c.h.b16 %v22
  %v310 = vpack.c.b16 %v294, %v294
  %v311 = vpack.c.b16 %v295, %v295
  %v312 = vpack.c.b16 %v296, %v296
  %v313 = vpack.c.b16 %v297, %v297
  %v314 = vpack.c.b16 %v298, %v298
  %v315 = vpack.c.b16 %v299, %v299
  %v316 = vpack.c.b16 %v300, %v300
  %v317 = vpack.c.b16 %v301, %v301
  %v318 = vpack.c.b16 %v302, %v302
  %v319 = vpack.c.b16 %v303, %v303
  %v320 = vpack.c.b16 %v304, %v304
  %v321 = vpack.c.b16 %v305, %v305
  %v322 = vpack.c.b16 %v306, %v306
  %v323 = vpack.c.b16 %v307, %v307
  %v324 = vpack.c.b16 %v308, %v308
  %v325 = vpack.c.b16 %v309, %v309
  %v598 = vunpack.c.l.b16 %v23
  %v599 = vunpack.c.l.b16 %v24
  %v600 = vunpack.c.l.b16 %v25
  %v601 = vunpack.c.l.b16 %v26
  %v602 = vunpack.c.l.b16 %v27
  %v603 = vunpack.c.l.b16 %v28
  %v604 = vunpack.c.l.b16 %v29
  %v605 = vunpack.c.l.b16 %v30
  %v606 = vunpack.c.l.b16 %v31
  %v607 = vunpack.c.l.b16 %v32
  %v608 = vunpack.c.l.b16 %v33
  %v609 = vunpack.c.l.b16 %v34
  %v610 = vunpack.c.l.b16 %v35
  %v611 = vunpack.c.l.b16 %v36
  %v612 = vunpack.c.l.b16 %v37
  %v613 = vunpack.c.l.b16 %v38
  %v614 = vunpack.c.l.b16 %v39
  %v615 = vunpack.c.l.b16 %v40
  %v616 = vunpack.c.l.b16 %v41
  %v617 = vunpack.c.l.b16 %v42
  %v618 = vunpack.c.l.b16 %v43
  %v619 = vunpack.c.l.b16 %v44
  %v620 = vunpack.c.l.b16 %v45
  %v621 = vunpack.c.l.b16 %v46
  %v622 = vunpack.c.l.b16 %v47
  %v623 = vunpack.c.l.b16 %v48
  %v624 = vunpack.c.l.b16 %v49
  %v625 = vunpack.c.l.b16 %v50
  %v626 = vunpack.c.l.b16 %v51
  %v627 = vunpack.c.l.b16 %v52
  %v628 = vunpack.c.l.b16 %v53
  %v629 = vunpack.c.l.b16 %v54
  %v630 = vunpack.c.l.b16 %v55
  %v631 = vunpack.c.l.b16 %v56
  %v632 = vunpack.c.l.b16 %v57
  %v633 = vunpack.c.l.b16 %v58
  %v634 = vunpack.c.l.b16 %v59
  %v635 = vunpack.c.l.b16 %v60
  %v636 = vunpack.c.l.b16 %v61
  %v637 = vunpack.c.l.b16 %v62
  %v638 = vunpack.c.l.b16 %v63
  %v639 = vunpack.c.l.b16 %v64
  %v640 = vunpack.c.l.b16 %v65
  %v641 = vunpack.c.l.b16 %v66
  %v642 = vunpack.c.l.b16 %v67
  %v643 = vunpack.c.l.b16 %v68
  %v644 = vunpack.c.l.b16 %v69
  %v645 = vunpack.c.l.b16 %v70
  %v646 = vunpack.c.l.b16 %v71
  %v647 = vunpack.c.l.b16 %v72
  %v648 = vunpack.c.l.b16 %v73
  %v649 = vunpack.c.l.b16 %v74
  %v650 = vunpack.c.l.b16 %v75
  %v651 = vunpack.c.l.b16 %v76
  %v652 = vunpack.c.l.b16 %v77
  %v653 = vunpack.c.l.b16 %v78
  %v654 = vunpack.c.l.b16 %v79
  %v655 = vunpack.c.l.b16 %v80
  %v656 = vunpack.c.l.b16 %v81
  %v657 = vunpack.c.l.b16 %v82
  %v658 = vunpack.c.l.b16 %v83
  %v659 = vunpack.c.l.b16 %v84
  %v660 = vunpack.c.l.b16 %v85
  %v661 = vunpack.c.l.b16 %v86
  %v662 = vunpack.c.l.b16 %v87
  %v663 = vunpack.c.l.b16 %v88
  %v664 = vunpack.c.l.b16 %v89
  %v665 = vunpack.c.l.b16 %v90
  %v666 = vunpack.c.l.b16 %v91
  %v667 = vunpack.c.l.b16 %v92
  %v668 = vunpack.c.l.b16 %v93
  %v669 = vunpack.c.l.b16 %v94
  %v670 = vunpack.c.l.b16 %v95
  %v671 = vunpack.c.l.b16 %v96
  %v672 = vunpack.c.l.b16 %v97
  %v673 = vunpack.c.l.b16 %v98
  %v674 = vunpack.c.l.b16 %v99
  %v675 = vunpack.c.l.b16 %v100
  %v676 = vunpack.c.l.b16 %v101
  %v677 = vunpack.c.l.b16 %v102
  %v678 = vunpack.c.l.b16 %v103
  %v679 = vunpack.c.l.b16 %v104
  %v680 = vunpack.c.l.b16 %v105
  %v681 = vunpack.c.l.b16 %v106
  %v682 = vunpack.c.l.b16 %v107
  %v683 = vunpack.c.l.b16 %v108
  %v684 = vunpack.c.l.b16 %v109
  %v685 = vunpack.c.l.b16 %v110
  %v686 = vunpack.c.l.b16 %v111
  %v687 = vunpack.c.l.b16 %v112
  %v688 = vunpack.c.l.b16 %v113
  %v689 = vunpack.c.l.b16 %v114
  %v690 = vunpack.c.l.b16 %v115
  %v691 = vunpack.c.l.b16 %v116
  %v692 = vunpack.c.l.b16 %v117
  %v693 = vunpack.c.l.b16 %v118
  %v694 = vunpack.c.l.b16 %v119
  %v695 = vunpack.c.l.b16 %v120
  %v696 = vunpack.c.l.b16 %v121
  %v697 = vunpack.c.l.b16 %v122
  %v698 = vunpack.c.l.b16 %v123
  %v699 = vunpack.c.l.b16 %v124
  %v700 = vunpack.c.l.b16 %v125
  %v701 = vunpack.c.l.b16 %v126
  %v702 = vunpack.c.l.b16 %v127
  %v703 = vunpack.c.l.b16 %v128
  %v704 = vunpack.c.l.b16 %v129
  %v705 = vunpack.c.l.b16 %v130
  %v706 = vunpack.c.l.b16 %v131
  %v707 = vunpack.c.l.b16 %v132
  %v708 = vunpack.c.l.b16 %v133
  %v709 = vunpack.c.l.b16 %v134
  %v710 = vunpack.c.l.b16 %v135
  %v711 = vunpack.c.l.b16 %v136
  %v712 = vunpack.c.l.b16 %v137
  %v713 = vunpack.c.l.b16 %v138
  %v714 = vunpack.c.l.b16 %v139
  %v715 = vunpack.c.l.b16 %v140
  %v716 = vunpack.c.l.b16 %v141
  %v717 = vunpack.c.l.b16 %v142
  %v718 = vunpack.c.l.b16 %v143
  %v719 = vunpack.c.l.b16 %v144
  %v720 = vunpack.c.l.b16 %v145
  %v721 = vunpack.c.l.b16 %v146
  %v722 = vunpack.c.l.b16 %v147
  %v723 = vunpack.c.l.b16 %v148
  %v724 = vunpack.c.l.b16 %v149
  %v725 = vunpack.c.l.b16 %v150
  %v726 = vunpack.c.l.b16 %v151
  %v727 = vunpack.c.l.b16 %v152
  %v728 = vunpack.c.l.b16 %v153
  %v729 = vunpack.c.l.b16 %v154
  %v730 = vunpack.c.l.b16 %v155
  %v731 = vunpack.c.l.b16 %v156
  %v732 = vunpack.c.l.b16 %v157
  %v733 = vunpack.c.l.b16 %v158
  %v734 = vunpack.c.l.b16 %v159
  %v735 = vunpack.c.l.b16 %v160
  %v736 = vunpack.c.l.b16 %v161
  %v737 = vunpack.c.l.b16 %v162
  %v738 = vunpack.c.l.b16 %v163
  %v739 = vunpack.c.l.b16 %v164
  %v740 = vunpack.c.l.b16 %v165
  %v741 = vunpack.c.l.b16 %v166
  %v742 = vunpack.c.l.b16 %v167
  %v743 = vunpack.c.l.b16 %v168
  %v744 = vunpack.c.l.b16 %v169
  %v745 = vunpack.c.l.b16 %v170
  %v746 = vunpack.c.l.b16 %v171
  %v747 = vunpack.c.l.b16 %v172
  %v748 = vunpack.c.l.b16 %v173
  %v749 = vunpack.c.l.b16 %v174
  %v750 = vunpack.c.l.b16 %v175
  %v751 = vunpack.c.l.b16 %v176
  %v752 = vunpack.c.l.b16 %v177
  %v753 = vunpack.c.l.b16 %v178
  %v754 = vunpack.c.l.b16 %v179
  %v755 = vunpack.c.l.b16 %v180
  %v756 = vunpack.c.l.b16 %v181
  %v757 = vunpack.c.l.b16 %v182
  %v758 = vunpack.c.l.b16 %v183
  %v759 = vunpack.c.l.b16 %v184
  %v760 = vunpack.c.l.b16 %v185
  %v761 = vunpack.c.l.b16 %v186
  %v762 = vunpack.c.l.b16 %v187
  %v763 = vunpack.c.l.b16 %v188
  %v764 = vunpack.c.l.b16 %v189
  %v765 = vunpack.c.l.b16 %v190
  %v766 = vunpack.c.l.b16 %v191
  %v767 = vunpack.c.l.b16 %v192
  %v768 = vunpack.c.l.b16 %v193
  %v769 = vunpack.c.l.b16 %v194
  %v770 = vunpack.c.l.b16 %v195
  %v771 = vunpack.c.l.b16 %v196
  %v772 = vunpack.c.l.b16 %v197
  %v773 = vunpack.c.l.b16 %v198
  %v774 = vunpack.c.l.b16 %v199
  %v775 = vunpack.c.l.b16 %v200
  %v776 = vunpack.c.l.b16 %v201
  %v777 = vunpack.c.l.b16 %v202
  %v778 = vunpack.c.l.b16 %v203
  %v779 = vunpack.c.l.b16 %v204
  %v780 = vunpack.c.l.b16 %v205
  %v781 = vunpack.c.l.b16 %v206
  %v782 = vunpack.c.l.b16 %v207
  %v783 = vunpack.c.l.b16 %v208
  %v784 = vunpack.c.l.b16 %v209
  %v785 = vunpack.c.l.b16 %v210
  %v786 = vunpack.c.l.b16 %v211
  %v787 = vunpack.c.l.b16 %v212
  %v788 = vunpack.c.l.b16 %v213
  %v789 = vunpack.c.l.b16 %v214
  %v790 = vunpack.c.l.b16 %v215
  %v791 = vunpack.c.l.b16 %v216
  %v792 = vunpack.c.l.b16 %v217
  %v793 = vunpack.c.l.b16 %v218
  %v794 = vunpack.c.l.b16 %v219
  %v795 = vunpack.c.l.b16 %v220
  %v796 = vunpack.c.l.b16 %v221
  %v797 = vunpack.c.l.b16 %v222
  %v798 = vunpack.c.l.b16 %v223
  %v799 = vunpack.c.l.b16 %v224
  %v800 = vunpack.c.l.b16 %v225
  %v801 = vunpack.c.l.b16 %v226
  %v802 = vunpack.c.l.b16 %v227
  %v803 = vunpack.c.l.b16 %v228
  %v804 = vunpack.c.l.b16 %v229
  %v805 = vunpack.c.l.b16 %v230
  %v806 = vunpack.c.l.b16 %v231
  %v807 = vunpack.c.l.b16 %v232
  %v808 = vunpack.c.l.b16 %v233
  %v809 = vunpack.c.l.b16 %v234
  %v810 = vunpack.c.l.b16 %v235
  %v811 = vunpack.c.l.b16 %v236
  %v812 = vunpack.c.l.b16 %v237
  %v813 = vunpack.c.l.b16 %v238
  %v814 = vunpack.c.l.b16 %v239
  %v815 = vunpack.c.l.b16 %v240
  %v816 = vunpack.c.l.b16 %v241
  %v817 = vunpack.c.l.b16 %v242
  %v818 = vunpack.c.l.b16 %v243
  %v819 = vunpack.c.l.b16 %v244
  %v820 = vunpack.c.l.b16 %v245
  %v821 = vunpack.c.l.b16 %v246
  %v822 = vunpack.c.l.b16 %v247
  %v823 = vunpack.c.l.b16 %v248
  %v824 = vunpack.c.l.b16 %v249
  %v825 = vunpack.c.l.b16 %v250
  %v826 = vunpack.c.l.b16 %v251
  %v827 = vunpack.c.l.b16 %v252
  %v828 = vunpack.c.l.b16 %v253
  %v829 = vunpack.c.l.b16 %v254
  %v830 = vunpack.c.l.b16 %v255
  %v831 = vunpack.c.l.b16 %v256
  %v832 = vunpack.c.l.b16 %v257
  %v833 = vunpack.c.l.b16 %v258
  %v834 = vunpack.c.l.b16 %v259
  %v835 = vunpack.c.l.b16 %v260
  %v836 = vunpack.c.l.b16 %v261
  %v837 = vunpack.c.l.b16 %v262
  %v838 = vunpack.c.l.b16 %v263
  %v839 = vunpack.c.l.b16 %v264
  %v840 = vunpack.c.l.b16 %v265
  %v841 = vunpack.c.l.b16 %v266
  %v842 = vunpack.c.l.b16 %v267
  %v843 = vunpack.c.l.b16 %v268
  %v844 = vunpack.c.l.b16 %v269
  %v845 = vunpack.c.l.b16 %v270
  %v846 = vunpack.c.l.b16 %v271
  %v847 = vunpack.c.l.b16 %v272
  %v848 = vunpack.c.l.b16 %v273
  %v849 = vunpack.c.l.b16 %v274
  %v850 = vunpack.c.l.b16 %v275
  %v851 = vunpack.c.l.b16 %v276
  %v852 = vunpack.c.l.b16 %v277
  %v853 = vunpack.c.l.b16 %v278
  %v854 = vpack.c.b16 %v599, %v598
  %v855 = vpack.c.b16 %v601, %v600
  %v856 = vpack.c.b16 %v603, %v602
  %v857 = vpack.c.b16 %v605, %v604
  %v858 = vpack.c.b16 %v607, %v606
  %v859 = vpack.c.b16 %v609, %v608
  %v860 = vpack.c.b16 %v611, %v610
  %v861 = vpack.c.b16 %v613, %v612
  %v862 = vpack.c.b16 %v615, %v614
  %v863 = vpack.c.b16 %v617, %v616
  %v864 = vpack.c.b16 %v619, %v618
  %v865 = vpack.c.b16 %v621, %v620
  %v866 = vpack.c.b16 %v623, %v622
  %v867 = vpack.c.b16 %v625, %v624
  %v868 = vpack.c.b16 %v627, %v626
  %v869 = vpack.c.b16 %v629, %v628
  %v870 = vpack.c.b16 %v631, %v630
  %v871 = vpack.c.b16 %v633, %v632
  %v872 = vpack.c.b16 %v635, %v634
  %v873 = vpack.c.b16 %v637, %v636
  %v874 = vpack.c.b16 %v639, %v638
  %v875 = vpack.c.b16 %v641, %v640
  %v876 = vpack.c.b16 %v643, %v642
  %v877 = vpack.c.b16 %v645, %v644
  %v878 = vpack.c.b16 %v647, %v646
  %v879 = vpack.c.b16 %v649, %v648
  %v880 = vpack.c.b16 %v651, %v650
  %v881 = vpack.c.b16 %v653, %v652
  %v882 = vpack.c.b16 %v655, %v654
  %v883 = vpack.c.b16 %v657, %v656
  %v884 = vpack.c.b16 %v659, %v658
  %v885 = vpack.c.b16 %v661, %v660
  %v886 = vpack.c.b16 %v663, %v662
  %v887 = vpack.c.b16 %v665, %v664
  %v888 = vpack.c.b16 %v667, %v666
  %v889 = vpack.c.b16 %v669, %v668
  %v890 = vpack.c.b16 %v671, %v670
  %v891 = vpack.c.b16 %v673, %v672
  %v892 = vpack.c.b16 %v675, %v674
  %v893 = vpack.c.b16 %v677, %v676
  %v894 = vpack.c.b16 %v679, %v678
  %v895 = vpack.c.b16 %v681, %v680
  %v896 = vpack.c.b16 %v683, %v682
  %v897 = vpack.c.b16 %v685, %v684
  %v898 = vpack.c.b16 %v687, %v686
  %v899 = vpack.c.b16 %v689, %v688
  %v900 = vpack.c.b16 %v691, %v690
  %v901 = vpack.c.b16 %v693, %v692
  %v902 = vpack.c.b16 %v695, %v694
  %v903 = vpack.c.b16 %v697, %v696
  %v904 = vpack.c.b16 %v699, %v698
  %v905 = vpack.c.b16 %v701, %v700
  %v906 = vpack.c.b16 %v703, %v702
  %v907 = vpack.c.b16 %v705, %v704
  %v908 = vpack.c.b16 %v707, %v706
  %v909 = vpack.c.b16 %v709, %v708
  %v910 = vpack.c.b16 %v711, %v710
  %v911 = vpack.c.b16 %v713, %v712
  %v912 = vpack.c.b16 %v715, %v714
  %v913 = vpack.c.b16 %v717, %v716
  %v914 = vpack.c.b16 %v719, %v718
  %v915 = vpack.c.b16 %v721, %v720
  %v916 = vpack.c.b16 %v723, %v722
  %v917 = vpack.c.b16 %v725, %v724
  %v918 = vpack.c.b16 %v727, %v726
  %v919 = vpack.c.b16 %v729, %v728
  %v920 = vpack.c.b16 %v731, %v730
  %v921 = vpack.c.b16 %v733, %v732
  %v922 = vpack.c.b16 %v735, %v734
  %v923 = vpack.c.b16 %v737, %v736
  %v924 = vpack.c.b16 %v739, %v738
  %v925 = vpack.c.b16 %v741, %v740
  %v926 = vpack.c.b16 %v743, %v742
  %v927 = vpack.c.b16 %v745, %v744
  %v928 = vpack.c.b16 %v747, %v746
  %v929 = vpack.c.b16 %v749, %v748
  %v930 = vpack.c.b16 %v751, %v750
  %v931 = vpack.c.b16 %v753, %v752
  %v932 = vpack.c.b16 %v755, %v754
  %v933 = vpack.c.b16 %v757, %v756
  %v934 = vpack.c.b16 %v759, %v758
  %v935 = vpack.c.b16 %v761, %v760
  %v936 = vpack.c.b16 %v763, %v762
  %v937 = vpack.c.b16 %v765, %v764
  %v938 = vpack.c.b16 %v767, %v766
  %v939 = vpack.c.b16 %v769, %v768
  %v940 = vpack.c.b16 %v771, %v770
  %v941 = vpack.c.b16 %v773, %v772
  %v942 = vpack.c.b16 %v775, %v774
  %v943 = vpack.c.b16 %v777, %v776
  %v944 = vpack.c.b16 %v779, %v778
  %v945 = vpack.c.b16 %v781, %v780
  %v946 = vpack.c.b16 %v783, %v782
  %v947 = vpack.c.b16 %v785, %v784
  %v948 = vpack.c.b16 %v787, %v786
  %v949 = vpack.c.b16 %v789, %v788
  %v950 = vpack.c.b16 %v791, %v790
  %v951 = vpack.c.b16 %v793, %v792
  %v952 = vpack.c.b16 %v795, %v794
  %v953 = vpack.c.b16 %v797, %v796
  %v954 = vpack.c.b16 %v799, %v798
  %v955 = vpack.c.b16 %v801, %v800
  %v956 = vpack.c.b16 %v803, %v802
  %v957 = vpack.c.b16 %v805, %v804
  %v958 = vpack.c.b16 %v807, %v806
  %v959 = vpack.c.b16 %v809, %v808
  %v960 = vpack.c.b16 %v811, %v810
  %v961 = vpack.c.b16 %v813, %v812
  %v962 = vpack.c.b16 %v815, %v814
  %v963 = vpack.c.b16 %v817, %v816
  %v964 = vpack.c.b16 %v819, %v818
  %v965 = vpack.c.b16 %v821, %v820
  %v966 = vpack.c.b16 %v823, %v822
  %v967 = vpack.c.b16 %v825, %v824
  %v968 = vpack.c.b16 %v827, %v826
  %v969 = vpack.c.b16 %v829, %v828
  %v970 = vpack.c.b16 %v831, %v830
  %v971 = vpack.c.b16 %v833, %v832
  %v972 = vpack.c.b16 %v835, %v834
  %v973 = vpack.c.b16 %v837, %v836
  %v974 = vpack.c.b16 %v839, %v838
  %v975 = vpack.c.b16 %v841, %v840
  %v976 = vpack.c.b16 %v843, %v842
  %v977 = vpack.c.b16 %v845, %v844
  %v978 = vpack.c.b16 %v847, %v846
  %v979 = vpack.c.b16 %v849, %v848
  %v980 = vpack.c.b16 %v851, %v850
  %v981 = vpack.c.b16 %v853, %v852
  %1110 = vmatprep.subr.bf16.mxu0 0
  %1111 = vmatpush1.bf16.msra.mxu0 %v854
  %1112 = vmatprep.subr.bf16.mxu0 0
  %1113 = vmatpush1.bf16.msra.mxu0 %v855
  %1114 = vmatprep.subr.bf16.mxu0 0
  %1115 = vmatpush1.bf16.msra.mxu0 %v856
  %1116 = vmatprep.subr.bf16.mxu0 0
  %1117 = vmatpush1.bf16.msra.mxu0 %v857
  %1118 = vmatprep.subr.bf16.mxu0 0
  %1119 = vmatpush1.bf16.msra.mxu0 %v858
  %1120 = vmatprep.subr.bf16.mxu0 0
  %1121 = vmatpush1.bf16.msra.mxu0 %v859
  %1122 = vmatprep.subr.bf16.mxu0 0
  %1123 = vmatpush1.bf16.msra.mxu0 %v860
  %1124 = vmatprep.subr.bf16.mxu0 0
  %1125 = vmatpush1.bf16.msra.mxu0 %v861
  %1126 = vmatprep.subr.bf16.mxu0 0
  %1127 = vmatpush1.bf16.msra.mxu0 %v862
  %1128 = vmatprep.subr.bf16.mxu0 0
  %1129 = vmatpush1.bf16.msra.mxu0 %v863
  %1130 = vmatprep.subr.bf16.mxu0 0
  %1131 = vmatpush1.bf16.msra.mxu0 %v864
  %1132 = vmatprep.subr.bf16.mxu0 0
  %1133 = vmatpush1.bf16.msra.mxu0 %v865
  %1134 = vmatprep.subr.bf16.mxu0 0
  %1135 = vmatpush1.bf16.msra.mxu0 %v866
  %1136 = vmatprep.subr.bf16.mxu0 0
  %1137 = vmatpush1.bf16.msra.mxu0 %v867
  %1138 = vmatprep.subr.bf16.mxu0 0
  %1139 = vmatpush1.bf16.msra.mxu0 %v868
  %1140 = vmatprep.subr.bf16.mxu0 0
  %1141 = vmatpush1.bf16.msra.mxu0 %v869
  %1142 = vmatprep.mubr.bf16.mxu0 %v311
  %1143 = vmatmul.mubr.bf16.gmra.mrb[0].mxu0 %v310
  %v1144 = vpop.f32.mrb[0].mxu0
  %v1145 = vadd.f32 %v284, %v1144
  %v1146 = vpop.f32.mrb[0].mxu0
  %v1147 = vpop.f32.mrb[0].mxu0
  %v1148 = vpop.f32.mrb[0].mxu0
  %1149 = vdwg.mxu0
  %1150 = vmatprep.subr.bf16.mxu0 0
  %1151 = vmatpush1.bf16.msra.mxu0 %v870
  %1152 = vmatprep.subr.bf16.mxu0 0
  %1153 = vmatpush1.bf16.msra.mxu0 %v871
  %1154 = vmatprep.subr.bf16.mxu0 0
  %1155 = vmatpush1.bf16.msra.mxu0 %v872
  %1156 = vmatprep.subr.bf16.mxu0 0
  %1157 = vmatpush1.bf16.msra.mxu0 %v873
  %1158 = vmatprep.subr.bf16.mxu0 0
  %1159 = vmatpush1.bf16.msra.mxu0 %v874
  %1160 = vmatprep.subr.bf16.mxu0 0
  %1161 = vmatpush1.bf16.msra.mxu0 %v875
  %1162 = vmatprep.subr.bf16.mxu0 0
  %1163 = vmatpush1.bf16.msra.mxu0 %v876
  %1164 = vmatprep.subr.bf16.mxu0 0
  %1165 = vmatpush1.bf16.msra.mxu0 %v877
  %1166 = vmatprep.subr.bf16.mxu0 0
  %1167 = vmatpush1.bf16.msra.mxu0 %v878
  %1168 = vmatprep.subr.bf16.mxu0 0
  %1169 = vmatpush1.bf16.msra.mxu0 %v879
  %1170 = vmatprep.subr.bf16.mxu0 0
  %1171 = vmatpush1.bf16.msra.mxu0 %v880
  %1172 = vmatprep.subr.bf16.mxu0 0
  %1173 = vmatpush1.bf16.msra.mxu0 %v881
  %1174 = vmatprep.subr.bf16.mxu0 0
  %1175 = vmatpush1.bf16.msra.mxu0 %v882
  %1176 = vmatprep.subr.bf16.mxu0 0
  %1177 = vmatpush1.bf16.msra.mxu0 %v883
  %1178 = vmatprep.subr.bf16.mxu0 0
  %1179 = vmatpush1.bf16.msra.mxu0 %v884
  %1180 = vmatprep.subr.bf16.mxu0 0
  %1181 = vmatpush1.bf16.msra.mxu0 %v885
  %1182 = vmatprep.mubr.bf16.mxu0 %v313
  %1183 = vmatmul.mubr.bf16.gmra.mrb[0].mxu0 %v312
  %v1184 = vpop.f32.mrb[0].mxu0
  %v1185 = vadd.f32 %v1145, %v1184
  %v1186 = vpop.f32.mrb[0].mxu0
  %v1187 = vpop.f32.mrb[0].mxu0
  %v1188 = vpop.f32.mrb[0].mxu0
  %1189 = vdwg.mxu0
  %1190 = vmatprep.subr.bf16.mxu0 0
  %1191 = vmatpush1.bf16.msra.mxu0 %v886
  %1192 = vmatprep.subr.bf16.mxu0 0
  %1193 = vmatpush1.bf16.msra.mxu0 %v887
  %1194 = vmatprep.subr.bf16.mxu0 0
  %1195 = vmatpush1.bf16.msra.mxu0 %v888
  %1196 = vmatprep.subr.bf16.mxu0 0
  %1197 = vmatpush1.bf16.msra.mxu0 %v889
  %1198 = vmatprep.subr.bf16.mxu0 0
  %1199 = vmatpush1.bf16.msra.mxu0 %v890
  %1200 = vmatprep.subr.bf16.mxu0 0
  %1201 = vmatpush1.bf16.msra.mxu0 %v891
  %1202 = vmatprep.subr.bf16.mxu0 0
  %1203 = vmatpush1.bf16.msra.mxu0 %v892
  %1204 = vmatprep.subr.bf16.mxu0 0
  %1205 = vmatpush1.bf16.msra.mxu0 %v893
  %1206 = vmatprep.subr.bf16.mxu0 0
  %1207 = vmatpush1.bf16.msra.mxu0 %v894
  %1208 = vmatprep.subr.bf16.mxu0 0
  %1209 = vmatpush1.bf16.msra.mxu0 %v895
  %1210 = vmatprep.subr.bf16.mxu0 0
  %1211 = vmatpush1.bf16.msra.mxu0 %v896
  %1212 = vmatprep.subr.bf16.mxu0 0
  %1213 = vmatpush1.bf16.msra.mxu0 %v897
  %1214 = vmatprep.subr.bf16.mxu0 0
  %1215 = vmatpush1.bf16.msra.mxu0 %v898
  %1216 = vmatprep.subr.bf16.mxu0 0
  %1217 = vmatpush1.bf16.msra.mxu0 %v899
  %1218 = vmatprep.subr.bf16.mxu0 0
  %1219 = vmatpush1.bf16.msra.mxu0 %v900
  %1220 = vmatprep.subr.bf16.mxu0 0
  %1221 = vmatpush1.bf16.msra.mxu0 %v901
  %1222 = vmatprep.mubr.bf16.mxu0 %v315
  %1223 = vmatmul.mubr.bf16.gmra.mrb[0].mxu0 %v314
  %v1224 = vpop.f32.mrb[0].mxu0
  %v1225 = vadd.f32 %v1185, %v1224
  %v1226 = vpop.f32.mrb[0].mxu0
  %v1227 = vpop.f32.mrb[0].mxu0
  %v1228 = vpop.f32.mrb[0].mxu0
  %1229 = vdwg.mxu0
  %1230 = vmatprep.subr.bf16.mxu0 0
  %1231 = vmatpush1.bf16.msra.mxu0 %v902
  %1232 = vmatprep.subr.bf16.mxu0 0
  %1233 = vmatpush1.bf16.msra.mxu0 %v903
  %1234 = vmatprep.subr.bf16.mxu0 0
  %1235 = vmatpush1.bf16.msra.mxu0 %v904
  %1236 = vmatprep.subr.bf16.mxu0 0
  %1237 = vmatpush1.bf16.msra.mxu0 %v905
  %1238 = vmatprep.subr.bf16.mxu0 0
  %1239 = vmatpush1.bf16.msra.mxu0 %v906
  %1240 = vmatprep.subr.bf16.mxu0 0
  %1241 = vmatpush1.bf16.msra.mxu0 %v907
  %1242 = vmatprep.subr.bf16.mxu0 0
  %1243 = vmatpush1.bf16.msra.mxu0 %v908
  %1244 = vmatprep.subr.bf16.mxu0 0
  %1245 = vmatpush1.bf16.msra.mxu0 %v909
  %1246 = vmatprep.subr.bf16.mxu0 0
  %1247 = vmatpush1.bf16.msra.mxu0 %v910
  %1248 = vmatprep.subr.bf16.mxu0 0
  %1249 = vmatpush1.bf16.msra.mxu0 %v911
  %1250 = vmatprep.subr.bf16.mxu0 0
  %1251 = vmatpush1.bf16.msra.mxu0 %v912
  %1252 = vmatprep.subr.bf16.mxu0 0
  %1253 = vmatpush1.bf16.msra.mxu0 %v913
  %1254 = vmatprep.subr.bf16.mxu0 0
  %1255 = vmatpush1.bf16.msra.mxu0 %v914
  %1256 = vmatprep.subr.bf16.mxu0 0
  %1257 = vmatpush1.bf16.msra.mxu0 %v915
  %1258 = vmatprep.subr.bf16.mxu0 0
  %1259 = vmatpush1.bf16.msra.mxu0 %v916
  %1260 = vmatprep.subr.bf16.mxu0 0
  %1261 = vmatpush1.bf16.msra.mxu0 %v917
  %1262 = vmatprep.mubr.bf16.mxu0 %v317
  %1263 = vmatmul.mubr.bf16.gmra.mrb[0].mxu0 %v316
  %v1264 = vpop.f32.mrb[0].mxu0
  %v1265 = vadd.f32 %v1225, %v1264
  %v1266 = vpop.f32.mrb[0].mxu0
  %v1267 = vpop.f32.mrb[0].mxu0
  %v1268 = vpop.f32.mrb[0].mxu0
  %1269 = vdwg.mxu0
  %1270 = vmatprep.subr.bf16.mxu0 0
  %1271 = vmatpush1.bf16.msra.mxu0 %v918
  %1272 = vmatprep.subr.bf16.mxu0 0
  %1273 = vmatpush1.bf16.msra.mxu0 %v919
  %1274 = vmatprep.subr.bf16.mxu0 0
  %1275 = vmatpush1.bf16.msra.mxu0 %v920
  %1276 = vmatprep.subr.bf16.mxu0 0
  %1277 = vmatpush1.bf16.msra.mxu0 %v921
  %1278 = vmatprep.subr.bf16.mxu0 0
  %1279 = vmatpush1.bf16.msra.mxu0 %v922
  %1280 = vmatprep.subr.bf16.mxu0 0
  %1281 = vmatpush1.bf16.msra.mxu0 %v923
  %1282 = vmatprep.subr.bf16.mxu0 0
  %1283 = vmatpush1.bf16.msra.mxu0 %v924
  %1284 = vmatprep.subr.bf16.mxu0 0
  %1285 = vmatpush1.bf16.msra.mxu0 %v925
  %1286 = vmatprep.subr.bf16.mxu0 0
  %1287 = vmatpush1.bf16.msra.mxu0 %v926
  %1288 = vmatprep.subr.bf16.mxu0 0
  %1289 = vmatpush1.bf16.msra.mxu0 %v927
  %1290 = vmatprep.subr.bf16.mxu0 0
  %1291 = vmatpush1.bf16.msra.mxu0 %v928
  %1292 = vmatprep.subr.bf16.mxu0 0
  %1293 = vmatpush1.bf16.msra.mxu0 %v929
  %1294 = vmatprep.subr.bf16.mxu0 0
  %1295 = vmatpush1.bf16.msra.mxu0 %v930
  %1296 = vmatprep.subr.bf16.mxu0 0
  %1297 = vmatpush1.bf16.msra.mxu0 %v931
  %1298 = vmatprep.subr.bf16.mxu0 0
  %1299 = vmatpush1.bf16.msra.mxu0 %v932
  %1300 = vmatprep.subr.bf16.mxu0 0
  %1301 = vmatpush1.bf16.msra.mxu0 %v933
  %1302 = vmatprep.mubr.bf16.mxu0 %v319
  %1303 = vmatmul.mubr.bf16.gmra.mrb[0].mxu0 %v318
  %v1304 = vpop.f32.mrb[0].mxu0
  %v1305 = vadd.f32 %v1265, %v1304
  %v1306 = vpop.f32.mrb[0].mxu0
  %v1307 = vpop.f32.mrb[0].mxu0
  %v1308 = vpop.f32.mrb[0].mxu0
  %1309 = vdwg.mxu0
  %1310 = vmatprep.subr.bf16.mxu0 0
  %1311 = vmatpush1.bf16.msra.mxu0 %v934
  %1312 = vmatprep.subr.bf16.mxu0 0
  %1313 = vmatpush1.bf16.msra.mxu0 %v935
  %1314 = vmatprep.subr.bf16.mxu0 0
  %1315 = vmatpush1.bf16.msra.mxu0 %v936
  %1316 = vmatprep.subr.bf16.mxu0 0
  %1317 = vmatpush1.bf16.msra.mxu0 %v937
  %1318 = vmatprep.subr.bf16.mxu0 0
  %1319 = vmatpush1.bf16.msra.mxu0 %v938
  %1320 = vmatprep.subr.bf16.mxu0 0
  %1321 = vmatpush1.bf16.msra.mxu0 %v939
  %1322 = vmatprep.subr.bf16.mxu0 0
  %1323 = vmatpush1.bf16.msra.mxu0 %v940
  %1324 = vmatprep.subr.bf16.mxu0 0
  %1325 = vmatpush1.bf16.msra.mxu0 %v941
  %1326 = vmatprep.subr.bf16.mxu0 0
  %1327 = vmatpush1.bf16.msra.mxu0 %v942
  %1328 = vmatprep.subr.bf16.mxu0 0
  %1329 = vmatpush1.bf16.msra.mxu0 %v943
  %1330 = vmatprep.subr.bf16.mxu0 0
  %1331 = vmatpush1.bf16.msra.mxu0 %v944
  %1332 = vmatprep.subr.bf16.mxu0 0
  %1333 = vmatpush1.bf16.msra.mxu0 %v945
  %1334 = vmatprep.subr.bf16.mxu0 0
  %1335 = vmatpush1.bf16.msra.mxu0 %v946
  %1336 = vmatprep.subr.bf16.mxu0 0
  %1337 = vmatpush1.bf16.msra.mxu0 %v947
  %1338 = vmatprep.subr.bf16.mxu0 0
  %1339 = vmatpush1.bf16.msra.mxu0 %v948
  %1340 = vmatprep.subr.bf16.mxu0 0
  %1341 = vmatpush1.bf16.msra.mxu0 %v949
  %1342 = vmatprep.mubr.bf16.mxu0 %v321
  %1343 = vmatmul.mubr.bf16.gmra.mrb[0].mxu0 %v320
  %v1344 = vpop.f32.mrb[0].mxu0
  %v1345 = vadd.f32 %v1305, %v1344
  %v1346 = vpop.f32.mrb[0].mxu0
  %v1347 = vpop.f32.mrb[0].mxu0
  %v1348 = vpop.f32.mrb[0].mxu0
  %1349 = vdwg.mxu0
  %1350 = vmatprep.subr.bf16.mxu0 0
  %1351 = vmatpush1.bf16.msra.mxu0 %v950
  %1352 = vmatprep.subr.bf16.mxu0 0
  %1353 = vmatpush1.bf16.msra.mxu0 %v951
  %1354 = vmatprep.subr.bf16.mxu0 0
  %1355 = vmatpush1.bf16.msra.mxu0 %v952
  %1356 = vmatprep.subr.bf16.mxu0 0
  %1357 = vmatpush1.bf16.msra.mxu0 %v953
  %1358 = vmatprep.subr.bf16.mxu0 0
  %1359 = vmatpush1.bf16.msra.mxu0 %v954
  %1360 = vmatprep.subr.bf16.mxu0 0
  %1361 = vmatpush1.bf16.msra.mxu0 %v955
  %1362 = vmatprep.subr.bf16.mxu0 0
  %1363 = vmatpush1.bf16.msra.mxu0 %v956
  %1364 = vmatprep.subr.bf16.mxu0 0
  %1365 = vmatpush1.bf16.msra.mxu0 %v957
  %1366 = vmatprep.subr.bf16.mxu0 0
  %1367 = vmatpush1.bf16.msra.mxu0 %v958
  %1368 = vmatprep.subr.bf16.mxu0 0
  %1369 = vmatpush1.bf16.msra.mxu0 %v959
  %1370 = vmatprep.subr.bf16.mxu0 0
  %1371 = vmatpush1.bf16.msra.mxu0 %v960
  %1372 = vmatprep.subr.bf16.mxu0 0
  %1373 = vmatpush1.bf16.msra.mxu0 %v961
  %1374 = vmatprep.subr.bf16.mxu0 0
  %1375 = vmatpush1.bf16.msra.mxu0 %v962
  %1376 = vmatprep.subr.bf16.mxu0 0
  %1377 = vmatpush1.bf16.msra.mxu0 %v963
  %1378 = vmatprep.subr.bf16.mxu0 0
  %1379 = vmatpush1.bf16.msra.mxu0 %v964
  %1380 = vmatprep.subr.bf16.mxu0 0
  %1381 = vmatpush1.bf16.msra.mxu0 %v965
  %1382 = vmatprep.mubr.bf16.mxu0 %v323
  %1383 = vmatmul.mubr.bf16.gmra.mrb[0].mxu0 %v322
  %v1384 = vpop.f32.mrb[0].mxu0
  %v1385 = vadd.f32 %v1345, %v1384
  %v1386 = vpop.f32.mrb[0].mxu0
  %v1387 = vpop.f32.mrb[0].mxu0
  %v1388 = vpop.f32.mrb[0].mxu0
  %1389 = vdwg.mxu0
  %1390 = vmatprep.subr.bf16.mxu0 0
  %1391 = vmatpush1.bf16.msra.mxu0 %v966
  %1392 = vmatprep.subr.bf16.mxu0 0
  %1393 = vmatpush1.bf16.msra.mxu0 %v967
  %1394 = vmatprep.subr.bf16.mxu0 0
  %1395 = vmatpush1.bf16.msra.mxu0 %v968
  %1396 = vmatprep.subr.bf16.mxu0 0
  %1397 = vmatpush1.bf16.msra.mxu0 %v969
  %1398 = vmatprep.subr.bf16.mxu0 0
  %1399 = vmatpush1.bf16.msra.mxu0 %v970
  %1400 = vmatprep.subr.bf16.mxu0 0
  %1401 = vmatpush1.bf16.msra.mxu0 %v971
  %1402 = vmatprep.subr.bf16.mxu0 0
  %1403 = vmatpush1.bf16.msra.mxu0 %v972
  %1404 = vmatprep.subr.bf16.mxu0 0
  %1405 = vmatpush1.bf16.msra.mxu0 %v973
  %1406 = vmatprep.subr.bf16.mxu0 0
  %1407 = vmatpush1.bf16.msra.mxu0 %v974
  %1408 = vmatprep.subr.bf16.mxu0 0
  %1409 = vmatpush1.bf16.msra.mxu0 %v975
  %1410 = vmatprep.subr.bf16.mxu0 0
  %1411 = vmatpush1.bf16.msra.mxu0 %v976
  %1412 = vmatprep.subr.bf16.mxu0 0
  %1413 = vmatpush1.bf16.msra.mxu0 %v977
  %1414 = vmatprep.subr.bf16.mxu0 0
  %1415 = vmatpush1.bf16.msra.mxu0 %v978
  %1416 = vmatprep.subr.bf16.mxu0 0
  %1417 = vmatpush1.bf16.msra.mxu0 %v979
  %1418 = vmatprep.subr.bf16.mxu0 0
  %1419 = vmatpush1.bf16.msra.mxu0 %v980
  %1420 = vmatprep.subr.bf16.mxu0 0
  %1421 = vmatpush1.bf16.msra.mxu0 %v981
  %1422 = vmatprep.mubr.bf16.mxu0 %v325
  %1423 = vmatmul.mubr.bf16.gmra.mrb[0].mxu0 %v324
  %v1424 = vpop.f32.mrb[0].mxu0
  %v1425 = vadd.f32 %v1385, %v1424
  %v1426 = vpop.f32.mrb[0].mxu0
  %v1427 = vpop.f32.mrb[0].mxu0
  %v1428 = vpop.f32.mrb[0].mxu0
  %1429 = vdwg.mxu0
  %vm1430 = vcmp.ge.f32.partialorder %v1425, 0.0
  %v1431 = vmul.f32 %v1425, 0.01
  %v1432 = vsel %vm1430, %v1425, %v1431
  %v1433 = vpack.c.bf16 %v1432, %v1432
  %1434 = vst [vmem:[%s3] sm:$0xf] %v1433
  // Predicated region
  $region14: #{discriminator_forward.6} parent=0 // pred_check
    _
  $region15: #{discriminator_forward.6} parent=0 // pred_check_branch
    %1436 = sbr.rel (0) target = $region17
  $region16: #{discriminator_forward.6} parent=0 // pred_region
    _
  $region17: #{discriminator_forward.6} parent=0 // pred_fallthru
    _
  // Predicated region
  $region18: #{discriminator_forward.6} parent=0 // pred_check
    _
  $region19: #{discriminator_forward.6} parent=0 // pred_check_branch
    %1438 = sbr.rel (0) target = $region21
  $region20: #{discriminator_forward.6} parent=0 // pred_region
    _
  $region21: #{discriminator_forward.6} parent=0 // pred_fallthru
    _

// kernel: discriminator_forward.7
$region0: #{discriminator_forward.7}
  #allocation0 [shape = 'u32[]', space=smem, size = 0x4, offset = 0x4, fixed_abs, tag = 'smem constant byte address 0x4 - core index']
  #allocation1 [shape = 'u32[144,128]{1,0:T(1,128)}', space=vmem, size = 0x12000, scoped, tag = 'internal scratch']
  %s0 = inlined_call_operand.vmem [shape: bf16[8,1152], index: 0, kind: input, shape index: {}]
  %s1 = inlined_call_operand.vmem [shape: bf16[1152,128], index: 1, kind: input, shape index: {}]
  %s2 = inlined_call_operand.vmem [shape: bf16[2,512], index: 2, kind: input, shape index: {}]
  %s3 = inlined_call_operand.vmem [shape: bf16[512,128], index: 3, kind: input, shape index: {}]
  %s4 = inlined_call_operand.vmem [shape: f32[8,128], index: 4, kind: output, shape index: {0}]
  %s5 = inlined_call_operand.hbm [shape: f32[2,128], index: 5, kind: output, shape index: {1}]
  %6 = xla_tuple %s4, %s5
  %s7 = sld [smem:[#allocation0]]
  $region34: #{discriminator_forward.7} parent=0
    _
  %s9 = ssub.s32 1, %s7
  %s10 = scalar_select 0, %s9, %s7
  $region1: #{discriminator_forward.7} parent=0
    #allocation2 [shape = 'u8[1024]{0}', space=vmem, size = 0x400, scoped, tag = 'output window, operand 1, single buffered']
    #allocation3 [shape = 's32[1]{0}', space=sflag, size = 0x4, scoped, tag = 'scoped memory for discriminator_forward.7']
    %11 = vsyncpa [#allocation3], 0
    // Predicated region
    $region2: #{discriminator_forward.7} parent=1 // pred_check
      _
    $region3: #{discriminator_forward.7} parent=1 // pred_check_branch
      %13 = sbr.rel (0) target = $region5
    $region4: #{discriminator_forward.7} parent=1 // pred_region
      _
    $region5: #{discriminator_forward.7} parent=1 // pred_fallthru
      _
    // Predicated region
    $region6: #{discriminator_forward.7} parent=1 // pred_check
      _
    $region7: #{discriminator_forward.7} parent=1 // pred_check_branch
      %15 = sbr.rel (0) target = $region9
    $region8: #{discriminator_forward.7} parent=1 // pred_region
      _
    $region9: #{discriminator_forward.7} parent=1 // pred_fallthru
      _
    // Predicated region
    $region10: #{discriminator_forward.7} parent=1 // pred_check
      _
    $region11: #{discriminator_forward.7} parent=1 // pred_check_branch
      %17 = sbr.rel (0) target = $region13
    $region12: #{discriminator_forward.7} parent=1 // pred_region
      _
    $region13: #{discriminator_forward.7} parent=1 // pred_fallthru
      _
    // Predicated region
    $region14: #{discriminator_forward.7} parent=1 // pred_check
      _
    $region15: #{discriminator_forward.7} parent=1 // pred_check_branch
      %19 = sbr.rel (0) target = $region17
    $region16: #{discriminator_forward.7} parent=1 // pred_region
      _
    $region17: #{discriminator_forward.7} parent=1 // pred_fallthru
      _
    %v21 = vld [vmem:[%s0] sm:$0xff]
    %v22 = vld [vmem:[%s0 + $0x8] sm:$0xff]
    %v23 = vld [vmem:[%s0 + $0x10] sm:$0xff]
    %v24 = vld [vmem:[%s0 + $0x18] sm:$0xff]
    %v25 = vld [vmem:[%s0 + $0x20] sm:$0xf]
    %v26 = vld [vmem:[%s1] sm:$0xf]
    %v27 = vld [vmem:[%s1 + $0x4] sm:$0xf]
    %v28 = vld [vmem:[%s1 + $0x8] sm:$0xf]
    %v29 = vld [vmem:[%s1 + $0xc] sm:$0xf]
    %v30 = vld [vmem:[%s1 + $0x10] sm:$0xf]
    %v31 = vld [vmem:[%s1 + $0x14] sm:$0xf]
    %v32 = vld [vmem:[%s1 + $0x18] sm:$0xf]
    %v33 = vld [vmem:[%s1 + $0x1c] sm:$0xf]
    %v34 = vld [vmem:[%s1 + $0x20] sm:$0xf]
    %v35 = vld [vmem:[%s1 + $0x24] sm:$0xf]
    %v36 = vld [vmem:[%s1 + $0x28] sm:$0xf]
    %v37 = vld [vmem:[%s1 + $0x2c] sm:$0xf]
    %v38 = vld [vmem:[%s1 + $0x30] sm:$0xf]
    %v39 = vld [vmem:[%s1 + $0x34] sm:$0xf]
    %v40 = vld [vmem:[%s1 + $0x38] sm:$0xf]
    %v41 = vld [vmem:[%s1 + $0x3c] sm:$0xf]
    %v42 = vld [vmem:[%s1 + $0x40] sm:$0xf]
    %v43 = vld [vmem:[%s1 + $0x44] sm:$0xf]
    %v44 = vld [vmem:[%s1 + $0x48] sm:$0xf]
    %v45 = vld [vmem:[%s1 + $0x4c] sm:$0xf]
    %v46 = vld [vmem:[%s1 + $0x50] sm:$0xf]
    %v47 = vld [vmem:[%s1 + $0x54] sm:$0xf]
    %v48 = vld [vmem:[%s1 + $0x58] sm:$0xf]
    %v49 = vld [vmem:[%s1 + $0x5c] sm:$0xf]
    %v50 = vld [vmem:[%s1 + $0x60] sm:$0xf]
    %v51 = vld [vmem:[%s1 + $0x64] sm:$0xf]
    %v52 = vld [vmem:[%s1 + $0x68] sm:$0xf]
    %v53 = vld [vmem:[%s1 + $0x6c] sm:$0xf]
    %v54 = vld [vmem:[%s1 + $0x70] sm:$0xf]
    %v55 = vld [vmem:[%s1 + $0x74] sm:$0xf]
    %v56 = vld [vmem:[%s1 + $0x78] sm:$0xf]
    %v57 = vld [vmem:[%s1 + $0x7c] sm:$0xf]
    %v58 = vld [vmem:[%s1 + $0x80] sm:$0xf]
    %v59 = vld [vmem:[%s1 + $0x84] sm:$0xf]
    %v60 = vld [vmem:[%s1 + $0x88] sm:$0xf]
    %v61 = vld [vmem:[%s1 + $0x8c] sm:$0xf]
    %v62 = vld [vmem:[%s1 + $0x90] sm:$0xf]
    %v63 = vld [vmem:[%s1 + $0x94] sm:$0xf]
    %v64 = vld [vmem:[%s1 + $0x98] sm:$0xf]
    %v65 = vld [vmem:[%s1 + $0x9c] sm:$0xf]
    %v66 = vld [vmem:[%s1 + $0xa0] sm:$0xf]
    %v67 = vld [vmem:[%s1 + $0xa4] sm:$0xf]
    %v68 = vld [vmem:[%s1 + $0xa8] sm:$0xf]
    %v69 = vld [vmem:[%s1 + $0xac] sm:$0xf]
    %v70 = vld [vmem:[%s1 + $0xb0] sm:$0xf]
    %v71 = vld [vmem:[%s1 + $0xb4] sm:$0xf]
    %v72 = vld [vmem:[%s1 + $0xb8] sm:$0xf]
    %v73 = vld [vmem:[%s1 + $0xbc] sm:$0xf]
    %v74 = vld [vmem:[%s1 + $0xc0] sm:$0xf]
    %v75 = vld [vmem:[%s1 + $0xc4] sm:$0xf]
    %v76 = vld [vmem:[%s1 + $0xc8] sm:$0xf]
    %v77 = vld [vmem:[%s1 + $0xcc] sm:$0xf]
    %v78 = vld [vmem:[%s1 + $0xd0] sm:$0xf]
    %v79 = vld [vmem:[%s1 + $0xd4] sm:$0xf]
    %v80 = vld [vmem:[%s1 + $0xd8] sm:$0xf]
    %v81 = vld [vmem:[%s1 + $0xdc] sm:$0xf]
    %v82 = vld [vmem:[%s1 + $0xe0] sm:$0xf]
    %v83 = vld [vmem:[%s1 + $0xe4] sm:$0xf]
    %v84 = vld [vmem:[%s1 + $0xe8] sm:$0xf]
    %v85 = vld [vmem:[%s1 + $0xec] sm:$0xf]
    %v86 = vld [vmem:[%s1 + $0xf0] sm:$0xf]
    %v87 = vld [vmem:[%s1 + $0xf4] sm:$0xf]
    %v88 = vld [vmem:[%s1 + $0xf8] sm:$0xf]
    %v89 = vld [vmem:[%s1 + $0xfc] sm:$0xf]
    %v90 = vld [vmem:[%s1 + $0x100] sm:$0xf]
    %v91 = vld [vmem:[%s1 + $0x104] sm:$0xf]
    %v92 = vld [vmem:[%s1 + $0x108] sm:$0xf]
    %v93 = vld [vmem:[%s1 + $0x10c] sm:$0xf]
    %v94 = vld [vmem:[%s1 + $0x110] sm:$0xf]
    %v95 = vld [vmem:[%s1 + $0x114] sm:$0xf]
    %v96 = vld [vmem:[%s1 + $0x118] sm:$0xf]
    %v97 = vld [vmem:[%s1 + $0x11c] sm:$0xf]
    %v98 = vld [vmem:[%s1 + $0x120] sm:$0xf]
    %v99 = vld [vmem:[%s1 + $0x124] sm:$0xf]
    %v100 = vld [vmem:[%s1 + $0x128] sm:$0xf]
    %v101 = vld [vmem:[%s1 + $0x12c] sm:$0xf]
    %v102 = vld [vmem:[%s1 + $0x130] sm:$0xf]
    %v103 = vld [vmem:[%s1 + $0x134] sm:$0xf]
    %v104 = vld [vmem:[%s1 + $0x138] sm:$0xf]
    %v105 = vld [vmem:[%s1 + $0x13c] sm:$0xf]
    %v106 = vld [vmem:[%s1 + $0x140] sm:$0xf]
    %v107 = vld [vmem:[%s1 + $0x144] sm:$0xf]
    %v108 = vld [vmem:[%s1 + $0x148] sm:$0xf]
    %v109 = vld [vmem:[%s1 + $0x14c] sm:$0xf]
    %v110 = vld [vmem:[%s1 + $0x150] sm:$0xf]
    %v111 = vld [vmem:[%s1 + $0x154] sm:$0xf]
    %v112 = vld [vmem:[%s1 + $0x158] sm:$0xf]
    %v113 = vld [vmem:[%s1 + $0x15c] sm:$0xf]
    %v114 = vld [vmem:[%s1 + $0x160] sm:$0xf]
    %v115 = vld [vmem:[%s1 + $0x164] sm:$0xf]
    %v116 = vld [vmem:[%s1 + $0x168] sm:$0xf]
    %v117 = vld [vmem:[%s1 + $0x16c] sm:$0xf]
    %v118 = vld [vmem:[%s1 + $0x170] sm:$0xf]
    %v119 = vld [vmem:[%s1 + $0x174] sm:$0xf]
    %v120 = vld [vmem:[%s1 + $0x178] sm:$0xf]
    %v121 = vld [vmem:[%s1 + $0x17c] sm:$0xf]
    %v122 = vld [vmem:[%s1 + $0x180] sm:$0xf]
    %v123 = vld [vmem:[%s1 + $0x184] sm:$0xf]
    %v124 = vld [vmem:[%s1 + $0x188] sm:$0xf]
    %v125 = vld [vmem:[%s1 + $0x18c] sm:$0xf]
    %v126 = vld [vmem:[%s1 + $0x190] sm:$0xf]
    %v127 = vld [vmem:[%s1 + $0x194] sm:$0xf]
    %v128 = vld [vmem:[%s1 + $0x198] sm:$0xf]
    %v129 = vld [vmem:[%s1 + $0x19c] sm:$0xf]
    %v130 = vld [vmem:[%s1 + $0x1a0] sm:$0xf]
    %v131 = vld [vmem:[%s1 + $0x1a4] sm:$0xf]
    %v132 = vld [vmem:[%s1 + $0x1a8] sm:$0xf]
    %v133 = vld [vmem:[%s1 + $0x1ac] sm:$0xf]
    %v134 = vld [vmem:[%s1 + $0x1b0] sm:$0xf]
    %v135 = vld [vmem:[%s1 + $0x1b4] sm:$0xf]
    %v136 = vld [vmem:[%s1 + $0x1b8] sm:$0xf]
    %v137 = vld [vmem:[%s1 + $0x1bc] sm:$0xf]
    %v138 = vld [vmem:[%s1 + $0x1c0] sm:$0xf]
    %v139 = vld [vmem:[%s1 + $0x1c4] sm:$0xf]
    %v140 = vld [vmem:[%s1 + $0x1c8] sm:$0xf]
    %v141 = vld [vmem:[%s1 + $0x1cc] sm:$0xf]
    %v142 = vld [vmem:[%s1 + $0x1d0] sm:$0xf]
    %v143 = vld [vmem:[%s1 + $0x1d4] sm:$0xf]
    %v144 = vld [vmem:[%s1 + $0x1d8] sm:$0xf]
    %v145 = vld [vmem:[%s1 + $0x1dc] sm:$0xf]
    %v146 = vld [vmem:[%s1 + $0x1e0] sm:$0xf]
    %v147 = vld [vmem:[%s1 + $0x1e4] sm:$0xf]
    %v148 = vld [vmem:[%s1 + $0x1e8] sm:$0xf]
    %v149 = vld [vmem:[%s1 + $0x1ec] sm:$0xf]
    %v150 = vld [vmem:[%s1 + $0x1f0] sm:$0xf]
    %v151 = vld [vmem:[%s1 + $0x1f4] sm:$0xf]
    %v152 = vld [vmem:[%s1 + $0x1f8] sm:$0xf]
    %v153 = vld [vmem:[%s1 + $0x1fc] sm:$0xf]
    %v154 = vld [vmem:[%s1 + $0x200] sm:$0xf]
    %v155 = vld [vmem:[%s1 + $0x204] sm:$0xf]
    %v156 = vld [vmem:[%s1 + $0x208] sm:$0xf]
    %v157 = vld [vmem:[%s1 + $0x20c] sm:$0xf]
    %v158 = vld [vmem:[%s1 + $0x210] sm:$0xf]
    %v159 = vld [vmem:[%s1 + $0x214] sm:$0xf]
    %v160 = vld [vmem:[%s1 + $0x218] sm:$0xf]
    %v161 = vld [vmem:[%s1 + $0x21c] sm:$0xf]
    %v162 = vld [vmem:[%s1 + $0x220] sm:$0xf]
    %v163 = vld [vmem:[%s1 + $0x224] sm:$0xf]
    %v164 = vld [vmem:[%s1 + $0x228] sm:$0xf]
    %v165 = vld [vmem:[%s1 + $0x22c] sm:$0xf]
    %v166 = vld [vmem:[%s1 + $0x230] sm:$0xf]
    %v167 = vld [vmem:[%s1 + $0x234] sm:$0xf]
    %v168 = vld [vmem:[%s1 + $0x238] sm:$0xf]
    %v169 = vld [vmem:[%s1 + $0x23c] sm:$0xf]
    %v175 = vunpack.c.l.b16 %v21
    %v176 = vunpack.c.h.b16 %v21
    %v177 = vunpack.c.l.b16 %v22
    %v178 = vunpack.c.h.b16 %v22
    %v179 = vunpack.c.l.b16 %v23
    %v180 = vunpack.c.h.b16 %v23
    %v181 = vunpack.c.l.b16 %v24
    %v182 = vunpack.c.h.b16 %v24
    %v183 = vunpack.c.l.b16 %v25
    %v184 = vpack.c.b16 %v175, %v175
    %v185 = vpack.c.b16 %v176, %v176
    %v186 = vpack.c.b16 %v177, %v177
    %v187 = vpack.c.b16 %v178, %v178
    %v188 = vpack.c.b16 %v179, %v179
    %v189 = vpack.c.b16 %v180, %v180
    %v190 = vpack.c.b16 %v181, %v181
    %v191 = vpack.c.b16 %v182, %v182
    %v192 = vpack.c.b16 %v183, %v183
    %v346 = vunpack.c.l.b16 %v26
    %v347 = vunpack.c.l.b16 %v27
    %v348 = vunpack.c.l.b16 %v28
    %v349 = vunpack.c.l.b16 %v29
    %v350 = vunpack.c.l.b16 %v30
    %v351 = vunpack.c.l.b16 %v31
    %v352 = vunpack.c.l.b16 %v32
    %v353 = vunpack.c.l.b16 %v33
    %v354 = vunpack.c.l.b16 %v34
    %v355 = vunpack.c.l.b16 %v35
    %v356 = vunpack.c.l.b16 %v36
    %v357 = vunpack.c.l.b16 %v37
    %v358 = vunpack.c.l.b16 %v38
    %v359 = vunpack.c.l.b16 %v39
    %v360 = vunpack.c.l.b16 %v40
    %v361 = vunpack.c.l.b16 %v41
    %v362 = vunpack.c.l.b16 %v42
    %v363 = vunpack.c.l.b16 %v43
    %v364 = vunpack.c.l.b16 %v44
    %v365 = vunpack.c.l.b16 %v45
    %v366 = vunpack.c.l.b16 %v46
    %v367 = vunpack.c.l.b16 %v47
    %v368 = vunpack.c.l.b16 %v48
    %v369 = vunpack.c.l.b16 %v49
    %v370 = vunpack.c.l.b16 %v50
    %v371 = vunpack.c.l.b16 %v51
    %v372 = vunpack.c.l.b16 %v52
    %v373 = vunpack.c.l.b16 %v53
    %v374 = vunpack.c.l.b16 %v54
    %v375 = vunpack.c.l.b16 %v55
    %v376 = vunpack.c.l.b16 %v56
    %v377 = vunpack.c.l.b16 %v57
    %v378 = vunpack.c.l.b16 %v58
    %v379 = vunpack.c.l.b16 %v59
    %v380 = vunpack.c.l.b16 %v60
    %v381 = vunpack.c.l.b16 %v61
    %v382 = vunpack.c.l.b16 %v62
    %v383 = vunpack.c.l.b16 %v63
    %v384 = vunpack.c.l.b16 %v64
    %v385 = vunpack.c.l.b16 %v65
    %v386 = vunpack.c.l.b16 %v66
    %v387 = vunpack.c.l.b16 %v67
    %v388 = vunpack.c.l.b16 %v68
    %v389 = vunpack.c.l.b16 %v69
    %v390 = vunpack.c.l.b16 %v70
    %v391 = vunpack.c.l.b16 %v71
    %v392 = vunpack.c.l.b16 %v72
    %v393 = vunpack.c.l.b16 %v73
    %v394 = vunpack.c.l.b16 %v74
    %v395 = vunpack.c.l.b16 %v75
    %v396 = vunpack.c.l.b16 %v76
    %v397 = vunpack.c.l.b16 %v77
    %v398 = vunpack.c.l.b16 %v78
    %v399 = vunpack.c.l.b16 %v79
    %v400 = vunpack.c.l.b16 %v80
    %v401 = vunpack.c.l.b16 %v81
    %v402 = vunpack.c.l.b16 %v82
    %v403 = vunpack.c.l.b16 %v83
    %v404 = vunpack.c.l.b16 %v84
    %v405 = vunpack.c.l.b16 %v85
    %v406 = vunpack.c.l.b16 %v86
    %v407 = vunpack.c.l.b16 %v87
    %v408 = vunpack.c.l.b16 %v88
    %v409 = vunpack.c.l.b16 %v89
    %v410 = vunpack.c.l.b16 %v90
    %v411 = vunpack.c.l.b16 %v91
    %v412 = vunpack.c.l.b16 %v92
    %v413 = vunpack.c.l.b16 %v93
    %v414 = vunpack.c.l.b16 %v94
    %v415 = vunpack.c.l.b16 %v95
    %v416 = vunpack.c.l.b16 %v96
    %v417 = vunpack.c.l.b16 %v97
    %v418 = vunpack.c.l.b16 %v98
    %v419 = vunpack.c.l.b16 %v99
    %v420 = vunpack.c.l.b16 %v100
    %v421 = vunpack.c.l.b16 %v101
    %v422 = vunpack.c.l.b16 %v102
    %v423 = vunpack.c.l.b16 %v103
    %v424 = vunpack.c.l.b16 %v104
    %v425 = vunpack.c.l.b16 %v105
    %v426 = vunpack.c.l.b16 %v106
    %v427 = vunpack.c.l.b16 %v107
    %v428 = vunpack.c.l.b16 %v108
    %v429 = vunpack.c.l.b16 %v109
    %v430 = vunpack.c.l.b16 %v110
    %v431 = vunpack.c.l.b16 %v111
    %v432 = vunpack.c.l.b16 %v112
    %v433 = vunpack.c.l.b16 %v113
    %v434 = vunpack.c.l.b16 %v114
    %v435 = vunpack.c.l.b16 %v115
    %v436 = vunpack.c.l.b16 %v116
    %v437 = vunpack.c.l.b16 %v117
    %v438 = vunpack.c.l.b16 %v118
    %v439 = vunpack.c.l.b16 %v119
    %v440 = vunpack.c.l.b16 %v120
    %v441 = vunpack.c.l.b16 %v121
    %v442 = vunpack.c.l.b16 %v122
    %v443 = vunpack.c.l.b16 %v123
    %v444 = vunpack.c.l.b16 %v124
    %v445 = vunpack.c.l.b16 %v125
    %v446 = vunpack.c.l.b16 %v126
    %v447 = vunpack.c.l.b16 %v127
    %v448 = vunpack.c.l.b16 %v128
    %v449 = vunpack.c.l.b16 %v129
    %v450 = vunpack.c.l.b16 %v130
    %v451 = vunpack.c.l.b16 %v131
    %v452 = vunpack.c.l.b16 %v132
    %v453 = vunpack.c.l.b16 %v133
    %v454 = vunpack.c.l.b16 %v134
    %v455 = vunpack.c.l.b16 %v135
    %v456 = vunpack.c.l.b16 %v136
    %v457 = vunpack.c.l.b16 %v137
    %v458 = vunpack.c.l.b16 %v138
    %v459 = vunpack.c.l.b16 %v139
    %v460 = vunpack.c.l.b16 %v140
    %v461 = vunpack.c.l.b16 %v141
    %v462 = vunpack.c.l.b16 %v142
    %v463 = vunpack.c.l.b16 %v143
    %v464 = vunpack.c.l.b16 %v144
    %v465 = vunpack.c.l.b16 %v145
    %v466 = vunpack.c.l.b16 %v146
    %v467 = vunpack.c.l.b16 %v147
    %v468 = vunpack.c.l.b16 %v148
    %v469 = vunpack.c.l.b16 %v149
    %v470 = vunpack.c.l.b16 %v150
    %v471 = vunpack.c.l.b16 %v151
    %v472 = vunpack.c.l.b16 %v152
    %v473 = vunpack.c.l.b16 %v153
    %v474 = vunpack.c.l.b16 %v154
    %v475 = vunpack.c.l.b16 %v155
    %v476 = vunpack.c.l.b16 %v156
    %v477 = vunpack.c.l.b16 %v157
    %v478 = vunpack.c.l.b16 %v158
    %v479 = vunpack.c.l.b16 %v159
    %v480 = vunpack.c.l.b16 %v160
    %v481 = vunpack.c.l.b16 %v161
    %v482 = vunpack.c.l.b16 %v162
    %v483 = vunpack.c.l.b16 %v163
    %v484 = vunpack.c.l.b16 %v164
    %v485 = vunpack.c.l.b16 %v165
    %v486 = vunpack.c.l.b16 %v166
    %v487 = vunpack.c.l.b16 %v167
    %v488 = vunpack.c.l.b16 %v168
    %v489 = vunpack.c.l.b16 %v169
    %v490 = vpack.c.b16 %v347, %v346
    %v491 = vpack.c.b16 %v349, %v348
    %v492 = vpack.c.b16 %v351, %v350
    %v493 = vpack.c.b16 %v353, %v352
    %v494 = vpack.c.b16 %v355, %v354
    %v495 = vpack.c.b16 %v357, %v356
    %v496 = vpack.c.b16 %v359, %v358
    %v497 = vpack.c.b16 %v361, %v360
    %v498 = vpack.c.b16 %v363, %v362
    %v499 = vpack.c.b16 %v365, %v364
    %v500 = vpack.c.b16 %v367, %v366
    %v501 = vpack.c.b16 %v369, %v368
    %v502 = vpack.c.b16 %v371, %v370
    %v503 = vpack.c.b16 %v373, %v372
    %v504 = vpack.c.b16 %v375, %v374
    %v505 = vpack.c.b16 %v377, %v376
    %v506 = vpack.c.b16 %v379, %v378
    %v507 = vpack.c.b16 %v381, %v380
    %v508 = vpack.c.b16 %v383, %v382
    %v509 = vpack.c.b16 %v385, %v384
    %v510 = vpack.c.b16 %v387, %v386
    %v511 = vpack.c.b16 %v389, %v388
    %v512 = vpack.c.b16 %v391, %v390
    %v513 = vpack.c.b16 %v393, %v392
    %v514 = vpack.c.b16 %v395, %v394
    %v515 = vpack.c.b16 %v397, %v396
    %v516 = vpack.c.b16 %v399, %v398
    %v517 = vpack.c.b16 %v401, %v400
    %v518 = vpack.c.b16 %v403, %v402
    %v519 = vpack.c.b16 %v405, %v404
    %v520 = vpack.c.b16 %v407, %v406
    %v521 = vpack.c.b16 %v409, %v408
    %v522 = vpack.c.b16 %v411, %v410
    %v523 = vpack.c.b16 %v413, %v412
    %v524 = vpack.c.b16 %v415, %v414
    %v525 = vpack.c.b16 %v417, %v416
    %v526 = vpack.c.b16 %v419, %v418
    %v527 = vpack.c.b16 %v421, %v420
    %v528 = vpack.c.b16 %v423, %v422
    %v529 = vpack.c.b16 %v425, %v424
    %v530 = vpack.c.b16 %v427, %v426
    %v531 = vpack.c.b16 %v429, %v428
    %v532 = vpack.c.b16 %v431, %v430
    %v533 = vpack.c.b16 %v433, %v432
    %v534 = vpack.c.b16 %v435, %v434
    %v535 = vpack.c.b16 %v437, %v436
    %v536 = vpack.c.b16 %v439, %v438
    %v537 = vpack.c.b16 %v441, %v440
    %v538 = vpack.c.b16 %v443, %v442
    %v539 = vpack.c.b16 %v445, %v444
    %v540 = vpack.c.b16 %v447, %v446
    %v541 = vpack.c.b16 %v449, %v448
    %v542 = vpack.c.b16 %v451, %v450
    %v543 = vpack.c.b16 %v453, %v452
    %v544 = vpack.c.b16 %v455, %v454
    %v545 = vpack.c.b16 %v457, %v456
    %v546 = vpack.c.b16 %v459, %v458
    %v547 = vpack.c.b16 %v461, %v460
    %v548 = vpack.c.b16 %v463, %v462
    %v549 = vpack.c.b16 %v465, %v464
    %v550 = vpack.c.b16 %v467, %v466
    %v551 = vpack.c.b16 %v469, %v468
    %v552 = vpack.c.b16 %v471, %v470
    %v553 = vpack.c.b16 %v473, %v472
    %v554 = vpack.c.b16 %v475, %v474
    %v555 = vpack.c.b16 %v477, %v476
    %v556 = vpack.c.b16 %v479, %v478
    %v557 = vpack.c.b16 %v481, %v480
    %v558 = vpack.c.b16 %v483, %v482
    %v559 = vpack.c.b16 %v485, %v484
    %v560 = vpack.c.b16 %v487, %v486
    %v561 = vpack.c.b16 %v489, %v488
    %634 = vmatprep.subr.bf16.mxu0 0
    %635 = vmatpush1.bf16.msra.mxu0 %v490
    %636 = vmatprep.subr.bf16.mxu0 0
    %637 = vmatpush1.bf16.msra.mxu0 %v491
    %638 = vmatprep.subr.bf16.mxu0 0
    %639 = vmatpush1.bf16.msra.mxu0 %v492
    %640 = vmatprep.subr.bf16.mxu0 0
    %641 = vmatpush1.bf16.msra.mxu0 %v493
    %642 = vmatprep.subr.bf16.mxu0 0
    %643 = vmatpush1.bf16.msra.mxu0 %v494
    %644 = vmatprep.subr.bf16.mxu0 0
    %645 = vmatpush1.bf16.msra.mxu0 %v495
    %646 = vmatprep.subr.bf16.mxu0 0
    %647 = vmatpush1.bf16.msra.mxu0 %v496
    %648 = vmatprep.subr.bf16.mxu0 0
    %649 = vmatpush1.bf16.msra.mxu0 %v497
    %650 = vmatprep.subr.bf16.mxu0 0
    %651 = vmatpush1.bf16.msra.mxu0 %v498
    %652 = vmatprep.subr.bf16.mxu0 0
    %653 = vmatpush1.bf16.msra.mxu0 %v499
    %654 = vmatprep.subr.bf16.mxu0 0
    %655 = vmatpush1.bf16.msra.mxu0 %v500
    %656 = vmatprep.subr.bf16.mxu0 0
    %657 = vmatpush1.bf16.msra.mxu0 %v501
    %658 = vmatprep.subr.bf16.mxu0 0
    %659 = vmatpush1.bf16.msra.mxu0 %v502
    %660 = vmatprep.subr.bf16.mxu0 0
    %661 = vmatpush1.bf16.msra.mxu0 %v503
    %662 = vmatprep.subr.bf16.mxu0 0
    %663 = vmatpush1.bf16.msra.mxu0 %v504
    %664 = vmatprep.subr.bf16.mxu0 0
    %665 = vmatpush1.bf16.msra.mxu0 %v505
    %666 = vmatprep.mubr.bf16.mxu0 %v185
    %667 = vmatmul.mubr.bf16.gmra.mrb[0].mxu0 %v184
    %v668 = vpop.f32.mrb[0].mxu0
    %v669 = vadd.f32 0.0, %v668
    %v670 = vpop.f32.mrb[0].mxu0
    %v671 = vpop.f32.mrb[0].mxu0
    %v672 = vpop.f32.mrb[0].mxu0
    %673 = vdwg.mxu0
    %674 = vmatprep.subr.bf16.mxu0 0
    %675 = vmatpush1.bf16.msra.mxu0 %v506
    %676 = vmatprep.subr.bf16.mxu0 0
    %677 = vmatpush1.bf16.msra.mxu0 %v507
    %678 = vmatprep.subr.bf16.mxu0 0
    %679 = vmatpush1.bf16.msra.mxu0 %v508
    %680 = vmatprep.subr.bf16.mxu0 0
    %681 = vmatpush1.bf16.msra.mxu0 %v509
    %682 = vmatprep.subr.bf16.mxu0 0
    %683 = vmatpush1.bf16.msra.mxu0 %v510
    %684 = vmatprep.subr.bf16.mxu0 0
    %685 = vmatpush1.bf16.msra.mxu0 %v511
    %686 = vmatprep.subr.bf16.mxu0 0
    %687 = vmatpush1.bf16.msra.mxu0 %v512
    %688 = vmatprep.subr.bf16.mxu0 0
    %689 = vmatpush1.bf16.msra.mxu0 %v513
    %690 = vmatprep.subr.bf16.mxu0 0
    %691 = vmatpush1.bf16.msra.mxu0 %v514
    %692 = vmatprep.subr.bf16.mxu0 0
    %693 = vmatpush1.bf16.msra.mxu0 %v515
    %694 = vmatprep.subr.bf16.mxu0 0
    %695 = vmatpush1.bf16.msra.mxu0 %v516
    %696 = vmatprep.subr.bf16.mxu0 0
    %697 = vmatpush1.bf16.msra.mxu0 %v517
    %698 = vmatprep.subr.bf16.mxu0 0
    %699 = vmatpush1.bf16.msra.mxu0 %v518
    %700 = vmatprep.subr.bf16.mxu0 0
    %701 = vmatpush1.bf16.msra.mxu0 %v519
    %702 = vmatprep.subr.bf16.mxu0 0
    %703 = vmatpush1.bf16.msra.mxu0 %v520
    %704 = vmatprep.subr.bf16.mxu0 0
    %705 = vmatpush1.bf16.msra.mxu0 %v521
    %706 = vmatprep.mubr.bf16.mxu0 %v187
    %707 = vmatmul.mubr.bf16.gmra.mrb[0].mxu0 %v186
    %v708 = vpop.f32.mrb[0].mxu0
    %v709 = vadd.f32 %v669, %v708
    %v710 = vpop.f32.mrb[0].mxu0
    %v711 = vpop.f32.mrb[0].mxu0
    %v712 = vpop.f32.mrb[0].mxu0
    %713 = vdwg.mxu0
    %714 = vmatprep.subr.bf16.mxu0 0
    %715 = vmatpush1.bf16.msra.mxu0 %v522
    %716 = vmatprep.subr.bf16.mxu0 0
    %717 = vmatpush1.bf16.msra.mxu0 %v523
    %718 = vmatprep.subr.bf16.mxu0 0
    %719 = vmatpush1.bf16.msra.mxu0 %v524
    %720 = vmatprep.subr.bf16.mxu0 0
    %721 = vmatpush1.bf16.msra.mxu0 %v525
    %722 = vmatprep.subr.bf16.mxu0 0
    %723 = vmatpush1.bf16.msra.mxu0 %v526
    %724 = vmatprep.subr.bf16.mxu0 0
    %725 = vmatpush1.bf16.msra.mxu0 %v527
    %726 = vmatprep.subr.bf16.mxu0 0
    %727 = vmatpush1.bf16.msra.mxu0 %v528
    %728 = vmatprep.subr.bf16.mxu0 0
    %729 = vmatpush1.bf16.msra.mxu0 %v529
    %730 = vmatprep.subr.bf16.mxu0 0
    %731 = vmatpush1.bf16.msra.mxu0 %v530
    %732 = vmatprep.subr.bf16.mxu0 0
    %733 = vmatpush1.bf16.msra.mxu0 %v531
    %734 = vmatprep.subr.bf16.mxu0 0
    %735 = vmatpush1.bf16.msra.mxu0 %v532
    %736 = vmatprep.subr.bf16.mxu0 0
    %737 = vmatpush1.bf16.msra.mxu0 %v533
    %738 = vmatprep.subr.bf16.mxu0 0
    %739 = vmatpush1.bf16.msra.mxu0 %v534
    %740 = vmatprep.subr.bf16.mxu0 0
    %741 = vmatpush1.bf16.msra.mxu0 %v535
    %742 = vmatprep.subr.bf16.mxu0 0
    %743 = vmatpush1.bf16.msra.mxu0 %v536
    %744 = vmatprep.subr.bf16.mxu0 0
    %745 = vmatpush1.bf16.msra.mxu0 %v537
    %746 = vmatprep.mubr.bf16.mxu0 %v189
    %747 = vmatmul.mubr.bf16.gmra.mrb[0].mxu0 %v188
    %v748 = vpop.f32.mrb[0].mxu0
    %v749 = vadd.f32 %v709, %v748
    %v750 = vpop.f32.mrb[0].mxu0
    %v751 = vpop.f32.mrb[0].mxu0
    %v752 = vpop.f32.mrb[0].mxu0
    %753 = vdwg.mxu0
    %754 = vmatprep.subr.bf16.mxu0 0
    %755 = vmatpush1.bf16.msra.mxu0 %v538
    %756 = vmatprep.subr.bf16.mxu0 0
    %757 = vmatpush1.bf16.msra.mxu0 %v539
    %758 = vmatprep.subr.bf16.mxu0 0
    %759 = vmatpush1.bf16.msra.mxu0 %v540
    %760 = vmatprep.subr.bf16.mxu0 0
    %761 = vmatpush1.bf16.msra.mxu0 %v541
    %762 = vmatprep.subr.bf16.mxu0 0
    %763 = vmatpush1.bf16.msra.mxu0 %v542
    %764 = vmatprep.subr.bf16.mxu0 0
    %765 = vmatpush1.bf16.msra.mxu0 %v543
    %766 = vmatprep.subr.bf16.mxu0 0
    %767 = vmatpush1.bf16.msra.mxu0 %v544
    %768 = vmatprep.subr.bf16.mxu0 0
    %769 = vmatpush1.bf16.msra.mxu0 %v545
    %770 = vmatprep.subr.bf16.mxu0 0
    %771 = vmatpush1.bf16.msra.mxu0 %v546
    %772 = vmatprep.subr.bf16.mxu0 0
    %773 = vmatpush1.bf16.msra.mxu0 %v547
    %774 = vmatprep.subr.bf16.mxu0 0
    %775 = vmatpush1.bf16.msra.mxu0 %v548
    %776 = vmatprep.subr.bf16.mxu0 0
    %777 = vmatpush1.bf16.msra.mxu0 %v549
    %778 = vmatprep.subr.bf16.mxu0 0
    %779 = vmatpush1.bf16.msra.mxu0 %v550
    %780 = vmatprep.subr.bf16.mxu0 0
    %781 = vmatpush1.bf16.msra.mxu0 %v551
    %782 = vmatprep.subr.bf16.mxu0 0
    %783 = vmatpush1.bf16.msra.mxu0 %v552
    %784 = vmatprep.subr.bf16.mxu0 0
    %785 = vmatpush1.bf16.msra.mxu0 %v553
    %786 = vmatprep.mubr.bf16.mxu0 %v191
    %787 = vmatmul.mubr.bf16.gmra.mrb[0].mxu0 %v190
    %v788 = vpop.f32.mrb[0].mxu0
    %v789 = vadd.f32 %v749, %v788
    %v790 = vpop.f32.mrb[0].mxu0
    %v791 = vpop.f32.mrb[0].mxu0
    %v792 = vpop.f32.mrb[0].mxu0
    %793 = vdwg.mxu0
    %794 = vmatprep.subr.bf16.mxu0 0
    %795 = vmatpush1.bf16.msra.mxu0 %v554
    %796 = vmatprep.subr.bf16.mxu0 0
    %797 = vmatpush1.bf16.msra.mxu0 %v555
    %798 = vmatprep.subr.bf16.mxu0 0
    %799 = vmatpush1.bf16.msra.mxu0 %v556
    %800 = vmatprep.subr.bf16.mxu0 0
    %801 = vmatpush1.bf16.msra.mxu0 %v557
    %802 = vmatprep.subr.bf16.mxu0 0
    %803 = vmatpush1.bf16.msra.mxu0 %v558
    %804 = vmatprep.subr.bf16.mxu0 0
    %805 = vmatpush1.bf16.msra.mxu0 %v559
    %806 = vmatprep.subr.bf16.mxu0 0
    %807 = vmatpush1.bf16.msra.mxu0 %v560
    %808 = vmatprep.subr.bf16.mxu0 0
    %809 = vmatpush1.bf16.msra.mxu0 %v561
    %810 = vmatprep.subr.bf16.mxu0 0
    %811 = vmatpush1.bf16.msra.mxu0 0
    %812 = vmatprep.subr.bf16.mxu0 0
    %813 = vmatpush1.bf16.msra.mxu0 0
    %814 = vmatprep.subr.bf16.mxu0 0
    %815 = vmatpush1.bf16.msra.mxu0 0
    %816 = vmatprep.subr.bf16.mxu0 0
    %817 = vmatpush1.bf16.msra.mxu0 0
    %818 = vmatprep.subr.bf16.mxu0 0
    %819 = vmatpush1.bf16.msra.mxu0 0
    %820 = vmatprep.subr.bf16.mxu0 0
    %821 = vmatpush1.bf16.msra.mxu0 0
    %822 = vmatprep.subr.bf16.mxu0 0
    %823 = vmatpush1.bf16.msra.mxu0 0
    %824 = vmatprep.subr.bf16.mxu0 0
    %825 = vmatpush1.bf16.msra.mxu0 0
    %826 = vmatprep.mubr.bf16.mxu0 0
    %827 = vmatmul.mubr.bf16.gmra.mrb[0].mxu0 %v192
    %v828 = vpop.f32.mrb[0].mxu0
    %v829 = vadd.f32 %v789, %v828
    %v830 = vpop.f32.mrb[0].mxu0
    %v831 = vpop.f32.mrb[0].mxu0
    %v832 = vpop.f32.mrb[0].mxu0
    %833 = vdwg.mxu0
    %834 = vst [vmem:[%s4] sm:$0xff] %v829
    %v835 = vld [vmem:[%s2] sm:$0xf]
    %v836 = vld [vmem:[%s3] sm:$0xf]
    %v837 = vld [vmem:[%s3 + $0x4] sm:$0xf]
    %v838 = vld [vmem:[%s3 + $0x8] sm:$0xf]
    %v839 = vld [vmem:[%s3 + $0xc] sm:$0xf]
    %v840 = vld [vmem:[%s3 + $0x10] sm:$0xf]
    %v841 = vld [vmem:[%s3 + $0x14] sm:$0xf]
    %v842 = vld [vmem:[%s3 + $0x18] sm:$0xf]
    %v843 = vld [vmem:[%s3 + $0x1c] sm:$0xf]
    %v844 = vld [vmem:[%s3 + $0x20] sm:$0xf]
    %v845 = vld [vmem:[%s3 + $0x24] sm:$0xf]
    %v846 = vld [vmem:[%s3 + $0x28] sm:$0xf]
    %v847 = vld [vmem:[%s3 + $0x2c] sm:$0xf]
    %v848 = vld [vmem:[%s3 + $0x30] sm:$0xf]
    %v849 = vld [vmem:[%s3 + $0x34] sm:$0xf]
    %v850 = vld [vmem:[%s3 + $0x38] sm:$0xf]
    %v851 = vld [vmem:[%s3 + $0x3c] sm:$0xf]
    %v852 = vld [vmem:[%s3 + $0x40] sm:$0xf]
    %v853 = vld [vmem:[%s3 + $0x44] sm:$0xf]
    %v854 = vld [vmem:[%s3 + $0x48] sm:$0xf]
    %v855 = vld [vmem:[%s3 + $0x4c] sm:$0xf]
    %v856 = vld [vmem:[%s3 + $0x50] sm:$0xf]
    %v857 = vld [vmem:[%s3 + $0x54] sm:$0xf]
    %v858 = vld [vmem:[%s3 + $0x58] sm:$0xf]
    %v859 = vld [vmem:[%s3 + $0x5c] sm:$0xf]
    %v860 = vld [vmem:[%s3 + $0x60] sm:$0xf]
    %v861 = vld [vmem:[%s3 + $0x64] sm:$0xf]
    %v862 = vld [vmem:[%s3 + $0x68] sm:$0xf]
    %v863 = vld [vmem:[%s3 + $0x6c] sm:$0xf]
    %v864 = vld [vmem:[%s3 + $0x70] sm:$0xf]
    %v865 = vld [vmem:[%s3 + $0x74] sm:$0xf]
    %v866 = vld [vmem:[%s3 + $0x78] sm:$0xf]
    %v867 = vld [vmem:[%s3 + $0x7c] sm:$0xf]
    %v868 = vld [vmem:[%s3 + $0x80] sm:$0xf]
    %v869 = vld [vmem:[%s3 + $0x84] sm:$0xf]
    %v870 = vld [vmem:[%s3 + $0x88] sm:$0xf]
    %v871 = vld [vmem:[%s3 + $0x8c] sm:$0xf]
    %v872 = vld [vmem:[%s3 + $0x90] sm:$0xf]
    %v873 = vld [vmem:[%s3 + $0x94] sm:$0xf]
    %v874 = vld [vmem:[%s3 + $0x98] sm:$0xf]
    %v875 = vld [vmem:[%s3 + $0x9c] sm:$0xf]
    %v876 = vld [vmem:[%s3 + $0xa0] sm:$0xf]
    %v877 = vld [vmem:[%s3 + $0xa4] sm:$0xf]
    %v878 = vld [vmem:[%s3 + $0xa8] sm:$0xf]
    %v879 = vld [vmem:[%s3 + $0xac] sm:$0xf]
    %v880 = vld [vmem:[%s3 + $0xb0] sm:$0xf]
    %v881 = vld [vmem:[%s3 + $0xb4] sm:$0xf]
    %v882 = vld [vmem:[%s3 + $0xb8] sm:$0xf]
    %v883 = vld [vmem:[%s3 + $0xbc] sm:$0xf]
    %v884 = vld [vmem:[%s3 + $0xc0] sm:$0xf]
    %v885 = vld [vmem:[%s3 + $0xc4] sm:$0xf]
    %v886 = vld [vmem:[%s3 + $0xc8] sm:$0xf]
    %v887 = vld [vmem:[%s3 + $0xcc] sm:$0xf]
    %v888 = vld [vmem:[%s3 + $0xd0] sm:$0xf]
    %v889 = vld [vmem:[%s3 + $0xd4] sm:$0xf]
    %v890 = vld [vmem:[%s3 + $0xd8] sm:$0xf]
    %v891 = vld [vmem:[%s3 + $0xdc] sm:$0xf]
    %v892 = vld [vmem:[%s3 + $0xe0] sm:$0xf]
    %v893 = vld [vmem:[%s3 + $0xe4] sm:$0xf]
    %v894 = vld [vmem:[%s3 + $0xe8] sm:$0xf]
    %v895 = vld [vmem:[%s3 + $0xec] sm:$0xf]
    %v896 = vld [vmem:[%s3 + $0xf0] sm:$0xf]
    %v897 = vld [vmem:[%s3 + $0xf4] sm:$0xf]
    %v898 = vld [vmem:[%s3 + $0xf8] sm:$0xf]
    %v899 = vld [vmem:[%s3 + $0xfc] sm:$0xf]
    %v902 = vunpack.c.l.s4 1966171168
    %v903 = vunpack.c.0.s8 %v902
    %v904 = vlaneseq
    %v905 = vshrl.u32 %v904, 7
    %v906 = vsub.s32 %v903, %v905
    %v907 = vrot.slane %v835, %v906
    %v908 = vcombine.high %v907, %v907
    %v910 = vunpack.c.l.s4 1966171168
    %v911 = vunpack.c.0.s8 %v910
    %v912 = vlaneseq
    %v913 = vshrl.u32 %v912, 7
    %v914 = vsub.s32 %v911, %v913
    %v915 = vrot.slane %v907, %v914
    %v917 = vunpack.c.l.s4 1966171168
    %v918 = vunpack.c.0.s8 %v917
    %v919 = vlaneseq
    %v920 = vshrl.u32 %v919, 7
    %v921 = vsub.s32 %v918, %v920
    %v922 = vrot.slane %v908, %v921
    %v923 = vcombine.high %v915, %v915
    %v924 = vcombine.high %v922, %v922
    %v993 = vunpack.c.l.b16 %v836
    %v994 = vunpack.c.l.b16 %v837
    %v995 = vunpack.c.l.b16 %v838
    %v996 = vunpack.c.l.b16 %v839
    %v997 = vunpack.c.l.b16 %v840
    %v998 = vunpack.c.l.b16 %v841
    %v999 = vunpack.c.l.b16 %v842
    %v1000 = vunpack.c.l.b16 %v843
    %v1001 = vunpack.c.l.b16 %v844
    %v1002 = vunpack.c.l.b16 %v845
    %v1003 = vunpack.c.l.b16 %v846
    %v1004 = vunpack.c.l.b16 %v847
    %v1005 = vunpack.c.l.b16 %v848
    %v1006 = vunpack.c.l.b16 %v849
    %v1007 = vunpack.c.l.b16 %v850
    %v1008 = vunpack.c.l.b16 %v851
    %v1009 = vunpack.c.l.b16 %v852
    %v1010 = vunpack.c.l.b16 %v853
    %v1011 = vunpack.c.l.b16 %v854
    %v1012 = vunpack.c.l.b16 %v855
    %v1013 = vunpack.c.l.b16 %v856
    %v1014 = vunpack.c.l.b16 %v857
    %v1015 = vunpack.c.l.b16 %v858
    %v1016 = vunpack.c.l.b16 %v859
    %v1017 = vunpack.c.l.b16 %v860
    %v1018 = vunpack.c.l.b16 %v861
    %v1019 = vunpack.c.l.b16 %v862
    %v1020 = vunpack.c.l.b16 %v863
    %v1021 = vunpack.c.l.b16 %v864
    %v1022 = vunpack.c.l.b16 %v865
    %v1023 = vunpack.c.l.b16 %v866
    %v1024 = vunpack.c.l.b16 %v867
    %v1025 = vunpack.c.l.b16 %v868
    %v1026 = vunpack.c.l.b16 %v869
    %v1027 = vunpack.c.l.b16 %v870
    %v1028 = vunpack.c.l.b16 %v871
    %v1029 = vunpack.c.l.b16 %v872
    %v1030 = vunpack.c.l.b16 %v873
    %v1031 = vunpack.c.l.b16 %v874
    %v1032 = vunpack.c.l.b16 %v875
    %v1033 = vunpack.c.l.b16 %v876
    %v1034 = vunpack.c.l.b16 %v877
    %v1035 = vunpack.c.l.b16 %v878
    %v1036 = vunpack.c.l.b16 %v879
    %v1037 = vunpack.c.l.b16 %v880
    %v1038 = vunpack.c.l.b16 %v881
    %v1039 = vunpack.c.l.b16 %v882
    %v1040 = vunpack.c.l.b16 %v883
    %v1041 = vunpack.c.l.b16 %v884
    %v1042 = vunpack.c.l.b16 %v885
    %v1043 = vunpack.c.l.b16 %v886
    %v1044 = vunpack.c.l.b16 %v887
    %v1045 = vunpack.c.l.b16 %v888
    %v1046 = vunpack.c.l.b16 %v889
    %v1047 = vunpack.c.l.b16 %v890
    %v1048 = vunpack.c.l.b16 %v891
    %v1049 = vunpack.c.l.b16 %v892
    %v1050 = vunpack.c.l.b16 %v893
    %v1051 = vunpack.c.l.b16 %v894
    %v1052 = vunpack.c.l.b16 %v895
    %v1053 = vunpack.c.l.b16 %v896
    %v1054 = vunpack.c.l.b16 %v897
    %v1055 = vunpack.c.l.b16 %v898
    %v1056 = vunpack.c.l.b16 %v899
    %v1057 = vpack.c.b16 %v994, %v993
    %v1058 = vpack.c.b16 %v996, %v995
    %v1059 = vpack.c.b16 %v998, %v997
    %v1060 = vpack.c.b16 %v1000, %v999
    %v1061 = vpack.c.b16 %v1002, %v1001
    %v1062 = vpack.c.b16 %v1004, %v1003
    %v1063 = vpack.c.b16 %v1006, %v1005
    %v1064 = vpack.c.b16 %v1008, %v1007
    %v1065 = vpack.c.b16 %v1010, %v1009
    %v1066 = vpack.c.b16 %v1012, %v1011
    %v1067 = vpack.c.b16 %v1014, %v1013
    %v1068 = vpack.c.b16 %v1016, %v1015
    %v1069 = vpack.c.b16 %v1018, %v1017
    %v1070 = vpack.c.b16 %v1020, %v1019
    %v1071 = vpack.c.b16 %v1022, %v1021
    %v1072 = vpack.c.b16 %v1024, %v1023
    %v1073 = vpack.c.b16 %v1026, %v1025
    %v1074 = vpack.c.b16 %v1028, %v1027
    %v1075 = vpack.c.b16 %v1030, %v1029
    %v1076 = vpack.c.b16 %v1032, %v1031
    %v1077 = vpack.c.b16 %v1034, %v1033
    %v1078 = vpack.c.b16 %v1036, %v1035
    %v1079 = vpack.c.b16 %v1038, %v1037
    %v1080 = vpack.c.b16 %v1040, %v1039
    %v1081 = vpack.c.b16 %v1042, %v1041
    %v1082 = vpack.c.b16 %v1044, %v1043
    %v1083 = vpack.c.b16 %v1046, %v1045
    %v1084 = vpack.c.b16 %v1048, %v1047
    %v1085 = vpack.c.b16 %v1050, %v1049
    %v1086 = vpack.c.b16 %v1052, %v1051
    %v1087 = vpack.c.b16 %v1054, %v1053
    %v1088 = vpack.c.b16 %v1056, %v1055
    %1121 = vmatprep.subr.bf16.mxu0 0
    %1122 = vmatpush1.bf16.msra.mxu0 %v1057
    %1123 = vmatprep.subr.bf16.mxu0 0
    %1124 = vmatpush1.bf16.msra.mxu0 %v1058
    %1125 = vmatprep.subr.bf16.mxu0 0
    %1126 = vmatpush1.bf16.msra.mxu0 %v1059
    %1127 = vmatprep.subr.bf16.mxu0 0
    %1128 = vmatpush1.bf16.msra.mxu0 %v1060
    %1129 = vmatprep.subr.bf16.mxu0 0
    %1130 = vmatpush1.bf16.msra.mxu0 %v1061
    %1131 = vmatprep.subr.bf16.mxu0 0
    %1132 = vmatpush1.bf16.msra.mxu0 %v1062
    %1133 = vmatprep.subr.bf16.mxu0 0
    %1134 = vmatpush1.bf16.msra.mxu0 %v1063
    %1135 = vmatprep.subr.bf16.mxu0 0
    %1136 = vmatpush1.bf16.msra.mxu0 %v1064
    %1137 = vmatprep.subr.bf16.mxu0 0
    %1138 = vmatpush1.bf16.msra.mxu0 %v1065
    %1139 = vmatprep.subr.bf16.mxu0 0
    %1140 = vmatpush1.bf16.msra.mxu0 %v1066
    %1141 = vmatprep.subr.bf16.mxu0 0
    %1142 = vmatpush1.bf16.msra.mxu0 %v1067
    %1143 = vmatprep.subr.bf16.mxu0 0
    %1144 = vmatpush1.bf16.msra.mxu0 %v1068
    %1145 = vmatprep.subr.bf16.mxu0 0
    %1146 = vmatpush1.bf16.msra.mxu0 %v1069
    %1147 = vmatprep.subr.bf16.mxu0 0
    %1148 = vmatpush1.bf16.msra.mxu0 %v1070
    %1149 = vmatprep.subr.bf16.mxu0 0
    %1150 = vmatpush1.bf16.msra.mxu0 %v1071
    %1151 = vmatprep.subr.bf16.mxu0 0
    %1152 = vmatpush1.bf16.msra.mxu0 %v1072
    %1153 = vmatprep.mubr.bf16.mxu0 %v922
    %1154 = vmatmul.mubr.bf16.gmra.mrb[0].mxu0 %v915
    %v1155 = vpop.f32.mrb[0].mxu0
    %v1156 = vadd.f32 0.0, %v1155
    %v1157 = vpop.f32.mrb[0].mxu0
    %v1158 = vpop.f32.mrb[0].mxu0
    %v1159 = vpop.f32.mrb[0].mxu0
    %1160 = vdwg.mxu0
    %1161 = vmatprep.subr.bf16.mxu0 0
    %1162 = vmatpush1.bf16.msra.mxu0 %v1073
    %1163 = vmatprep.subr.bf16.mxu0 0
    %1164 = vmatpush1.bf16.msra.mxu0 %v1074
    %1165 = vmatprep.subr.bf16.mxu0 0
    %1166 = vmatpush1.bf16.msra.mxu0 %v1075
    %1167 = vmatprep.subr.bf16.mxu0 0
    %1168 = vmatpush1.bf16.msra.mxu0 %v1076
    %1169 = vmatprep.subr.bf16.mxu0 0
    %1170 = vmatpush1.bf16.msra.mxu0 %v1077
    %1171 = vmatprep.subr.bf16.mxu0 0
    %1172 = vmatpush1.bf16.msra.mxu0 %v1078
    %1173 = vmatprep.subr.bf16.mxu0 0
    %1174 = vmatpush1.bf16.msra.mxu0 %v1079
    %1175 = vmatprep.subr.bf16.mxu0 0
    %1176 = vmatpush1.bf16.msra.mxu0 %v1080
    %1177 = vmatprep.subr.bf16.mxu0 0
    %1178 = vmatpush1.bf16.msra.mxu0 %v1081
    %1179 = vmatprep.subr.bf16.mxu0 0
    %1180 = vmatpush1.bf16.msra.mxu0 %v1082
    %1181 = vmatprep.subr.bf16.mxu0 0
    %1182 = vmatpush1.bf16.msra.mxu0 %v1083
    %1183 = vmatprep.subr.bf16.mxu0 0
    %1184 = vmatpush1.bf16.msra.mxu0 %v1084
    %1185 = vmatprep.subr.bf16.mxu0 0
    %1186 = vmatpush1.bf16.msra.mxu0 %v1085
    %1187 = vmatprep.subr.bf16.mxu0 0
    %1188 = vmatpush1.bf16.msra.mxu0 %v1086
    %1189 = vmatprep.subr.bf16.mxu0 0
    %1190 = vmatpush1.bf16.msra.mxu0 %v1087
    %1191 = vmatprep.subr.bf16.mxu0 0
    %1192 = vmatpush1.bf16.msra.mxu0 %v1088
    %1193 = vmatprep.mubr.bf16.mxu0 %v924
    %1194 = vmatmul.mubr.bf16.gmra.mrb[0].mxu0 %v923
    %v1195 = vpop.f32.mrb[0].mxu0
    %v1196 = vadd.f32 %v1156, %v1195
    %v1197 = vpop.f32.mrb[0].mxu0
    %v1198 = vpop.f32.mrb[0].mxu0
    %v1199 = vpop.f32.mrb[0].mxu0
    %1200 = vdwg.mxu0
    %1201 = vst [vmem:[#allocation2] sm:$0x3] %v1196
    // Predicated region
    $region18: #{discriminator_forward.7} parent=1 // pred_check
      _
    $region19: #{discriminator_forward.7} parent=1 // pred_check_branch
      %1203 = sbr.rel (0) target = $region21
    $region20: #{discriminator_forward.7} parent=1 // pred_region
      _
    $region21: #{discriminator_forward.7} parent=1 // pred_fallthru
      _
    // Predicated region
    $region22: #{discriminator_forward.7} parent=1 // pred_check
      _
    $region23: #{discriminator_forward.7} parent=1 // pred_check_branch
      %1205 = sbr.rel (0) target = $region25
    $region24: #{discriminator_forward.7} parent=1 // pred_region
      %s1207 = ssub.s32 32, 32
      %1208 = vsyncadd [#allocation3], %s1207
      %s1210 = sshll.u32 [#allocation2], 4
      %s1211 = int_to_ptr.vmem [resolvable:$true] %s1210
      %1213 = dma.vmem_to_hbm [thread:$0]  %s1211, 32, %s5, [#allocation3]
    $region25: #{discriminator_forward.7} parent=1 // pred_fallthru
      _
    // Predicated region
    $region26: #{discriminator_forward.7} parent=1 // pred_check
      _
    $region27: #{discriminator_forward.7} parent=1 // pred_check_branch
      %1215 = sbr.rel (0) target = $region29
    $region28: #{discriminator_forward.7} parent=1 // pred_region
      _
    $region29: #{discriminator_forward.7} parent=1 // pred_fallthru
      _
    // Predicated region
    $region30: #{discriminator_forward.7} parent=1 // pred_check
      _
    $region31: #{discriminator_forward.7} parent=1 // pred_check_branch
      %1217 = sbr.rel (0) target = $region33
    $region32: #{discriminator_forward.7} parent=1 // pred_region
      %1218 = dma.done [#allocation3], 32
    $region33: #{discriminator_forward.7} parent=1 // pred_fallthru
      _
    %1219 = vsyncpa [#allocation3], 1

</llo_original>
